<compile_context>
chip_gen: v5e
topology: v5e:2x2
jax: 0.10.0
libtpu: 0.0.40
codegen_flags: <defaults>
</compile_context>

<pallas_src>
import math

import jax
import jax.numpy as jnp
from jax.experimental import pallas as pl
from jax.experimental.pallas import tpu as pltpu

_EPS = 1e-5
_LANE = 128
_SUB = 8


def _round_up(x, m):
    return (x + m - 1) // m * m


# ------------------------------ Pallas kernels ------------------------------ #
def _conv_gemm_kernel(p_ref, w_ref, b_ref, o_ref):
    """conv1 + bn_conv1 + ReLU as an im2col GEMM.

    p_ref: (TB*OH*OW, Cin*KH*KW)  patches for TB images
    w_ref: (Cin*KH*KW, 64)        conv weight with BN scale folded in
    b_ref: (1, 64)                conv bias with BN shift folded in
    o_ref: (TB*OH*OW, 64)
    """
    y = jnp.dot(p_ref[...], w_ref[...],
                preferred_element_type=jnp.float32) + b_ref[...]
    o_ref[...] = jnp.maximum(y, 0.0)


def _head_kernel(h_ref, wlat_ref, blat_ref, w2_ref, b2_ref, w3_ref, b3_ref,
                 logits_ref, lat_ref):
    """Fused FC head: [fc1|fc12] -> (bn1,fc2,bn2 folded) -> ReLU -> fc3.

    h_ref:      (TB, F)         flattened conv features (position-major layout)
    wlat_ref:   (F, L1+L2)      fc1 and fc12 weights, rows permuted to match h
    blat_ref:   (1, L1+L2)
    w2_ref:     (L1+L2, HID)    fc2 weight with bn1/bn2 folded; rows >= L1 are 0
    b2_ref:     (1, HID)
    w3_ref:     (HID, OUT_P)    fc3 weight, output padded to 128 lanes
    b3_ref:     (1, OUT_P)
    logits_ref: (TB, OUT_P)
    lat_ref:    (TB, L1+L2)     [latent | latent2]
    """
    h = h_ref[...]
    lat = jnp.dot(h, wlat_ref[...],
                  preferred_element_type=jnp.float32) + blat_ref[...]
    lat_ref[...] = lat
    out2 = jnp.maximum(
        jnp.dot(lat, w2_ref[...], preferred_element_type=jnp.float32)
        + b2_ref[...], 0.0)
    logits_ref[...] = jnp.dot(out2, w3_ref[...],
                              preferred_element_type=jnp.float32) + b3_ref[...]


# --------------------------------- forward ---------------------------------- #
def _pallas_forward(kops, cfg, x):
    (cin, n_conv, kh_, kw_, stride, pad, latent_dim, latent_dim2,
     hidden, output_dim, out_p) = cfg
    b_real, _, h_in, w_in = x.shape
    oh = (h_in + 2 * pad - kh_) // stride + 1
    ow = (w_in + 2 * pad - kw_) // stride + 1
    npos = oh * ow
    bp = _round_up(max(b_real, _SUB), _SUB)          # pad batch to sublane multiple

    # ---- im2col (pure layout plumbing; all FLOPs run inside the kernels) ----
    xp = jnp.pad(x, ((0, bp - b_real), (0, 0), (pad, pad), (pad, pad)))
    cols = []
    for c in range(cin):
        for kh in range(kh_):
            for kw in range(kw_):
                cols.append(xp[:, c, kh:kh + stride * oh:stride,
                               kw:kw + stride * ow:stride])
    k_dim = cin * kh_ * kw_
    patches = jnp.stack(cols, axis=-1).reshape(bp * npos, k_dim)

    # ---- kernel 1: conv1 + bn_conv1 + ReLU (batch-tiled, parallel grid) -----
    tb1 = 2 if bp <= 32 else 8                       # tb1 * npos stays % 8 == 0
    rows = tb1 * npos
    out1 = pl.pallas_call(
        _conv_gemm_kernel,
        out_shape=jax.ShapeDtypeStruct((bp * npos, n_conv), jnp.float32),
        grid=(bp // tb1,),
        in_specs=[
            pl.BlockSpec((rows, k_dim), lambda i: (i, 0)),
            pl.BlockSpec((k_dim, n_conv), lambda i: (0, 0)),
            pl.BlockSpec((1, n_conv), lambda i: (0, 0)),
        ],
        out_specs=pl.BlockSpec((rows, n_conv), lambda i: (i, 0)),
        compiler_params=pltpu.CompilerParams(dimension_semantics=("parallel",)),
    )(patches, kops["wc"], kops["bc"])

    # Free row-major collapse: (BP*npos, 64) -> (BP, npos*64).
    h = out1.reshape(bp, npos * n_conv)

    # ---- kernel 2: fused FC head --------------------------------------------
    lat_tot = latent_dim + latent_dim2
    feat = npos * n_conv
    tb2 = _SUB
    logits_p, lat = pl.pallas_call(
        _head_kernel,
        out_shape=(jax.ShapeDtypeStruct((bp, out_p), jnp.float32),
                   jax.ShapeDtypeStruct((bp, lat_tot), jnp.float32)),
        grid=(bp // tb2,),
        in_specs=[
            pl.BlockSpec((tb2, feat), lambda i: (i, 0)),
            pl.BlockSpec((feat, lat_tot), lambda i: (0, 0)),
            pl.BlockSpec((1, lat_tot), lambda i: (0, 0)),
            pl.BlockSpec((lat_tot, hidden), lambda i: (0, 0)),
            pl.BlockSpec((1, hidden), lambda i: (0, 0)),
            pl.BlockSpec((hidden, out_p), lambda i: (0, 0)),
            pl.BlockSpec((1, out_p), lambda i: (0, 0)),
        ],
        out_specs=(pl.BlockSpec((tb2, out_p), lambda i: (i, 0)),
                   pl.BlockSpec((tb2, lat_tot), lambda i: (i, 0))),
        compiler_params=pltpu.CompilerParams(dimension_semantics=("parallel",)),
    )(h, kops["w_lat"], kops["b_lat"], kops["w2"], kops["b2"],
      kops["w3"], kops["b3"])

    logits = logits_p[:b_real, :output_dim]
    latent = lat[:b_real, :latent_dim]
    latent2 = lat[:b_real, latent_dim:latent_dim + latent_dim2]
    return logits, latent, latent2


# ------------------------------ module wrapper ------------------------------ #
class MNISTEncDecPallas:
    """JAX/Pallas replica of the PyTorch MNIST_EncDec forward pass (eval-mode BN)."""

    def __init__(self, key, name="FC_Model", input_channels=1, output_dim=10,
                 latent_dim=10, latent_dim2=20):
        self.name = name
        self.input_channels = input_channels
        self.output_dim = output_dim
        self.latent_dim = latent_dim
        self.latent_dim2 = latent_dim2
        self.n_conv = 64
        self.hidden = 128
        self.kh = self.kw = 5
        self.stride = 2
        self.pad = 2
        # MNIST geometry implied by fc1 (64*14*14): 28x28 -> 14x14 after the conv.
        self.oh = self.ow = 14
        self.feat = self.n_conv * self.oh * self.ow      # 12544

        self.params = self._init_params(key)             # PyTorch-layout params
        self.kops = self._fold_params(self.params)       # folded kernel operands

        out_p = _round_up(output_dim, _LANE)
        cfg = (input_channels, self.n_conv, self.kh, self.kw, self.stride,
               self.pad, latent_dim, latent_dim2, self.hidden, output_dim, out_p)
        kops = self.kops
        self._forward = jax.jit(lambda xx: _pallas_forward(kops, cfg, xx))

    # -- PyTorch-default initialization (weights kept in PyTorch layout) ------
    def _init_params(self, key):
        def uniform(k, shape, bound):
            return jax.random.uniform(k, shape, jnp.float32, -bound, bound)

        keys = iter(jax.random.split(key, 24))
        nxt = lambda: next(keys)
        cin, nc = self.input_channels, self.n_conv
        f, l1, l2 = self.feat, self.latent_dim, self.latent_dim2
        hid, out = self.hidden, self.output_dim

        p = {}
        b = 1.0 / math.sqrt(cin * self.kh * self.kw)
        p["conv_w"] = uniform(nxt(), (nc, cin, self.kh, self.kw), b)
        p["conv_b"] = uniform(nxt(), (nc,), b)
        b = 1.0 / math.sqrt(f)
        p["fc1_w"] = uniform(nxt(), (l1, f), b)
        p["fc1_b"] = uniform(nxt(), (l1,), b)
        p["fc12_w"] = uniform(nxt(), (l2, f), b)
        p["fc12_b"] = uniform(nxt(), (l2,), b)
        b = 1.0 / math.sqrt(l1)
        p["fc2_w"] = uniform(nxt(), (hid, l1), b)
        p["fc2_b"] = uniform(nxt(), (hid,), b)
        b = 1.0 / math.sqrt(hid)
        p["fc3_w"] = uniform(nxt(), (out, hid), b)
        p["fc3_b"] = uniform(nxt(), (out,), b)
        # BatchNorm (eval mode): non-trivial affine + running stats so the
        # folding path is actually exercised by the correctness check.
        for nm, dim in (("bnc", nc), ("bn1", l1), ("bn2", hid)):
            p[nm + "_g"] = jax.random.uniform(nxt(), (dim,), jnp.float32, 0.5, 1.5)
            p[nm + "_b"] = 0.1 * jax.random.normal(nxt(), (dim,), jnp.float32)
            p[nm + "_m"] = 0.1 * jax.random.normal(nxt(), (dim,), jnp.float32)
            p[nm + "_v"] = jax.random.uniform(nxt(), (dim,), jnp.float32, 0.5, 1.5)
        return p

    # -- fold BN/bias into weights, permute/pad for the kernel layouts --------
    def _fold_params(self, p):
        cin, nc = self.input_channels, self.n_conv
        l1, l2, hid, out = self.latent_dim, self.latent_dim2, self.hidden, self.output_dim
        npos, f = self.oh * self.ow, self.feat
        out_p = _round_up(out, _LANE)

        # conv + bn_conv1
        s_c = p["bnc_g"] * jax.lax.rsqrt(p["bnc_v"] + _EPS)
        t_c = p["bnc_b"] - p["bnc_m"] * s_c
        wc = p["conv_w"].reshape(nc, cin * self.kh * self.kw).T        # (25, 64)
        kops = {"wc": wc * s_c[None, :],
                "bc": (p["conv_b"] * s_c + t_c)[None, :]}

        # fc1 / fc12: permute rows from PyTorch (c, pos) order to the kernel's
        # position-major (pos, c) layout, then fuse into one weight matrix.
        def permute(w_pt):  # (out_dim, F) -> (F, out_dim), rows in (pos, c) order
            return (w_pt.T.reshape(nc, npos, -1)
                    .transpose(1, 0, 2).reshape(f, -1))

        kops["w_lat"] = jnp.concatenate([permute(p["fc1_w"]), permute(p["fc12_w"])],
                                        axis=1)                        # (F, L1+L2)
        kops["b_lat"] = jnp.concatenate([p["fc1_b"], p["fc12_b"]])[None, :]

        # bn1 + fc2 + bn2 folded into a single affine on [latent | latent2].
        s1 = p["bn1_g"] * jax.lax.rsqrt(p["bn1_v"] + _EPS)
        t1 = p["bn1_b"] - p["bn1_m"] * s1
        s2 = p["bn2_g"] * jax.lax.rsqrt(p["bn2_v"] + _EPS)
        t2 = p["bn2_b"] - p["bn2_m"] * s2
        w2 = p["fc2_w"].T                                              # (L1, HID)
        w2ff = (s1[:, None] * w2) * s2[None, :]
        b2ff = (t1 @ w2 + p["fc2_b"]) * s2 + t2
        kops["w2"] = jnp.zeros((l1 + l2, hid), jnp.float32).at[:l1].set(w2ff)
        kops["b2"] = b2ff[None, :]

        # fc3, zero-padded to 128 output lanes for lane-dense stores.
        kops["w3"] = jnp.zeros((hid, out_p), jnp.float32).at[:, :out].set(p["fc3_w"].T)
        kops["b3"] = jnp.zeros((1, out_p), jnp.float32).at[0, :out].set(p["fc3_b"])
        return kops

    def __call__(self, x):
        return self._forward(x)

    # -- pure-JAX reference (same eval-mode BN semantics) ----------------------
    def reference(self, x):
        p = self.params
        hp = jax.lax.Precision.HIGHEST
        y = jax.lax.conv_general_dilated(
            x, p["conv_w"], window_strides=(self.stride, self.stride),
            padding=((self.pad, self.pad), (self.pad, self.pad)),
            dimension_numbers=("NCHW", "OIHW", "NCHW"), precision=hp)
        y = y + p["conv_b"][None, :, None, None]
        s = p["bnc_g"] * jax.lax.rsqrt(p["bnc_v"] + _EPS)
        t = p["bnc_b"] - p["bnc_m"] * s
        y = jnp.maximum(y * s[None, :, None, None] + t[None, :, None, None], 0.0)
        out1 = y.reshape(y.shape[0], -1)
        latent = jnp.dot(out1, p["fc1_w"].T, precision=hp) + p["fc1_b"]
        latent2 = jnp.dot(out1, p["fc12_w"].T, precision=hp) + p["fc12_b"]
        s1 = p["bn1_g"] * jax.lax.rsqrt(p["bn1_v"] + _EPS)
        t1 = p["bn1_b"] - p["bn1_m"] * s1
        z = jnp.dot(latent * s1 + t1, p["fc2_w"].T, precision=hp) + p["fc2_b"]
        s2 = p["bn2_g"] * jax.lax.rsqrt(p["bn2_v"] + _EPS)
        t2 = p["bn2_b"] - p["bn2_m"] * s2
        out2 = jnp.maximum(z * s2 + t2, 0.0)
        logits = jnp.dot(out2, p["fc3_w"].T, precision=hp) + p["fc3_b"]
        return logits, latent, latent2


# ----------------------------------- main ------------------------------------ #
if __name__ == "__main__":
    key = jax.random.PRNGKey(0)
    pkey, xkey = jax.random.split(key)

    model = MNISTEncDecPallas(pkey, input_channels=1, output_dim=10,
                              latent_dim=10, latent_dim2=20)
    x = jax.random.normal(xkey, (4, 1, 28, 28), jnp.float32)

    logits, latent, latent2 = jax.block_until_ready(model(x))
    assert logits.shape == (4, 10)
    assert latent.shape == (4, 10)
    assert latent2.shape == (4, 20)

    ref_logits, ref_latent, ref_latent2 = model.reference(x)
    for got, ref in ((logits, ref_logits), (latent, ref_latent),
                     (latent2, ref_latent2)):
        assert jnp.allclose(got, ref, atol=1e-2, rtol=1e-2), \
            float(jnp.max(jnp.abs(got - ref)))

    print("KERNEL_OK")
</pallas_src>

<mosaic_0001>
module attributes {stable_mosaic.version = 11 : i64} {
  func.func @_conv_gemm_kernel(%arg0: i32, %arg1: memref<392x25xf32, #tpu.memory_space<vmem>>, %arg2: memref<25x64xf32, #tpu.memory_space<vmem>>, %arg3: memref<1x64xf32, #tpu.memory_space<vmem>>, %arg4: memref<392x64xf32, #tpu.memory_space<vmem>>) attributes {dimension_semantics = [#tpu.dimension_semantics<parallel>], iteration_bounds = array<i64: 4>, scalar_prefetch = 0 : i64, scratch_operands = 0 : i64, tpu.core_type = #tpu.core_type<tc>, window_params = [{transform_indices = @transform_0, window_bounds = array<i64: 392, 25>}, {pipeline_mode = #tpu.pipeline_mode<synchronous>, transform_indices = @transform_1, window_bounds = array<i64: 25, 64>}, {pipeline_mode = #tpu.pipeline_mode<synchronous>, transform_indices = @transform_2, window_bounds = array<i64: 1, 64>}, {transform_indices = @transform_3, window_bounds = array<i64: 392, 64>}]} {
    %c0 = arith.constant 0 : index
    %c0_0 = arith.constant 0 : index
    %0 = vector.load %arg1[%c0, %c0_0] : memref<392x25xf32, #tpu.memory_space<vmem>>, vector<392x25xf32>
    %c0_1 = arith.constant 0 : index
    %c0_2 = arith.constant 0 : index
    %1 = vector.load %arg2[%c0_1, %c0_2] : memref<25x64xf32, #tpu.memory_space<vmem>>, vector<25x64xf32>
    %cst = arith.constant dense<0.000000e+00> : vector<392x64xf32>
    %2 = tpu.matmul %0, %1, %cst {dimension_numbers = #tpu.dot_dimension_numbers<[1], [0], [0], [1], [0, 0, 1, 1], [], []>} : vector<392x25xf32>, vector<25x64xf32>, vector<392x64xf32> -> vector<392x64xf32>
    %c0_3 = arith.constant 0 : index
    %c0_4 = arith.constant 0 : index
    %3 = vector.load %arg3[%c0_3, %c0_4] : memref<1x64xf32, #tpu.memory_space<vmem>>, vector<1x64xf32>
    %4 = vector.broadcast %3 : vector<1x64xf32> to vector<392x64xf32>
    %5 = arith.addf %2, %4 : vector<392x64xf32>
    %cst_5 = arith.constant 0.000000e+00 : f32
    %6 = vector.broadcast %cst_5 : f32 to vector<392x64xf32>
    %7 = arith.maximumf %5, %6 : vector<392x64xf32>
    %c0_6 = arith.constant 0 : index
    %c0_7 = arith.constant 0 : index
    %8 = vector.load %arg4[%c0_6, %c0_7] : memref<392x64xf32, #tpu.memory_space<vmem>>, vector<392x64xf32>
    tpu.vector_store %arg4[%c0_6, %c0_7], %7 {strides = array<i32>} : memref<392x64xf32, #tpu.memory_space<vmem>>, vector<392x64xf32>,
    return
  }
  func.func @transform_0(%arg0: i32) -> (i32, i32) {
    %c0_i32 = arith.constant 0 : i32
    %c0_i32_0 = arith.constant 0 : i32
    return %arg0, %c0_i32 : i32, i32
  }
  func.func @transform_1(%arg0: i32) -> (i32, i32) {
    %c0_i32 = arith.constant 0 : i32
    %c0_i32_0 = arith.constant 0 : i32
    %c0_i32_1 = arith.constant 0 : i32
    return %c0_i32, %c0_i32_0 : i32, i32
  }
  func.func @transform_2(%arg0: i32) -> (i32, i32) {
    %c0_i32 = arith.constant 0 : i32
    %c0_i32_0 = arith.constant 0 : i32
    %c0_i32_1 = arith.constant 0 : i32
    return %c0_i32, %c0_i32_0 : i32, i32
  }
  func.func @transform_3(%arg0: i32) -> (i32, i32) {
    %c0_i32 = arith.constant 0 : i32
    %c0_i32_0 = arith.constant 0 : i32
    return %arg0, %c0_i32 : i32, i32
  }
}

module attributes {stable_mosaic.version = 11 : i64} {
  func.func @_head_kernel(%arg0: i32, %arg1: memref<8x12544xf32, #tpu.memory_space<vmem>>, %arg2: memref<12544x30xf32, #tpu.memory_space<vmem>>, %arg3: memref<1x30xf32, #tpu.memory_space<vmem>>, %arg4: memref<30x128xf32, #tpu.memory_space<vmem>>, %arg5: memref<1x128xf32, #tpu.memory_space<vmem>>, %arg6: memref<128x128xf32, #tpu.memory_space<vmem>>, %arg7: memref<1x128xf32, #tpu.memory_space<vmem>>, %arg8: memref<8x128xf32, #tpu.memory_space<vmem>>, %arg9: memref<8x30xf32, #tpu.memory_space<vmem>>) attributes {dimension_semantics = [#tpu.dimension_semantics<parallel>], iteration_bounds = array<i64: 1>, scalar_prefetch = 0 : i64, scratch_operands = 0 : i64, tpu.core_type = #tpu.core_type<tc>, window_params = [{transform_indices = @transform_0, window_bounds = array<i64: 8, 12544>}, {pipeline_mode = #tpu.pipeline_mode<synchronous>, transform_indices = @transform_1, window_bounds = array<i64: 12544, 30>}, {pipeline_mode = #tpu.pipeline_mode<synchronous>, transform_indices = @transform_2, window_bounds = array<i64: 1, 30>}, {pipeline_mode = #tpu.pipeline_mode<synchronous>, transform_indices = @transform_3, window_bounds = array<i64: 30, 128>}, {pipeline_mode = #tpu.pipeline_mode<synchronous>, transform_indices = @transform_4, window_bounds = array<i64: 1, 128>}, {pipeline_mode = #tpu.pipeline_mode<synchronous>, transform_indices = @transform_5, window_bounds = array<i64: 128, 128>}, {pipeline_mode = #tpu.pipeline_mode<synchronous>, transform_indices = @transform_6, window_bounds = array<i64: 1, 128>}, {transform_indices = @transform_7, window_bounds = array<i64: 8, 128>}, {transform_indices = @transform_8, window_bounds = array<i64: 8, 30>}]} {
    %c0 = arith.constant 0 : index
    %c0_0 = arith.constant 0 : index
    %0 = vector.load %arg1[%c0, %c0_0] : memref<8x12544xf32, #tpu.memory_space<vmem>>, vector<8x12544xf32>
    %c0_1 = arith.constant 0 : index
    %c0_2 = arith.constant 0 : index
    %1 = vector.load %arg2[%c0_1, %c0_2] : memref<12544x30xf32, #tpu.memory_space<vmem>>, vector<12544x30xf32>
    %cst = arith.constant dense<0.000000e+00> : vector<8x30xf32>
    %2 = tpu.matmul %0, %1, %cst {dimension_numbers = #tpu.dot_dimension_numbers<[1], [0], [0], [1], [0, 0, 1, 1], [], []>} : vector<8x12544xf32>, vector<12544x30xf32>, vector<8x30xf32> -> vector<8x30xf32>
    %c0_3 = arith.constant 0 : index
    %c0_4 = arith.constant 0 : index
    %3 = vector.load %arg3[%c0_3, %c0_4] : memref<1x30xf32, #tpu.memory_space<vmem>>, vector<1x30xf32>
    %4 = vector.broadcast %3 : vector<1x30xf32> to vector<8x30xf32>
    %5 = arith.addf %2, %4 : vector<8x30xf32>
    %c0_5 = arith.constant 0 : index
    %c0_6 = arith.constant 0 : index
    %6 = vector.load %arg9[%c0_5, %c0_6] : memref<8x30xf32, #tpu.memory_space<vmem>>, vector<8x30xf32>
    tpu.vector_store %arg9[%c0_5, %c0_6], %5 {strides = array<i32>} : memref<8x30xf32, #tpu.memory_space<vmem>>, vector<8x30xf32>,
    %c0_7 = arith.constant 0 : index
    %c0_8 = arith.constant 0 : index
    %7 = vector.load %arg4[%c0_7, %c0_8] : memref<30x128xf32, #tpu.memory_space<vmem>>, vector<30x128xf32>
    %cst_9 = arith.constant dense<0.000000e+00> : vector<8x128xf32>
    %8 = tpu.matmul %5, %7, %cst_9 {dimension_numbers = #tpu.dot_dimension_numbers<[1], [0], [0], [1], [0, 0, 1, 1], [], []>} : vector<8x30xf32>, vector<30x128xf32>, vector<8x128xf32> -> vector<8x128xf32>
    %c0_10 = arith.constant 0 : index
    %c0_11 = arith.constant 0 : index
    %9 = vector.load %arg5[%c0_10, %c0_11] : memref<1x128xf32, #tpu.memory_space<vmem>>, vector<1x128xf32>
    %10 = vector.broadcast %9 : vector<1x128xf32> to vector<8x128xf32>
    %11 = arith.addf %8, %10 : vector<8x128xf32>
    %cst_12 = arith.constant 0.000000e+00 : f32
    %12 = vector.broadcast %cst_12 : f32 to vector<8x128xf32>
    %13 = arith.maximumf %11, %12 : vector<8x128xf32>
    %c0_13 = arith.constant 0 : index
    %c0_14 = arith.constant 0 : index
    %14 = vector.load %arg6[%c0_13, %c0_14] : memref<128x128xf32, #tpu.memory_space<vmem>>, vector<128x128xf32>
    %cst_15 = arith.constant dense<0.000000e+00> : vector<8x128xf32>
    %15 = tpu.matmul %13, %14, %cst_15 {dimension_numbers = #tpu.dot_dimension_numbers<[1], [0], [0], [1], [0, 0, 1, 1], [], []>} : vector<8x128xf32>, vector<128x128xf32>, vector<8x128xf32> -> vector<8x128xf32>
    %c0_16 = arith.constant 0 : index
    %c0_17 = arith.constant 0 : index
    %16 = vector.load %arg7[%c0_16, %c0_17] : memref<1x128xf32, #tpu.memory_space<vmem>>, vector<1x128xf32>
    %17 = vector.broadcast %16 : vector<1x128xf32> to vector<8x128xf32>
    %18 = arith.addf %15, %17 : vector<8x128xf32>
    %c0_18 = arith.constant 0 : index
    %c0_19 = arith.constant 0 : index
    %19 = vector.load %arg8[%c0_18, %c0_19] : memref<8x128xf32, #tpu.memory_space<vmem>>, vector<8x128xf32>
    tpu.vector_store %arg8[%c0_18, %c0_19], %18 {strides = array<i32>} : memref<8x128xf32, #tpu.memory_space<vmem>>, vector<8x128xf32>,
    return
  }
  func.func @transform_0(%arg0: i32) -> (i32, i32) {
    %c0_i32 = arith.constant 0 : i32
    %c0_i32_0 = arith.constant 0 : i32
    return %arg0, %c0_i32 : i32, i32
  }
  func.func @transform_1(%arg0: i32) -> (i32, i32) {
    %c0_i32 = arith.constant 0 : i32
    %c0_i32_0 = arith.constant 0 : i32
    %c0_i32_1 = arith.constant 0 : i32
    return %c0_i32, %c0_i32_0 : i32, i32
  }
  func.func @transform_2(%arg0: i32) -> (i32, i32) {
    %c0_i32 = arith.constant 0 : i32
    %c0_i32_0 = arith.constant 0 : i32
    %c0_i32_1 = arith.constant 0 : i32
    return %c0_i32, %c0_i32_0 : i32, i32
  }
  func.func @transform_3(%arg0: i32) -> (i32, i32) {
    %c0_i32 = arith.constant 0 : i32
    %c0_i32_0 = arith.constant 0 : i32
    %c0_i32_1 = arith.constant 0 : i32
    return %c0_i32, %c0_i32_0 : i32, i32
  }
  func.func @transform_4(%arg0: i32) -> (i32, i32) {
    %c0_i32 = arith.constant 0 : i32
    %c0_i32_0 = arith.constant 0 : i32
    %c0_i32_1 = arith.constant 0 : i32
    return %c0_i32, %c0_i32_0 : i32, i32
  }
  func.func @transform_5(%arg0: i32) -> (i32, i32) {
    %c0_i32 = arith.constant 0 : i32
    %c0_i32_0 = arith.constant 0 : i32
    %c0_i32_1 = arith.constant 0 : i32
    return %c0_i32, %c0_i32_0 : i32, i32
  }
  func.func @transform_6(%arg0: i32) -> (i32, i32) {
    %c0_i32 = arith.constant 0 : i32
    %c0_i32_0 = arith.constant 0 : i32
    %c0_i32_1 = arith.constant 0 : i32
    return %c0_i32, %c0_i32_0 : i32, i32
  }
  func.func @transform_7(%arg0: i32) -> (i32, i32) {
    %c0_i32 = arith.constant 0 : i32
    %c0_i32_0 = arith.constant 0 : i32
    return %arg0, %c0_i32 : i32, i32
  }
  func.func @transform_8(%arg0: i32) -> (i32, i32) {
    %c0_i32 = arith.constant 0 : i32
    %c0_i32_0 = arith.constant 0 : i32
    return %arg0, %c0_i32 : i32, i32
  }
}

</mosaic_0001>

<llo_original>
// kernel: _lambda_.2
$region0: #{_lambda_.2}
  #allocation0 [shape = 'u32[]', space=smem, size = 0x4, offset = 0x4, fixed_abs, tag = 'smem constant byte address 0x4 - core index']
  #allocation1 [shape = 'u32[72,128]{1,0:T(1,128)}', space=vmem, size = 0x9000, scoped, tag = 'internal scratch']
  %s0 = inlined_call_operand.vmem [shape: f32[1568,25], index: 0, kind: input, shape index: {}]
  %s1 = inlined_call_operand.vmem [shape: f32[25,64], index: 1, kind: input, shape index: {}]
  %s2 = inlined_call_operand.vmem [shape: f32[1,64], index: 2, kind: input, shape index: {}]
  %s3 = inlined_call_operand.vmem [shape: f32[1568,64], index: 3, kind: output, shape index: {}]
  %s4 = sld [smem:[#allocation0]]
  $region45: #{_lambda_.2} parent=0
    _
  %s6 = ssub.s32 1, %s4
  %s7 = scalar_select 0, %s6, %s4
  loop: start=0, step=1, limit=6
  $region2: #{_lambda_.2} parent=0 // loop_pre_header
    _
  $region3: #{_lambda_.2} parent=0 // loop_header
    %s9 = sphi 0, %s13
    %p10 = scmp.ge.s32.totalorder %s9, 6
    %s19 = sphi 0, %s21
    %s22 = sphi 0, %s19
    %s23 = sphi 0, %s22
    %s39 = sphi 0, %s23
    %s43 = sphi 0, %s43
    %s45 = sphi 0, %s43
    %s46 = sphi 0, %s45
    %s60 = sphi 0, %s46
    %s64 = sphi 0, %s64
    %s66 = sphi 0, %s64
    %s67 = sphi 0, %s66
    %s81 = sphi 0, %s67
    %s87 = sphi 0, %s89
    %s90 = sphi 0, %s87
    %s91 = sphi 0, %s90
    %s107 = sphi 0, %s91
  $region4: #{_lambda_.2} parent=0 // loop_header_branch
    %12 = sbr.rel (%p10) target = $region8
  $region5: #{_lambda_.2} parent=0 // loop_body
    %s14 = ssub.s32 %s9, 1
    %s15 = ssub.s32 %s9, 2
    %s16 = sadd.s32 %s9, 1
    %s17 = ssub.s32 %s9, %s16
    %p18 = scmp.eq.s32.totalorder %s17, 0
    %s20 = sadd.s32 %s19, 1
    %s21 = scalar_select %p18, %s19, %s20
    %p24 = pneg %p18
    %p25 = scmp.eq.s32.totalorder %s9, 3
    %p26 = por %p24, %p25
    %p27 = scmp.ne.s32.totalorder %s19, %s22
    %p28 = scmp.eq.s32.totalorder %s9, 0
    %p29 = por %p27, %p28
    %p30 = scmp.ne.s32.totalorder %s19, %s22
    %p31 = scmp.eq.s32.totalorder %s14, 3
    %p32 = por %p30, %p31
    %p33 = scmp.ne.s32.totalorder %s22, %s23
    %p34 = scmp.eq.s32.totalorder %s14, 0
    %p35 = por %p33, %p34
    %p36 = scmp.ne.s32.totalorder %s22, %s23
    %p37 = scmp.eq.s32.totalorder %s15, 3
    %p38 = por %p36, %p37
    %p40 = scmp.ne.s32.totalorder %s23, %s39
    %p41 = scmp.eq.s32.totalorder %s15, 0
    %p42 = por %p40, %p41
    %s44 = sadd.s32 %s43, 1
    %p47 = scmp.eq.s32.totalorder %s9, 3
    %p48 = scmp.ne.s32.totalorder %s43, %s45
    %p49 = scmp.eq.s32.totalorder %s9, 0
    %p50 = por %p48, %p49
    %p51 = scmp.ne.s32.totalorder %s43, %s45
    %p52 = scmp.eq.s32.totalorder %s14, 3
    %p53 = por %p51, %p52
    %p54 = scmp.ne.s32.totalorder %s45, %s46
    %p55 = scmp.eq.s32.totalorder %s14, 0
    %p56 = por %p54, %p55
    %p57 = scmp.ne.s32.totalorder %s45, %s46
    %p58 = scmp.eq.s32.totalorder %s15, 3
    %p59 = por %p57, %p58
    %p61 = scmp.ne.s32.totalorder %s46, %s60
    %p62 = scmp.eq.s32.totalorder %s15, 0
    %p63 = por %p61, %p62
    %s65 = sadd.s32 %s64, 1
    %p68 = scmp.eq.s32.totalorder %s9, 3
    %p69 = scmp.ne.s32.totalorder %s64, %s66
    %p70 = scmp.eq.s32.totalorder %s9, 0
    %p71 = por %p69, %p70
    %p72 = scmp.ne.s32.totalorder %s64, %s66
    %p73 = scmp.eq.s32.totalorder %s14, 3
    %p74 = por %p72, %p73
    %p75 = scmp.ne.s32.totalorder %s66, %s67
    %p76 = scmp.eq.s32.totalorder %s14, 0
    %p77 = por %p75, %p76
    %p78 = scmp.ne.s32.totalorder %s66, %s67
    %p79 = scmp.eq.s32.totalorder %s15, 3
    %p80 = por %p78, %p79
    %p82 = scmp.ne.s32.totalorder %s67, %s81
    %p83 = scmp.eq.s32.totalorder %s15, 0
    %p84 = por %p82, %p83
    %s85 = ssub.s32 %s9, %s16
    %p86 = scmp.eq.s32.totalorder %s85, 0
    %s88 = sadd.s32 %s87, 1
    %s89 = scalar_select %p86, %s87, %s88
    %p92 = pneg %p86
    %p93 = scmp.eq.s32.totalorder %s9, 3
    %p94 = por %p92, %p93
    %p95 = scmp.ne.s32.totalorder %s87, %s90
    %p96 = scmp.eq.s32.totalorder %s9, 0
    %p97 = por %p95, %p96
    %p98 = scmp.ne.s32.totalorder %s87, %s90
    %p99 = scmp.eq.s32.totalorder %s14, 3
    %p100 = por %p98, %p99
    %p101 = scmp.ne.s32.totalorder %s90, %s91
    %p102 = scmp.eq.s32.totalorder %s14, 0
    %p103 = por %p101, %p102
    %p104 = scmp.ne.s32.totalorder %s90, %s91
    %p105 = scmp.eq.s32.totalorder %s15, 3
    %p106 = por %p104, %p105
    %p108 = scmp.ne.s32.totalorder %s91, %s107
    %p109 = scmp.eq.s32.totalorder %s15, 0
    %p110 = por %p108, %p109
    %p111 = scmp.le.s32.totalorder 1, %s9
    %p112 = scmp.lt.s32.totalorder %s9, 5
    %p113 = pnand %p111, %p112
    %p114 = pneg %p113
    // Predicated region
    $region9: #{_lambda_.2} parent=5 // pred_check
      _
    $region10: #{_lambda_.2} parent=5 // pred_check_branch
      %116 = sbr.rel (%p113) target = $region12
    $region11: #{_lambda_.2} parent=5 // pred_region
      %s117 = ssub.s32 %s9, 1
      // Predicated region
      $region13: #{_lambda_.2} parent=11 // pred_check
        %p118 = pneg %p56
      $region14: #{_lambda_.2} parent=11 // pred_check_branch
        %120 = sbr.rel (%p118) target = $region16
      $region15: #{_lambda_.2} parent=11 // pred_region
        _
      $region16: #{_lambda_.2} parent=11 // pred_fallthru
        _
      // Predicated region
      $region17: #{_lambda_.2} parent=11 // pred_check
        %p121 = pneg %p77
      $region18: #{_lambda_.2} parent=11 // pred_check_branch
        %123 = sbr.rel (%p121) target = $region20
      $region19: #{_lambda_.2} parent=11 // pred_region
        _
      $region20: #{_lambda_.2} parent=11 // pred_fallthru
        _
    $region12: #{_lambda_.2} parent=5 // pred_fallthru
      _
    %p124 = scmp.lt.s32.totalorder %s9, 4
    // Predicated region
    $region21: #{_lambda_.2} parent=5 // pred_check
      %p125 = pneg %p124
    $region22: #{_lambda_.2} parent=5 // pred_check_branch
      %127 = sbr.rel (%p125) target = $region24
    $region23: #{_lambda_.2} parent=5 // pred_region
      // Predicated region
      $region25: #{_lambda_.2} parent=23 // pred_check
        %p128 = pneg %p29
      $region26: #{_lambda_.2} parent=23 // pred_check_branch
        %130 = sbr.rel (%p128) target = $region28
      $region27: #{_lambda_.2} parent=23 // pred_region
        %s131 = smul.u32 49, %s9
        %p132 = scmp.lt.s32.totalorder %s131, 195
        %s133 = scalar_select %p132, %s131, 195
        %s134 = smul.addr %s133, 8
        %s135 = scalar_lea.vmem %s0, %s134
        %s136 = smul.u32 49, %s9
      $region28: #{_lambda_.2} parent=23 // pred_fallthru
        _
    $region24: #{_lambda_.2} parent=5 // pred_fallthru
      _
    %p137 = scmp.le.s32.totalorder 1, %s9
    %p138 = scmp.lt.s32.totalorder %s9, 5
    %p139 = pnand %p137, %p138
    %p140 = pneg %p139
    // Predicated region
    $region29: #{_lambda_.2} parent=5 // pred_check
      _
    $region30: #{_lambda_.2} parent=5 // pred_check_branch
      %142 = sbr.rel (%p139) target = $region32
    $region31: #{_lambda_.2} parent=5 // pred_region
      %s143 = ssub.s32 %s9, 1
      %s144 = smul.u32 49, %s14
      %p145 = scmp.lt.s32.totalorder %s144, 195
      %s146 = scalar_select %p145, %s144, 195
      %s147 = smul.addr %s146, 8
      %s148 = scalar_lea.vmem %s0, %s147
      %p149 = pneg %p35
      %p150 = pneg %p32
      %p151 = pneg %p56
      %p152 = pneg %p53
      %p153 = pneg %p77
      %p154 = pneg %p74
      %p155 = pneg %p103
      %p156 = pneg %p100
      %s157 = smul.u32 49, %s14
      %p158 = scmp.lt.s32.totalorder %s157, 195
      %s159 = scalar_select %p158, %s157, 195
      %s160 = smul.addr %s159, 8
      %s161 = scalar_lea.vmem %s3, %s160
      %s162 = smul.u32 49, %s14
      %p163 = scmp.lt.s32.totalorder %s162, 195
      %s164 = scalar_select %p163, %s162, 195
      %s165 = smul.addr %s164, 8
      %s166 = scalar_lea.vmem %s0, %s165
      %s167 = smul.u32 49, %s14
      %s168 = smul.u32 49, %s14
      %p169 = scmp.lt.s32.totalorder %s168, 195
      %s170 = scalar_select %p169, %s168, 195
      %s171 = smul.addr %s170, 8
      %s172 = scalar_lea.vmem %s3, %s171
      %s173 = smul.u32 49, %s14
      %v174 = vld [vmem:[%s166] sm:$0xff]
      %v175 = vld [vmem:[%s166 + $0x8] sm:$0xff]
      %v176 = vld [vmem:[%s166 + $0x10] sm:$0xff]
      %v177 = vld [vmem:[%s166 + $0x18] sm:$0xff]
      %v178 = vld [vmem:[%s166 + $0x20] sm:$0xff]
      %v179 = vld [vmem:[%s166 + $0x28] sm:$0xff]
      %v180 = vld [vmem:[%s166 + $0x30] sm:$0xff]
      %v181 = vld [vmem:[%s166 + $0x38] sm:$0xff]
      %v182 = vld [vmem:[%s166 + $0x40] sm:$0xff]
      %v183 = vld [vmem:[%s166 + $0x48] sm:$0xff]
      %v184 = vld [vmem:[%s166 + $0x50] sm:$0xff]
      %v185 = vld [vmem:[%s166 + $0x58] sm:$0xff]
      %v186 = vld [vmem:[%s166 + $0x60] sm:$0xff]
      %v187 = vld [vmem:[%s166 + $0x68] sm:$0xff]
      %v188 = vld [vmem:[%s166 + $0x70] sm:$0xff]
      %v189 = vld [vmem:[%s166 + $0x78] sm:$0xff]
      %v190 = vld [vmem:[%s166 + $0x80] sm:$0xff]
      %v191 = vld [vmem:[%s166 + $0x88] sm:$0xff]
      %v192 = vld [vmem:[%s166 + $0x90] sm:$0xff]
      %v193 = vld [vmem:[%s166 + $0x98] sm:$0xff]
      %v194 = vld [vmem:[%s166 + $0xa0] sm:$0xff]
      %v195 = vld [vmem:[%s166 + $0xa8] sm:$0xff]
      %v196 = vld [vmem:[%s166 + $0xb0] sm:$0xff]
      %v197 = vld [vmem:[%s166 + $0xb8] sm:$0xff]
      %v198 = vld [vmem:[%s166 + $0xc0] sm:$0xff]
      %v199 = vld [vmem:[%s166 + $0xc8] sm:$0xff]
      %v200 = vld [vmem:[%s166 + $0xd0] sm:$0xff]
      %v201 = vld [vmem:[%s166 + $0xd8] sm:$0xff]
      %v202 = vld [vmem:[%s166 + $0xe0] sm:$0xff]
      %v203 = vld [vmem:[%s166 + $0xe8] sm:$0xff]
      %v204 = vld [vmem:[%s166 + $0xf0] sm:$0xff]
      %v205 = vld [vmem:[%s166 + $0xf8] sm:$0xff]
      %v206 = vld [vmem:[%s166 + $0x100] sm:$0xff]
      %v207 = vld [vmem:[%s166 + $0x108] sm:$0xff]
      %v208 = vld [vmem:[%s166 + $0x110] sm:$0xff]
      %v209 = vld [vmem:[%s166 + $0x118] sm:$0xff]
      %v210 = vld [vmem:[%s166 + $0x120] sm:$0xff]
      %v211 = vld [vmem:[%s166 + $0x128] sm:$0xff]
      %v212 = vld [vmem:[%s166 + $0x130] sm:$0xff]
      %v213 = vld [vmem:[%s166 + $0x138] sm:$0xff]
      %v214 = vld [vmem:[%s166 + $0x140] sm:$0xff]
      %v215 = vld [vmem:[%s166 + $0x148] sm:$0xff]
      %v216 = vld [vmem:[%s166 + $0x150] sm:$0xff]
      %v217 = vld [vmem:[%s166 + $0x158] sm:$0xff]
      %v218 = vld [vmem:[%s166 + $0x160] sm:$0xff]
      %v219 = vld [vmem:[%s166 + $0x168] sm:$0xff]
      %v220 = vld [vmem:[%s166 + $0x170] sm:$0xff]
      %v221 = vld [vmem:[%s166 + $0x178] sm:$0xff]
      %v222 = vld [vmem:[%s166 + $0x180] sm:$0xff]
      %v223 = vld [vmem:[%s1] sm:$0xff]
      %v224 = vld [vmem:[%s1 + $0x8] sm:$0xff]
      %v225 = vld [vmem:[%s1 + $0x10] sm:$0xff]
      %v226 = vld [vmem:[%s1 + $0x18] sm:$0x1]
      %v227 = vld [vmem:[%s2] sm:$0x1]
      %v229 = vperm.slane %v227, 0
      %vm231 = vcmask 203776
      %v233 = vsel %vm231, %v174, 0
      %v236 = vsel %vm231, %v175, 0
      %v239 = vsel %vm231, %v176, 0
      %v242 = vsel %vm231, %v177, 0
      %v245 = vsel %vm231, %v178, 0
      %v248 = vsel %vm231, %v179, 0
      %v251 = vsel %vm231, %v180, 0
      %v254 = vsel %vm231, %v181, 0
      %v257 = vsel %vm231, %v182, 0
      %v260 = vsel %vm231, %v183, 0
      %v263 = vsel %vm231, %v184, 0
      %v266 = vsel %vm231, %v185, 0
      %v269 = vsel %vm231, %v186, 0
      %v272 = vsel %vm231, %v187, 0
      %v275 = vsel %vm231, %v188, 0
      %v278 = vsel %vm231, %v189, 0
      %v281 = vsel %vm231, %v190, 0
      %v284 = vsel %vm231, %v191, 0
      %v287 = vsel %vm231, %v192, 0
      %v290 = vsel %vm231, %v193, 0
      %v293 = vsel %vm231, %v194, 0
      %v296 = vsel %vm231, %v195, 0
      %v299 = vsel %vm231, %v196, 0
      %v302 = vsel %vm231, %v197, 0
      %v305 = vsel %vm231, %v198, 0
      %v308 = vsel %vm231, %v199, 0
      %v311 = vsel %vm231, %v200, 0
      %v314 = vsel %vm231, %v201, 0
      %v317 = vsel %vm231, %v202, 0
      %v320 = vsel %vm231, %v203, 0
      %v323 = vsel %vm231, %v204, 0
      %v326 = vsel %vm231, %v205, 0
      %v329 = vsel %vm231, %v206, 0
      %v332 = vsel %vm231, %v207, 0
      %v335 = vsel %vm231, %v208, 0
      %v338 = vsel %vm231, %v209, 0
      %v341 = vsel %vm231, %v210, 0
      %v344 = vsel %vm231, %v211, 0
      %v347 = vsel %vm231, %v212, 0
      %v350 = vsel %vm231, %v213, 0
      %v353 = vsel %vm231, %v214, 0
      %v356 = vsel %vm231, %v215, 0
      %v359 = vsel %vm231, %v216, 0
      %v362 = vsel %vm231, %v217, 0
      %v365 = vsel %vm231, %v218, 0
      %v368 = vsel %vm231, %v219, 0
      %v371 = vsel %vm231, %v220, 0
      %v374 = vsel %vm231, %v221, 0
      %v377 = vsel %vm231, %v222, 0
      %vm379 = vcmask 1040384
      %v381 = vsel %vm379, %v226, 0
      %383 = vmatpush.msra.mxu0 0.0
      %384 = vmatpush.msra.mxu0 0.0
      %385 = vmatpush.msra.mxu0 0.0
      %386 = vmatpush.msra.mxu0 0.0
      %387 = vmatpush.msra.mxu0 0.0
      %388 = vmatpush.msra.mxu0 0.0
      %389 = vmatpush.msra.mxu0 0.0
      %390 = vmatpush.msra.mxu0 0.0
      %391 = vmatpush.msra.mxu0 0.0
      %392 = vmatpush.msra.mxu0 0.0
      %393 = vmatpush.msra.mxu0 0.0
      %394 = vmatpush.msra.mxu0 0.0
      %395 = vmatpush.msra.mxu0 %v381
      %396 = vmatpush.msra.mxu0 %v225
      %397 = vmatpush.msra.mxu0 %v224
      %398 = vmatpush.msra.mxu0 %v223
      %399 = vmatmul.f32.gmra.mxu0 %v233
      %v400 = vpop.f32.mrf.mxu0
      %v401 = vadd.f32 %v229, %v400
      %402 = vmatmul.f32.gmra.mxu0 %v236
      %v403 = vpop.f32.mrf.mxu0
      %v404 = vadd.f32 %v229, %v403
      %405 = vmatmul.f32.gmra.mxu0 %v239
      %v406 = vpop.f32.mrf.mxu0
      %v407 = vadd.f32 %v229, %v406
      %408 = vmatmul.f32.gmra.mxu0 %v242
      %v409 = vpop.f32.mrf.mxu0
      %v410 = vadd.f32 %v229, %v409
      %411 = vmatmul.f32.gmra.mxu0 %v245
      %v412 = vpop.f32.mrf.mxu0
      %v413 = vadd.f32 %v229, %v412
      %414 = vmatmul.f32.gmra.mxu0 %v248
      %v415 = vpop.f32.mrf.mxu0
      %v416 = vadd.f32 %v229, %v415
      %417 = vmatmul.f32.gmra.mxu0 %v251
      %v418 = vpop.f32.mrf.mxu0
      %v419 = vadd.f32 %v229, %v418
      %420 = vmatmul.f32.gmra.mxu0 %v254
      %v421 = vpop.f32.mrf.mxu0
      %v422 = vadd.f32 %v229, %v421
      %423 = vmatmul.f32.gmra.mxu0 %v257
      %v424 = vpop.f32.mrf.mxu0
      %v425 = vadd.f32 %v229, %v424
      %426 = vmatmul.f32.gmra.mxu0 %v260
      %v427 = vpop.f32.mrf.mxu0
      %v428 = vadd.f32 %v229, %v427
      %429 = vmatmul.f32.gmra.mxu0 %v263
      %v430 = vpop.f32.mrf.mxu0
      %v431 = vadd.f32 %v229, %v430
      %432 = vmatmul.f32.gmra.mxu0 %v266
      %v433 = vpop.f32.mrf.mxu0
      %v434 = vadd.f32 %v229, %v433
      %435 = vmatmul.f32.gmra.mxu0 %v269
      %v436 = vpop.f32.mrf.mxu0
      %v437 = vadd.f32 %v229, %v436
      %438 = vmatmul.f32.gmra.mxu0 %v272
      %v439 = vpop.f32.mrf.mxu0
      %v440 = vadd.f32 %v229, %v439
      %441 = vmatmul.f32.gmra.mxu0 %v275
      %v442 = vpop.f32.mrf.mxu0
      %v443 = vadd.f32 %v229, %v442
      %444 = vmatmul.f32.gmra.mxu0 %v278
      %v445 = vpop.f32.mrf.mxu0
      %v446 = vadd.f32 %v229, %v445
      %447 = vmatmul.f32.gmra.mxu0 %v281
      %v448 = vpop.f32.mrf.mxu0
      %v449 = vadd.f32 %v229, %v448
      %450 = vmatmul.f32.gmra.mxu0 %v284
      %v451 = vpop.f32.mrf.mxu0
      %v452 = vadd.f32 %v229, %v451
      %453 = vmatmul.f32.gmra.mxu0 %v287
      %v454 = vpop.f32.mrf.mxu0
      %v455 = vadd.f32 %v229, %v454
      %456 = vmatmul.f32.gmra.mxu0 %v290
      %v457 = vpop.f32.mrf.mxu0
      %v458 = vadd.f32 %v229, %v457
      %459 = vmatmul.f32.gmra.mxu0 %v293
      %v460 = vpop.f32.mrf.mxu0
      %v461 = vadd.f32 %v229, %v460
      %462 = vmatmul.f32.gmra.mxu0 %v296
      %v463 = vpop.f32.mrf.mxu0
      %v464 = vadd.f32 %v229, %v463
      %465 = vmatmul.f32.gmra.mxu0 %v299
      %v466 = vpop.f32.mrf.mxu0
      %v467 = vadd.f32 %v229, %v466
      %468 = vmatmul.f32.gmra.mxu0 %v302
      %v469 = vpop.f32.mrf.mxu0
      %v470 = vadd.f32 %v229, %v469
      %471 = vmatmul.f32.gmra.mxu0 %v305
      %v472 = vpop.f32.mrf.mxu0
      %v473 = vadd.f32 %v229, %v472
      %474 = vmatmul.f32.gmra.mxu0 %v308
      %v475 = vpop.f32.mrf.mxu0
      %v476 = vadd.f32 %v229, %v475
      %477 = vmatmul.f32.gmra.mxu0 %v311
      %v478 = vpop.f32.mrf.mxu0
      %v479 = vadd.f32 %v229, %v478
      %480 = vmatmul.f32.gmra.mxu0 %v314
      %v481 = vpop.f32.mrf.mxu0
      %v482 = vadd.f32 %v229, %v481
      %483 = vmatmul.f32.gmra.mxu0 %v317
      %v484 = vpop.f32.mrf.mxu0
      %v485 = vadd.f32 %v229, %v484
      %486 = vmatmul.f32.gmra.mxu0 %v320
      %v487 = vpop.f32.mrf.mxu0
      %v488 = vadd.f32 %v229, %v487
      %489 = vmatmul.f32.gmra.mxu0 %v323
      %v490 = vpop.f32.mrf.mxu0
      %v491 = vadd.f32 %v229, %v490
      %492 = vmatmul.f32.gmra.mxu0 %v326
      %v493 = vpop.f32.mrf.mxu0
      %v494 = vadd.f32 %v229, %v493
      %495 = vmatmul.f32.gmra.mxu0 %v329
      %v496 = vpop.f32.mrf.mxu0
      %v497 = vadd.f32 %v229, %v496
      %498 = vmatmul.f32.gmra.mxu0 %v332
      %v499 = vpop.f32.mrf.mxu0
      %v500 = vadd.f32 %v229, %v499
      %501 = vmatmul.f32.gmra.mxu0 %v335
      %v502 = vpop.f32.mrf.mxu0
      %v503 = vadd.f32 %v229, %v502
      %504 = vmatmul.f32.gmra.mxu0 %v338
      %v505 = vpop.f32.mrf.mxu0
      %v506 = vadd.f32 %v229, %v505
      %507 = vmatmul.f32.gmra.mxu0 %v341
      %v508 = vpop.f32.mrf.mxu0
      %v509 = vadd.f32 %v229, %v508
      %510 = vmatmul.f32.gmra.mxu0 %v344
      %v511 = vpop.f32.mrf.mxu0
      %v512 = vadd.f32 %v229, %v511
      %513 = vmatmul.f32.gmra.mxu0 %v347
      %v514 = vpop.f32.mrf.mxu0
      %v515 = vadd.f32 %v229, %v514
      %516 = vmatmul.f32.gmra.mxu0 %v350
      %v517 = vpop.f32.mrf.mxu0
      %v518 = vadd.f32 %v229, %v517
      %519 = vmatmul.f32.gmra.mxu0 %v353
      %v520 = vpop.f32.mrf.mxu0
      %v521 = vadd.f32 %v229, %v520
      %522 = vmatmul.f32.gmra.mxu0 %v356
      %v523 = vpop.f32.mrf.mxu0
      %v524 = vadd.f32 %v229, %v523
      %525 = vmatmul.f32.gmra.mxu0 %v359
      %v526 = vpop.f32.mrf.mxu0
      %v527 = vadd.f32 %v229, %v526
      %528 = vmatmul.f32.gmra.mxu0 %v362
      %v529 = vpop.f32.mrf.mxu0
      %v530 = vadd.f32 %v229, %v529
      %531 = vmatmul.f32.gmra.mxu0 %v365
      %v532 = vpop.f32.mrf.mxu0
      %v533 = vadd.f32 %v229, %v532
      %534 = vmatmul.f32.gmra.mxu0 %v368
      %v535 = vpop.f32.mrf.mxu0
      %v536 = vadd.f32 %v229, %v535
      %537 = vmatmul.f32.gmra.mxu0 %v371
      %v538 = vpop.f32.mrf.mxu0
      %v539 = vadd.f32 %v229, %v538
      %540 = vmatmul.f32.gmra.mxu0 %v374
      %v541 = vpop.f32.mrf.mxu0
      %v542 = vadd.f32 %v229, %v541
      %543 = vmatmul.f32.gmra.mxu0 %v377
      %v544 = vpop.f32.mrf.mxu0
      %v545 = vadd.f32 %v229, %v544
      %546 = vdwg.mxu0
      %v547 = vmax.f32 %v401, 0.0
      %v548 = vmax.f32 %v404, 0.0
      %v549 = vmax.f32 %v407, 0.0
      %v550 = vmax.f32 %v410, 0.0
      %v551 = vmax.f32 %v413, 0.0
      %v552 = vmax.f32 %v416, 0.0
      %v553 = vmax.f32 %v419, 0.0
      %v554 = vmax.f32 %v422, 0.0
      %v555 = vmax.f32 %v425, 0.0
      %v556 = vmax.f32 %v428, 0.0
      %v557 = vmax.f32 %v431, 0.0
      %v558 = vmax.f32 %v434, 0.0
      %v559 = vmax.f32 %v437, 0.0
      %v560 = vmax.f32 %v440, 0.0
      %v561 = vmax.f32 %v443, 0.0
      %v562 = vmax.f32 %v446, 0.0
      %v563 = vmax.f32 %v449, 0.0
      %v564 = vmax.f32 %v452, 0.0
      %v565 = vmax.f32 %v455, 0.0
      %v566 = vmax.f32 %v458, 0.0
      %v567 = vmax.f32 %v461, 0.0
      %v568 = vmax.f32 %v464, 0.0
      %v569 = vmax.f32 %v467, 0.0
      %v570 = vmax.f32 %v470, 0.0
      %v571 = vmax.f32 %v473, 0.0
      %v572 = vmax.f32 %v476, 0.0
      %v573 = vmax.f32 %v479, 0.0
      %v574 = vmax.f32 %v482, 0.0
      %v575 = vmax.f32 %v485, 0.0
      %v576 = vmax.f32 %v488, 0.0
      %v577 = vmax.f32 %v491, 0.0
      %v578 = vmax.f32 %v494, 0.0
      %v579 = vmax.f32 %v497, 0.0
      %v580 = vmax.f32 %v500, 0.0
      %v581 = vmax.f32 %v503, 0.0
      %v582 = vmax.f32 %v506, 0.0
      %v583 = vmax.f32 %v509, 0.0
      %v584 = vmax.f32 %v512, 0.0
      %v585 = vmax.f32 %v515, 0.0
      %v586 = vmax.f32 %v518, 0.0
      %v587 = vmax.f32 %v521, 0.0
      %v588 = vmax.f32 %v524, 0.0
      %v589 = vmax.f32 %v527, 0.0
      %v590 = vmax.f32 %v530, 0.0
      %v591 = vmax.f32 %v533, 0.0
      %v592 = vmax.f32 %v536, 0.0
      %v593 = vmax.f32 %v539, 0.0
      %v594 = vmax.f32 %v542, 0.0
      %v595 = vmax.f32 %v545, 0.0
      %vm596 = vcmask 523264
      %597 = vst.msk [vmem:[%s172] sm:$0xff] %vm596, %v547
      %598 = vst.msk [vmem:[%s172 + $0x8] sm:$0xff] %vm596, %v548
      %599 = vst.msk [vmem:[%s172 + $0x10] sm:$0xff] %vm596, %v549
      %600 = vst.msk [vmem:[%s172 + $0x18] sm:$0xff] %vm596, %v550
      %601 = vst.msk [vmem:[%s172 + $0x20] sm:$0xff] %vm596, %v551
      %602 = vst.msk [vmem:[%s172 + $0x28] sm:$0xff] %vm596, %v552
      %603 = vst.msk [vmem:[%s172 + $0x30] sm:$0xff] %vm596, %v553
      %604 = vst.msk [vmem:[%s172 + $0x38] sm:$0xff] %vm596, %v554
      %605 = vst.msk [vmem:[%s172 + $0x40] sm:$0xff] %vm596, %v555
      %606 = vst.msk [vmem:[%s172 + $0x48] sm:$0xff] %vm596, %v556
      %607 = vst.msk [vmem:[%s172 + $0x50] sm:$0xff] %vm596, %v557
      %608 = vst.msk [vmem:[%s172 + $0x58] sm:$0xff] %vm596, %v558
      %609 = vst.msk [vmem:[%s172 + $0x60] sm:$0xff] %vm596, %v559
      %610 = vst.msk [vmem:[%s172 + $0x68] sm:$0xff] %vm596, %v560
      %611 = vst.msk [vmem:[%s172 + $0x70] sm:$0xff] %vm596, %v561
      %612 = vst.msk [vmem:[%s172 + $0x78] sm:$0xff] %vm596, %v562
      %613 = vst.msk [vmem:[%s172 + $0x80] sm:$0xff] %vm596, %v563
      %614 = vst.msk [vmem:[%s172 + $0x88] sm:$0xff] %vm596, %v564
      %615 = vst.msk [vmem:[%s172 + $0x90] sm:$0xff] %vm596, %v565
      %616 = vst.msk [vmem:[%s172 + $0x98] sm:$0xff] %vm596, %v566
      %617 = vst.msk [vmem:[%s172 + $0xa0] sm:$0xff] %vm596, %v567
      %618 = vst.msk [vmem:[%s172 + $0xa8] sm:$0xff] %vm596, %v568
      %619 = vst.msk [vmem:[%s172 + $0xb0] sm:$0xff] %vm596, %v569
      %620 = vst.msk [vmem:[%s172 + $0xb8] sm:$0xff] %vm596, %v570
      %621 = vst.msk [vmem:[%s172 + $0xc0] sm:$0xff] %vm596, %v571
      %622 = vst.msk [vmem:[%s172 + $0xc8] sm:$0xff] %vm596, %v572
      %623 = vst.msk [vmem:[%s172 + $0xd0] sm:$0xff] %vm596, %v573
      %624 = vst.msk [vmem:[%s172 + $0xd8] sm:$0xff] %vm596, %v574
      %625 = vst.msk [vmem:[%s172 + $0xe0] sm:$0xff] %vm596, %v575
      %626 = vst.msk [vmem:[%s172 + $0xe8] sm:$0xff] %vm596, %v576
      %627 = vst.msk [vmem:[%s172 + $0xf0] sm:$0xff] %vm596, %v577
      %628 = vst.msk [vmem:[%s172 + $0xf8] sm:$0xff] %vm596, %v578
      %629 = vst.msk [vmem:[%s172 + $0x100] sm:$0xff] %vm596, %v579
      %630 = vst.msk [vmem:[%s172 + $0x108] sm:$0xff] %vm596, %v580
      %631 = vst.msk [vmem:[%s172 + $0x110] sm:$0xff] %vm596, %v581
      %632 = vst.msk [vmem:[%s172 + $0x118] sm:$0xff] %vm596, %v582
      %633 = vst.msk [vmem:[%s172 + $0x120] sm:$0xff] %vm596, %v583
      %634 = vst.msk [vmem:[%s172 + $0x128] sm:$0xff] %vm596, %v584
      %635 = vst.msk [vmem:[%s172 + $0x130] sm:$0xff] %vm596, %v585
      %636 = vst.msk [vmem:[%s172 + $0x138] sm:$0xff] %vm596, %v586
      %637 = vst.msk [vmem:[%s172 + $0x140] sm:$0xff] %vm596, %v587
      %638 = vst.msk [vmem:[%s172 + $0x148] sm:$0xff] %vm596, %v588
      %639 = vst.msk [vmem:[%s172 + $0x150] sm:$0xff] %vm596, %v589
      %640 = vst.msk [vmem:[%s172 + $0x158] sm:$0xff] %vm596, %v590
      %641 = vst.msk [vmem:[%s172 + $0x160] sm:$0xff] %vm596, %v591
      %642 = vst.msk [vmem:[%s172 + $0x168] sm:$0xff] %vm596, %v592
      %643 = vst.msk [vmem:[%s172 + $0x170] sm:$0xff] %vm596, %v593
      %644 = vst.msk [vmem:[%s172 + $0x178] sm:$0xff] %vm596, %v594
      %645 = vst.msk [vmem:[%s172 + $0x180] sm:$0xff] %vm596, %v595
      %s646 = smul.u32 49, %s14
      %p647 = scmp.lt.s32.totalorder %s646, 195
      %s648 = scalar_select %p647, %s646, 195
      %s649 = smul.addr %s648, 8
      %s650 = scalar_lea.vmem %s3, %s649
      // Predicated region
      $region33: #{_lambda_.2} parent=31 // pred_check
        %p651 = pneg %p100
      $region34: #{_lambda_.2} parent=31 // pred_check_branch
        %653 = sbr.rel (%p651) target = $region36
      $region35: #{_lambda_.2} parent=31 // pred_region
        %s654 = smul.u32 49, %s14
      $region36: #{_lambda_.2} parent=31 // pred_fallthru
        _
    $region32: #{_lambda_.2} parent=5 // pred_fallthru
      _
    %p655 = scmp.le.s32.totalorder 2, %s9
    // Predicated region
    $region37: #{_lambda_.2} parent=5 // pred_check
      %p656 = pneg %p655
    $region38: #{_lambda_.2} parent=5 // pred_check_branch
      %658 = sbr.rel (%p656) target = $region40
    $region39: #{_lambda_.2} parent=5 // pred_region
      %s659 = ssub.s32 %s9, 2
      // Predicated region
      $region41: #{_lambda_.2} parent=39 // pred_check
        %p660 = pneg %p106
      $region42: #{_lambda_.2} parent=39 // pred_check_branch
        %662 = sbr.rel (%p660) target = $region44
      $region43: #{_lambda_.2} parent=39 // pred_region
        %s663 = smul.u32 49, %s15
        %p664 = scmp.lt.s32.totalorder %s663, 195
        %s665 = scalar_select %p664, %s663, 195
        %s666 = smul.addr %s665, 8
        %s667 = scalar_lea.vmem %s3, %s666
      $region44: #{_lambda_.2} parent=39 // pred_fallthru
        _
    $region40: #{_lambda_.2} parent=5 // pred_fallthru
      _
  $region6: #{_lambda_.2} parent=0 // loop_footer
    %s13 = sadd.s32 1, %s9
  $region7: #{_lambda_.2} parent=0 // loop_footer_branch
    %8 = sbr.rel target = $region3
  $region8: #{_lambda_.2} parent=0 // loop_exit
    _

// kernel: _lambda_.3
$region0: #{_lambda_.3}
  #allocation0 [shape = 'u32[]', space=smem, size = 0x4, offset = 0x4, fixed_abs, tag = 'smem constant byte address 0x4 - core index']
  #allocation1 [shape = 'u32[72,128]{1,0:T(1,128)}', space=vmem, size = 0x9000, scoped, tag = 'internal scratch']
  %s0 = inlined_call_operand.vmem [shape: f32[8,12544], index: 0, kind: input, shape index: {}]
  %s1 = inlined_call_operand.vmem [shape: f32[12544,30], index: 1, kind: input, shape index: {}]
  %s2 = inlined_call_operand.vmem [shape: f32[1,30], index: 2, kind: input, shape index: {}]
  %s3 = inlined_call_operand.vmem [shape: f32[30,128], index: 3, kind: input, shape index: {}]
  %s4 = inlined_call_operand.vmem [shape: f32[1,128], index: 4, kind: input, shape index: {}]
  %s5 = inlined_call_operand.vmem [shape: f32[128,128], index: 5, kind: input, shape index: {}]
  %s6 = inlined_call_operand.vmem [shape: f32[1,128], index: 6, kind: input, shape index: {}]
  %s7 = inlined_call_operand.vmem [shape: f32[8,128], index: 7, kind: output, shape index: {0}]
  %s8 = inlined_call_operand.vmem [shape: f32[8,30], index: 8, kind: output, shape index: {1}]
  %9 = xla_tuple %s7, %s8
  %s10 = sld [smem:[#allocation0]]
  $region46: #{_lambda_.3} parent=0
    _
  %s12 = ssub.s32 1, %s10
  %s13 = scalar_select 0, %s12, %s10
  // Predicated region
  $region2: #{_lambda_.3} parent=0 // pred_check
    _
  $region3: #{_lambda_.3} parent=0 // pred_check_branch
    %15 = sbr.rel (0) target = $region5
  $region4: #{_lambda_.3} parent=0 // pred_region
    _
  $region5: #{_lambda_.3} parent=0 // pred_fallthru
    _
  // Predicated region
  $region6: #{_lambda_.3} parent=0 // pred_check
    _
  $region7: #{_lambda_.3} parent=0 // pred_check_branch
    %17 = sbr.rel (0) target = $region9
  $region8: #{_lambda_.3} parent=0 // pred_region
    _
  $region9: #{_lambda_.3} parent=0 // pred_fallthru
    _
  // Predicated region
  $region10: #{_lambda_.3} parent=0 // pred_check
    _
  $region11: #{_lambda_.3} parent=0 // pred_check_branch
    %19 = sbr.rel (0) target = $region13
  $region12: #{_lambda_.3} parent=0 // pred_region
    _
  $region13: #{_lambda_.3} parent=0 // pred_fallthru
    _
  // Predicated region
  $region14: #{_lambda_.3} parent=0 // pred_check
    _
  $region15: #{_lambda_.3} parent=0 // pred_check_branch
    %21 = sbr.rel (0) target = $region17
  $region16: #{_lambda_.3} parent=0 // pred_region
    _
  $region17: #{_lambda_.3} parent=0 // pred_fallthru
    _
  // Predicated region
  $region18: #{_lambda_.3} parent=0 // pred_check
    _
  $region19: #{_lambda_.3} parent=0 // pred_check_branch
    %23 = sbr.rel (0) target = $region21
  $region20: #{_lambda_.3} parent=0 // pred_region
    _
  $region21: #{_lambda_.3} parent=0 // pred_fallthru
    _
  // Predicated region
  $region22: #{_lambda_.3} parent=0 // pred_check
    _
  $region23: #{_lambda_.3} parent=0 // pred_check_branch
    %25 = sbr.rel (0) target = $region25
  $region24: #{_lambda_.3} parent=0 // pred_region
    _
  $region25: #{_lambda_.3} parent=0 // pred_fallthru
    _
  // Predicated region
  $region26: #{_lambda_.3} parent=0 // pred_check
    _
  $region27: #{_lambda_.3} parent=0 // pred_check_branch
    %27 = sbr.rel (0) target = $region29
  $region28: #{_lambda_.3} parent=0 // pred_region
    _
  $region29: #{_lambda_.3} parent=0 // pred_fallthru
    _
  %v28 = vld [vmem:[%s0] sm:$0xff]
  %v29 = vld [vmem:[%s0 + $0x8] sm:$0xff]
  %v30 = vld [vmem:[%s0 + $0x10] sm:$0xff]
  %v31 = vld [vmem:[%s0 + $0x18] sm:$0xff]
  %v32 = vld [vmem:[%s0 + $0x20] sm:$0xff]
  %v33 = vld [vmem:[%s0 + $0x28] sm:$0xff]
  %v34 = vld [vmem:[%s0 + $0x30] sm:$0xff]
  %v35 = vld [vmem:[%s0 + $0x38] sm:$0xff]
  %v36 = vld [vmem:[%s0 + $0x40] sm:$0xff]
  %v37 = vld [vmem:[%s0 + $0x48] sm:$0xff]
  %v38 = vld [vmem:[%s0 + $0x50] sm:$0xff]
  %v39 = vld [vmem:[%s0 + $0x58] sm:$0xff]
  %v40 = vld [vmem:[%s0 + $0x60] sm:$0xff]
  %v41 = vld [vmem:[%s0 + $0x68] sm:$0xff]
  %v42 = vld [vmem:[%s0 + $0x70] sm:$0xff]
  %v43 = vld [vmem:[%s0 + $0x78] sm:$0xff]
  %v44 = vld [vmem:[%s0 + $0x80] sm:$0xff]
  %v45 = vld [vmem:[%s0 + $0x88] sm:$0xff]
  %v46 = vld [vmem:[%s0 + $0x90] sm:$0xff]
  %v47 = vld [vmem:[%s0 + $0x98] sm:$0xff]
  %v48 = vld [vmem:[%s0 + $0xa0] sm:$0xff]
  %v49 = vld [vmem:[%s0 + $0xa8] sm:$0xff]
  %v50 = vld [vmem:[%s0 + $0xb0] sm:$0xff]
  %v51 = vld [vmem:[%s0 + $0xb8] sm:$0xff]
  %v52 = vld [vmem:[%s0 + $0xc0] sm:$0xff]
  %v53 = vld [vmem:[%s0 + $0xc8] sm:$0xff]
  %v54 = vld [vmem:[%s0 + $0xd0] sm:$0xff]
  %v55 = vld [vmem:[%s0 + $0xd8] sm:$0xff]
  %v56 = vld [vmem:[%s0 + $0xe0] sm:$0xff]
  %v57 = vld [vmem:[%s0 + $0xe8] sm:$0xff]
  %v58 = vld [vmem:[%s0 + $0xf0] sm:$0xff]
  %v59 = vld [vmem:[%s0 + $0xf8] sm:$0xff]
  %v60 = vld [vmem:[%s0 + $0x100] sm:$0xff]
  %v61 = vld [vmem:[%s0 + $0x108] sm:$0xff]
  %v62 = vld [vmem:[%s0 + $0x110] sm:$0xff]
  %v63 = vld [vmem:[%s0 + $0x118] sm:$0xff]
  %v64 = vld [vmem:[%s0 + $0x120] sm:$0xff]
  %v65 = vld [vmem:[%s0 + $0x128] sm:$0xff]
  %v66 = vld [vmem:[%s0 + $0x130] sm:$0xff]
  %v67 = vld [vmem:[%s0 + $0x138] sm:$0xff]
  %v68 = vld [vmem:[%s0 + $0x140] sm:$0xff]
  %v69 = vld [vmem:[%s0 + $0x148] sm:$0xff]
  %v70 = vld [vmem:[%s0 + $0x150] sm:$0xff]
  %v71 = vld [vmem:[%s0 + $0x158] sm:$0xff]
  %v72 = vld [vmem:[%s0 + $0x160] sm:$0xff]
  %v73 = vld [vmem:[%s0 + $0x168] sm:$0xff]
  %v74 = vld [vmem:[%s0 + $0x170] sm:$0xff]
  %v75 = vld [vmem:[%s0 + $0x178] sm:$0xff]
  %v76 = vld [vmem:[%s0 + $0x180] sm:$0xff]
  %v77 = vld [vmem:[%s0 + $0x188] sm:$0xff]
  %v78 = vld [vmem:[%s0 + $0x190] sm:$0xff]
  %v79 = vld [vmem:[%s0 + $0x198] sm:$0xff]
  %v80 = vld [vmem:[%s0 + $0x1a0] sm:$0xff]
  %v81 = vld [vmem:[%s0 + $0x1a8] sm:$0xff]
  %v82 = vld [vmem:[%s0 + $0x1b0] sm:$0xff]
  %v83 = vld [vmem:[%s0 + $0x1b8] sm:$0xff]
  %v84 = vld [vmem:[%s0 + $0x1c0] sm:$0xff]
  %v85 = vld [vmem:[%s0 + $0x1c8] sm:$0xff]
  %v86 = vld [vmem:[%s0 + $0x1d0] sm:$0xff]
  %v87 = vld [vmem:[%s0 + $0x1d8] sm:$0xff]
  %v88 = vld [vmem:[%s0 + $0x1e0] sm:$0xff]
  %v89 = vld [vmem:[%s0 + $0x1e8] sm:$0xff]
  %v90 = vld [vmem:[%s0 + $0x1f0] sm:$0xff]
  %v91 = vld [vmem:[%s0 + $0x1f8] sm:$0xff]
  %v92 = vld [vmem:[%s0 + $0x200] sm:$0xff]
  %v93 = vld [vmem:[%s0 + $0x208] sm:$0xff]
  %v94 = vld [vmem:[%s0 + $0x210] sm:$0xff]
  %v95 = vld [vmem:[%s0 + $0x218] sm:$0xff]
  %v96 = vld [vmem:[%s0 + $0x220] sm:$0xff]
  %v97 = vld [vmem:[%s0 + $0x228] sm:$0xff]
  %v98 = vld [vmem:[%s0 + $0x230] sm:$0xff]
  %v99 = vld [vmem:[%s0 + $0x238] sm:$0xff]
  %v100 = vld [vmem:[%s0 + $0x240] sm:$0xff]
  %v101 = vld [vmem:[%s0 + $0x248] sm:$0xff]
  %v102 = vld [vmem:[%s0 + $0x250] sm:$0xff]
  %v103 = vld [vmem:[%s0 + $0x258] sm:$0xff]
  %v104 = vld [vmem:[%s0 + $0x260] sm:$0xff]
  %v105 = vld [vmem:[%s0 + $0x268] sm:$0xff]
  %v106 = vld [vmem:[%s0 + $0x270] sm:$0xff]
  %v107 = vld [vmem:[%s0 + $0x278] sm:$0xff]
  %v108 = vld [vmem:[%s0 + $0x280] sm:$0xff]
  %v109 = vld [vmem:[%s0 + $0x288] sm:$0xff]
  %v110 = vld [vmem:[%s0 + $0x290] sm:$0xff]
  %v111 = vld [vmem:[%s0 + $0x298] sm:$0xff]
  %v112 = vld [vmem:[%s0 + $0x2a0] sm:$0xff]
  %v113 = vld [vmem:[%s0 + $0x2a8] sm:$0xff]
  %v114 = vld [vmem:[%s0 + $0x2b0] sm:$0xff]
  %v115 = vld [vmem:[%s0 + $0x2b8] sm:$0xff]
  %v116 = vld [vmem:[%s0 + $0x2c0] sm:$0xff]
  %v117 = vld [vmem:[%s0 + $0x2c8] sm:$0xff]
  %v118 = vld [vmem:[%s0 + $0x2d0] sm:$0xff]
  %v119 = vld [vmem:[%s0 + $0x2d8] sm:$0xff]
  %v120 = vld [vmem:[%s0 + $0x2e0] sm:$0xff]
  %v121 = vld [vmem:[%s0 + $0x2e8] sm:$0xff]
  %v122 = vld [vmem:[%s0 + $0x2f0] sm:$0xff]
  %v123 = vld [vmem:[%s0 + $0x2f8] sm:$0xff]
  %v124 = vld [vmem:[%s0 + $0x300] sm:$0xff]
  %v125 = vld [vmem:[%s0 + $0x308] sm:$0xff]
  %v126 = vld [vmem:[%s1] sm:$0xff]
  %v127 = vld [vmem:[%s1 + $0x8] sm:$0xff]
  %v128 = vld [vmem:[%s1 + $0x10] sm:$0xff]
  %v129 = vld [vmem:[%s1 + $0x18] sm:$0xff]
  %v130 = vld [vmem:[%s1 + $0x20] sm:$0xff]
  %v131 = vld [vmem:[%s1 + $0x28] sm:$0xff]
  %v132 = vld [vmem:[%s1 + $0x30] sm:$0xff]
  %v133 = vld [vmem:[%s1 + $0x38] sm:$0xff]
  %v134 = vld [vmem:[%s1 + $0x40] sm:$0xff]
  %v135 = vld [vmem:[%s1 + $0x48] sm:$0xff]
  %v136 = vld [vmem:[%s1 + $0x50] sm:$0xff]
  %v137 = vld [vmem:[%s1 + $0x58] sm:$0xff]
  %v138 = vld [vmem:[%s1 + $0x60] sm:$0xff]
  %v139 = vld [vmem:[%s1 + $0x68] sm:$0xff]
  %v140 = vld [vmem:[%s1 + $0x70] sm:$0xff]
  %v141 = vld [vmem:[%s1 + $0x78] sm:$0xff]
  %v142 = vld [vmem:[%s1 + $0x80] sm:$0xff]
  %v143 = vld [vmem:[%s1 + $0x88] sm:$0xff]
  %v144 = vld [vmem:[%s1 + $0x90] sm:$0xff]
  %v145 = vld [vmem:[%s1 + $0x98] sm:$0xff]
  %v146 = vld [vmem:[%s1 + $0xa0] sm:$0xff]
  %v147 = vld [vmem:[%s1 + $0xa8] sm:$0xff]
  %v148 = vld [vmem:[%s1 + $0xb0] sm:$0xff]
  %v149 = vld [vmem:[%s1 + $0xb8] sm:$0xff]
  %v150 = vld [vmem:[%s1 + $0xc0] sm:$0xff]
  %v151 = vld [vmem:[%s1 + $0xc8] sm:$0xff]
  %v152 = vld [vmem:[%s1 + $0xd0] sm:$0xff]
  %v153 = vld [vmem:[%s1 + $0xd8] sm:$0xff]
  %v154 = vld [vmem:[%s1 + $0xe0] sm:$0xff]
  %v155 = vld [vmem:[%s1 + $0xe8] sm:$0xff]
  %v156 = vld [vmem:[%s1 + $0xf0] sm:$0xff]
  %v157 = vld [vmem:[%s1 + $0xf8] sm:$0xff]
  %v158 = vld [vmem:[%s1 + $0x100] sm:$0xff]
  %v159 = vld [vmem:[%s1 + $0x108] sm:$0xff]
  %v160 = vld [vmem:[%s1 + $0x110] sm:$0xff]
  %v161 = vld [vmem:[%s1 + $0x118] sm:$0xff]
  %v162 = vld [vmem:[%s1 + $0x120] sm:$0xff]
  %v163 = vld [vmem:[%s1 + $0x128] sm:$0xff]
  %v164 = vld [vmem:[%s1 + $0x130] sm:$0xff]
  %v165 = vld [vmem:[%s1 + $0x138] sm:$0xff]
  %v166 = vld [vmem:[%s1 + $0x140] sm:$0xff]
  %v167 = vld [vmem:[%s1 + $0x148] sm:$0xff]
  %v168 = vld [vmem:[%s1 + $0x150] sm:$0xff]
  %v169 = vld [vmem:[%s1 + $0x158] sm:$0xff]
  %v170 = vld [vmem:[%s1 + $0x160] sm:$0xff]
  %v171 = vld [vmem:[%s1 + $0x168] sm:$0xff]
  %v172 = vld [vmem:[%s1 + $0x170] sm:$0xff]
  %v173 = vld [vmem:[%s1 + $0x178] sm:$0xff]
  %v174 = vld [vmem:[%s1 + $0x180] sm:$0xff]
  %v175 = vld [vmem:[%s1 + $0x188] sm:$0xff]
  %v176 = vld [vmem:[%s1 + $0x190] sm:$0xff]
  %v177 = vld [vmem:[%s1 + $0x198] sm:$0xff]
  %v178 = vld [vmem:[%s1 + $0x1a0] sm:$0xff]
  %v179 = vld [vmem:[%s1 + $0x1a8] sm:$0xff]
  %v180 = vld [vmem:[%s1 + $0x1b0] sm:$0xff]
  %v181 = vld [vmem:[%s1 + $0x1b8] sm:$0xff]
  %v182 = vld [vmem:[%s1 + $0x1c0] sm:$0xff]
  %v183 = vld [vmem:[%s1 + $0x1c8] sm:$0xff]
  %v184 = vld [vmem:[%s1 + $0x1d0] sm:$0xff]
  %v185 = vld [vmem:[%s1 + $0x1d8] sm:$0xff]
  %v186 = vld [vmem:[%s1 + $0x1e0] sm:$0xff]
  %v187 = vld [vmem:[%s1 + $0x1e8] sm:$0xff]
  %v188 = vld [vmem:[%s1 + $0x1f0] sm:$0xff]
  %v189 = vld [vmem:[%s1 + $0x1f8] sm:$0xff]
  %v190 = vld [vmem:[%s1 + $0x200] sm:$0xff]
  %v191 = vld [vmem:[%s1 + $0x208] sm:$0xff]
  %v192 = vld [vmem:[%s1 + $0x210] sm:$0xff]
  %v193 = vld [vmem:[%s1 + $0x218] sm:$0xff]
  %v194 = vld [vmem:[%s1 + $0x220] sm:$0xff]
  %v195 = vld [vmem:[%s1 + $0x228] sm:$0xff]
  %v196 = vld [vmem:[%s1 + $0x230] sm:$0xff]
  %v197 = vld [vmem:[%s1 + $0x238] sm:$0xff]
  %v198 = vld [vmem:[%s1 + $0x240] sm:$0xff]
  %v199 = vld [vmem:[%s1 + $0x248] sm:$0xff]
  %v200 = vld [vmem:[%s1 + $0x250] sm:$0xff]
  %v201 = vld [vmem:[%s1 + $0x258] sm:$0xff]
  %v202 = vld [vmem:[%s1 + $0x260] sm:$0xff]
  %v203 = vld [vmem:[%s1 + $0x268] sm:$0xff]
  %v204 = vld [vmem:[%s1 + $0x270] sm:$0xff]
  %v205 = vld [vmem:[%s1 + $0x278] sm:$0xff]
  %v206 = vld [vmem:[%s1 + $0x280] sm:$0xff]
  %v207 = vld [vmem:[%s1 + $0x288] sm:$0xff]
  %v208 = vld [vmem:[%s1 + $0x290] sm:$0xff]
  %v209 = vld [vmem:[%s1 + $0x298] sm:$0xff]
  %v210 = vld [vmem:[%s1 + $0x2a0] sm:$0xff]
  %v211 = vld [vmem:[%s1 + $0x2a8] sm:$0xff]
  %v212 = vld [vmem:[%s1 + $0x2b0] sm:$0xff]
  %v213 = vld [vmem:[%s1 + $0x2b8] sm:$0xff]
  %v214 = vld [vmem:[%s1 + $0x2c0] sm:$0xff]
  %v215 = vld [vmem:[%s1 + $0x2c8] sm:$0xff]
  %v216 = vld [vmem:[%s1 + $0x2d0] sm:$0xff]
  %v217 = vld [vmem:[%s1 + $0x2d8] sm:$0xff]
  %v218 = vld [vmem:[%s1 + $0x2e0] sm:$0xff]
  %v219 = vld [vmem:[%s1 + $0x2e8] sm:$0xff]
  %v220 = vld [vmem:[%s1 + $0x2f0] sm:$0xff]
  %v221 = vld [vmem:[%s1 + $0x2f8] sm:$0xff]
  %v222 = vld [vmem:[%s1 + $0x300] sm:$0xff]
  %v223 = vld [vmem:[%s1 + $0x308] sm:$0xff]
  %v224 = vld [vmem:[%s1 + $0x310] sm:$0xff]
  %v225 = vld [vmem:[%s1 + $0x318] sm:$0xff]
  %v226 = vld [vmem:[%s1 + $0x320] sm:$0xff]
  %v227 = vld [vmem:[%s1 + $0x328] sm:$0xff]
  %v228 = vld [vmem:[%s1 + $0x330] sm:$0xff]
  %v229 = vld [vmem:[%s1 + $0x338] sm:$0xff]
  %v230 = vld [vmem:[%s1 + $0x340] sm:$0xff]
  %v231 = vld [vmem:[%s1 + $0x348] sm:$0xff]
  %v232 = vld [vmem:[%s1 + $0x350] sm:$0xff]
  %v233 = vld [vmem:[%s1 + $0x358] sm:$0xff]
  %v234 = vld [vmem:[%s1 + $0x360] sm:$0xff]
  %v235 = vld [vmem:[%s1 + $0x368] sm:$0xff]
  %v236 = vld [vmem:[%s1 + $0x370] sm:$0xff]
  %v237 = vld [vmem:[%s1 + $0x378] sm:$0xff]
  %v238 = vld [vmem:[%s1 + $0x380] sm:$0xff]
  %v239 = vld [vmem:[%s1 + $0x388] sm:$0xff]
  %v240 = vld [vmem:[%s1 + $0x390] sm:$0xff]
  %v241 = vld [vmem:[%s1 + $0x398] sm:$0xff]
  %v242 = vld [vmem:[%s1 + $0x3a0] sm:$0xff]
  %v243 = vld [vmem:[%s1 + $0x3a8] sm:$0xff]
  %v244 = vld [vmem:[%s1 + $0x3b0] sm:$0xff]
  %v245 = vld [vmem:[%s1 + $0x3b8] sm:$0xff]
  %v246 = vld [vmem:[%s1 + $0x3c0] sm:$0xff]
  %v247 = vld [vmem:[%s1 + $0x3c8] sm:$0xff]
  %v248 = vld [vmem:[%s1 + $0x3d0] sm:$0xff]
  %v249 = vld [vmem:[%s1 + $0x3d8] sm:$0xff]
  %v250 = vld [vmem:[%s1 + $0x3e0] sm:$0xff]
  %v251 = vld [vmem:[%s1 + $0x3e8] sm:$0xff]
  %v252 = vld [vmem:[%s1 + $0x3f0] sm:$0xff]
  %v253 = vld [vmem:[%s1 + $0x3f8] sm:$0xff]
  %v254 = vld [vmem:[%s1 + $0x400] sm:$0xff]
  %v255 = vld [vmem:[%s1 + $0x408] sm:$0xff]
  %v256 = vld [vmem:[%s1 + $0x410] sm:$0xff]
  %v257 = vld [vmem:[%s1 + $0x418] sm:$0xff]
  %v258 = vld [vmem:[%s1 + $0x420] sm:$0xff]
  %v259 = vld [vmem:[%s1 + $0x428] sm:$0xff]
  %v260 = vld [vmem:[%s1 + $0x430] sm:$0xff]
  %v261 = vld [vmem:[%s1 + $0x438] sm:$0xff]
  %v262 = vld [vmem:[%s1 + $0x440] sm:$0xff]
  %v263 = vld [vmem:[%s1 + $0x448] sm:$0xff]
  %v264 = vld [vmem:[%s1 + $0x450] sm:$0xff]
  %v265 = vld [vmem:[%s1 + $0x458] sm:$0xff]
  %v266 = vld [vmem:[%s1 + $0x460] sm:$0xff]
  %v267 = vld [vmem:[%s1 + $0x468] sm:$0xff]
  %v268 = vld [vmem:[%s1 + $0x470] sm:$0xff]
  %v269 = vld [vmem:[%s1 + $0x478] sm:$0xff]
  %v270 = vld [vmem:[%s1 + $0x480] sm:$0xff]
  %v271 = vld [vmem:[%s1 + $0x488] sm:$0xff]
  %v272 = vld [vmem:[%s1 + $0x490] sm:$0xff]
  %v273 = vld [vmem:[%s1 + $0x498] sm:$0xff]
  %v274 = vld [vmem:[%s1 + $0x4a0] sm:$0xff]
  %v275 = vld [vmem:[%s1 + $0x4a8] sm:$0xff]
  %v276 = vld [vmem:[%s1 + $0x4b0] sm:$0xff]
  %v277 = vld [vmem:[%s1 + $0x4b8] sm:$0xff]
  %v278 = vld [vmem:[%s1 + $0x4c0] sm:$0xff]
  %v279 = vld [vmem:[%s1 + $0x4c8] sm:$0xff]
  %v280 = vld [vmem:[%s1 + $0x4d0] sm:$0xff]
  %v281 = vld [vmem:[%s1 + $0x4d8] sm:$0xff]
  %v282 = vld [vmem:[%s1 + $0x4e0] sm:$0xff]
  %v283 = vld [vmem:[%s1 + $0x4e8] sm:$0xff]
  %v284 = vld [vmem:[%s1 + $0x4f0] sm:$0xff]
  %v285 = vld [vmem:[%s1 + $0x4f8] sm:$0xff]
  %v286 = vld [vmem:[%s1 + $0x500] sm:$0xff]
  %v287 = vld [vmem:[%s1 + $0x508] sm:$0xff]
  %v288 = vld [vmem:[%s1 + $0x510] sm:$0xff]
  %v289 = vld [vmem:[%s1 + $0x518] sm:$0xff]
  %v290 = vld [vmem:[%s1 + $0x520] sm:$0xff]
  %v291 = vld [vmem:[%s1 + $0x528] sm:$0xff]
  %v292 = vld [vmem:[%s1 + $0x530] sm:$0xff]
  %v293 = vld [vmem:[%s1 + $0x538] sm:$0xff]
  %v294 = vld [vmem:[%s1 + $0x540] sm:$0xff]
  %v295 = vld [vmem:[%s1 + $0x548] sm:$0xff]
  %v296 = vld [vmem:[%s1 + $0x550] sm:$0xff]
  %v297 = vld [vmem:[%s1 + $0x558] sm:$0xff]
  %v298 = vld [vmem:[%s1 + $0x560] sm:$0xff]
  %v299 = vld [vmem:[%s1 + $0x568] sm:$0xff]
  %v300 = vld [vmem:[%s1 + $0x570] sm:$0xff]
  %v301 = vld [vmem:[%s1 + $0x578] sm:$0xff]
  %v302 = vld [vmem:[%s1 + $0x580] sm:$0xff]
  %v303 = vld [vmem:[%s1 + $0x588] sm:$0xff]
  %v304 = vld [vmem:[%s1 + $0x590] sm:$0xff]
  %v305 = vld [vmem:[%s1 + $0x598] sm:$0xff]
  %v306 = vld [vmem:[%s1 + $0x5a0] sm:$0xff]
  %v307 = vld [vmem:[%s1 + $0x5a8] sm:$0xff]
  %v308 = vld [vmem:[%s1 + $0x5b0] sm:$0xff]
  %v309 = vld [vmem:[%s1 + $0x5b8] sm:$0xff]
  %v310 = vld [vmem:[%s1 + $0x5c0] sm:$0xff]
  %v311 = vld [vmem:[%s1 + $0x5c8] sm:$0xff]
  %v312 = vld [vmem:[%s1 + $0x5d0] sm:$0xff]
  %v313 = vld [vmem:[%s1 + $0x5d8] sm:$0xff]
  %v314 = vld [vmem:[%s1 + $0x5e0] sm:$0xff]
  %v315 = vld [vmem:[%s1 + $0x5e8] sm:$0xff]
  %v316 = vld [vmem:[%s1 + $0x5f0] sm:$0xff]
  %v317 = vld [vmem:[%s1 + $0x5f8] sm:$0xff]
  %v318 = vld [vmem:[%s1 + $0x600] sm:$0xff]
  %v319 = vld [vmem:[%s1 + $0x608] sm:$0xff]
  %v320 = vld [vmem:[%s1 + $0x610] sm:$0xff]
  %v321 = vld [vmem:[%s1 + $0x618] sm:$0xff]
  %v322 = vld [vmem:[%s1 + $0x620] sm:$0xff]
  %v323 = vld [vmem:[%s1 + $0x628] sm:$0xff]
  %v324 = vld [vmem:[%s1 + $0x630] sm:$0xff]
  %v325 = vld [vmem:[%s1 + $0x638] sm:$0xff]
  %v326 = vld [vmem:[%s1 + $0x640] sm:$0xff]
  %v327 = vld [vmem:[%s1 + $0x648] sm:$0xff]
  %v328 = vld [vmem:[%s1 + $0x650] sm:$0xff]
  %v329 = vld [vmem:[%s1 + $0x658] sm:$0xff]
  %v330 = vld [vmem:[%s1 + $0x660] sm:$0xff]
  %v331 = vld [vmem:[%s1 + $0x668] sm:$0xff]
  %v332 = vld [vmem:[%s1 + $0x670] sm:$0xff]
  %v333 = vld [vmem:[%s1 + $0x678] sm:$0xff]
  %v334 = vld [vmem:[%s1 + $0x680] sm:$0xff]
  %v335 = vld [vmem:[%s1 + $0x688] sm:$0xff]
  %v336 = vld [vmem:[%s1 + $0x690] sm:$0xff]
  %v337 = vld [vmem:[%s1 + $0x698] sm:$0xff]
  %v338 = vld [vmem:[%s1 + $0x6a0] sm:$0xff]
  %v339 = vld [vmem:[%s1 + $0x6a8] sm:$0xff]
  %v340 = vld [vmem:[%s1 + $0x6b0] sm:$0xff]
  %v341 = vld [vmem:[%s1 + $0x6b8] sm:$0xff]
  %v342 = vld [vmem:[%s1 + $0x6c0] sm:$0xff]
  %v343 = vld [vmem:[%s1 + $0x6c8] sm:$0xff]
  %v344 = vld [vmem:[%s1 + $0x6d0] sm:$0xff]
  %v345 = vld [vmem:[%s1 + $0x6d8] sm:$0xff]
  %v346 = vld [vmem:[%s1 + $0x6e0] sm:$0xff]
  %v347 = vld [vmem:[%s1 + $0x6e8] sm:$0xff]
  %v348 = vld [vmem:[%s1 + $0x6f0] sm:$0xff]
  %v349 = vld [vmem:[%s1 + $0x6f8] sm:$0xff]
  %v350 = vld [vmem:[%s1 + $0x700] sm:$0xff]
  %v351 = vld [vmem:[%s1 + $0x708] sm:$0xff]
  %v352 = vld [vmem:[%s1 + $0x710] sm:$0xff]
  %v353 = vld [vmem:[%s1 + $0x718] sm:$0xff]
  %v354 = vld [vmem:[%s1 + $0x720] sm:$0xff]
  %v355 = vld [vmem:[%s1 + $0x728] sm:$0xff]
  %v356 = vld [vmem:[%s1 + $0x730] sm:$0xff]
  %v357 = vld [vmem:[%s1 + $0x738] sm:$0xff]
  %v358 = vld [vmem:[%s1 + $0x740] sm:$0xff]
  %v359 = vld [vmem:[%s1 + $0x748] sm:$0xff]
  %v360 = vld [vmem:[%s1 + $0x750] sm:$0xff]
  %v361 = vld [vmem:[%s1 + $0x758] sm:$0xff]
  %v362 = vld [vmem:[%s1 + $0x760] sm:$0xff]
  %v363 = vld [vmem:[%s1 + $0x768] sm:$0xff]
  %v364 = vld [vmem:[%s1 + $0x770] sm:$0xff]
  %v365 = vld [vmem:[%s1 + $0x778] sm:$0xff]
  %v366 = vld [vmem:[%s1 + $0x780] sm:$0xff]
  %v367 = vld [vmem:[%s1 + $0x788] sm:$0xff]
  %v368 = vld [vmem:[%s1 + $0x790] sm:$0xff]
  %v369 = vld [vmem:[%s1 + $0x798] sm:$0xff]
  %v370 = vld [vmem:[%s1 + $0x7a0] sm:$0xff]
  %v371 = vld [vmem:[%s1 + $0x7a8] sm:$0xff]
  %v372 = vld [vmem:[%s1 + $0x7b0] sm:$0xff]
  %v373 = vld [vmem:[%s1 + $0x7b8] sm:$0xff]
  %v374 = vld [vmem:[%s1 + $0x7c0] sm:$0xff]
  %v375 = vld [vmem:[%s1 + $0x7c8] sm:$0xff]
  %v376 = vld [vmem:[%s1 + $0x7d0] sm:$0xff]
  %v377 = vld [vmem:[%s1 + $0x7d8] sm:$0xff]
  %v378 = vld [vmem:[%s1 + $0x7e0] sm:$0xff]
  %v379 = vld [vmem:[%s1 + $0x7e8] sm:$0xff]
  %v380 = vld [vmem:[%s1 + $0x7f0] sm:$0xff]
  %v381 = vld [vmem:[%s1 + $0x7f8] sm:$0xff]
  %v382 = vld [vmem:[%s1 + $0x800] sm:$0xff]
  %v383 = vld [vmem:[%s1 + $0x808] sm:$0xff]
  %v384 = vld [vmem:[%s1 + $0x810] sm:$0xff]
  %v385 = vld [vmem:[%s1 + $0x818] sm:$0xff]
  %v386 = vld [vmem:[%s1 + $0x820] sm:$0xff]
  %v387 = vld [vmem:[%s1 + $0x828] sm:$0xff]
  %v388 = vld [vmem:[%s1 + $0x830] sm:$0xff]
  %v389 = vld [vmem:[%s1 + $0x838] sm:$0xff]
  %v390 = vld [vmem:[%s1 + $0x840] sm:$0xff]
  %v391 = vld [vmem:[%s1 + $0x848] sm:$0xff]
  %v392 = vld [vmem:[%s1 + $0x850] sm:$0xff]
  %v393 = vld [vmem:[%s1 + $0x858] sm:$0xff]
  %v394 = vld [vmem:[%s1 + $0x860] sm:$0xff]
  %v395 = vld [vmem:[%s1 + $0x868] sm:$0xff]
  %v396 = vld [vmem:[%s1 + $0x870] sm:$0xff]
  %v397 = vld [vmem:[%s1 + $0x878] sm:$0xff]
  %v398 = vld [vmem:[%s1 + $0x880] sm:$0xff]
  %v399 = vld [vmem:[%s1 + $0x888] sm:$0xff]
  %v400 = vld [vmem:[%s1 + $0x890] sm:$0xff]
  %v401 = vld [vmem:[%s1 + $0x898] sm:$0xff]
  %v402 = vld [vmem:[%s1 + $0x8a0] sm:$0xff]
  %v403 = vld [vmem:[%s1 + $0x8a8] sm:$0xff]
  %v404 = vld [vmem:[%s1 + $0x8b0] sm:$0xff]
  %v405 = vld [vmem:[%s1 + $0x8b8] sm:$0xff]
  %v406 = vld [vmem:[%s1 + $0x8c0] sm:$0xff]
  %v407 = vld [vmem:[%s1 + $0x8c8] sm:$0xff]
  %v408 = vld [vmem:[%s1 + $0x8d0] sm:$0xff]
  %v409 = vld [vmem:[%s1 + $0x8d8] sm:$0xff]
  %v410 = vld [vmem:[%s1 + $0x8e0] sm:$0xff]
  %v411 = vld [vmem:[%s1 + $0x8e8] sm:$0xff]
  %v412 = vld [vmem:[%s1 + $0x8f0] sm:$0xff]
  %v413 = vld [vmem:[%s1 + $0x8f8] sm:$0xff]
  %v414 = vld [vmem:[%s1 + $0x900] sm:$0xff]
  %v415 = vld [vmem:[%s1 + $0x908] sm:$0xff]
  %v416 = vld [vmem:[%s1 + $0x910] sm:$0xff]
  %v417 = vld [vmem:[%s1 + $0x918] sm:$0xff]
  %v418 = vld [vmem:[%s1 + $0x920] sm:$0xff]
  %v419 = vld [vmem:[%s1 + $0x928] sm:$0xff]
  %v420 = vld [vmem:[%s1 + $0x930] sm:$0xff]
  %v421 = vld [vmem:[%s1 + $0x938] sm:$0xff]
  %v422 = vld [vmem:[%s1 + $0x940] sm:$0xff]
  %v423 = vld [vmem:[%s1 + $0x948] sm:$0xff]
  %v424 = vld [vmem:[%s1 + $0x950] sm:$0xff]
  %v425 = vld [vmem:[%s1 + $0x958] sm:$0xff]
  %v426 = vld [vmem:[%s1 + $0x960] sm:$0xff]
  %v427 = vld [vmem:[%s1 + $0x968] sm:$0xff]
  %v428 = vld [vmem:[%s1 + $0x970] sm:$0xff]
  %v429 = vld [vmem:[%s1 + $0x978] sm:$0xff]
  %v430 = vld [vmem:[%s1 + $0x980] sm:$0xff]
  %v431 = vld [vmem:[%s1 + $0x988] sm:$0xff]
  %v432 = vld [vmem:[%s1 + $0x990] sm:$0xff]
  %v433 = vld [vmem:[%s1 + $0x998] sm:$0xff]
  %v434 = vld [vmem:[%s1 + $0x9a0] sm:$0xff]
  %v435 = vld [vmem:[%s1 + $0x9a8] sm:$0xff]
  %v436 = vld [vmem:[%s1 + $0x9b0] sm:$0xff]
  %v437 = vld [vmem:[%s1 + $0x9b8] sm:$0xff]
  %v438 = vld [vmem:[%s1 + $0x9c0] sm:$0xff]
  %v439 = vld [vmem:[%s1 + $0x9c8] sm:$0xff]
  %v440 = vld [vmem:[%s1 + $0x9d0] sm:$0xff]
  %v441 = vld [vmem:[%s1 + $0x9d8] sm:$0xff]
  %v442 = vld [vmem:[%s1 + $0x9e0] sm:$0xff]
  %v443 = vld [vmem:[%s1 + $0x9e8] sm:$0xff]
  %v444 = vld [vmem:[%s1 + $0x9f0] sm:$0xff]
  %v445 = vld [vmem:[%s1 + $0x9f8] sm:$0xff]
  %v446 = vld [vmem:[%s1 + $0xa00] sm:$0xff]
  %v447 = vld [vmem:[%s1 + $0xa08] sm:$0xff]
  %v448 = vld [vmem:[%s1 + $0xa10] sm:$0xff]
  %v449 = vld [vmem:[%s1 + $0xa18] sm:$0xff]
  %v450 = vld [vmem:[%s1 + $0xa20] sm:$0xff]
  %v451 = vld [vmem:[%s1 + $0xa28] sm:$0xff]
  %v452 = vld [vmem:[%s1 + $0xa30] sm:$0xff]
  %v453 = vld [vmem:[%s1 + $0xa38] sm:$0xff]
  %v454 = vld [vmem:[%s1 + $0xa40] sm:$0xff]
  %v455 = vld [vmem:[%s1 + $0xa48] sm:$0xff]
  %v456 = vld [vmem:[%s1 + $0xa50] sm:$0xff]
  %v457 = vld [vmem:[%s1 + $0xa58] sm:$0xff]
  %v458 = vld [vmem:[%s1 + $0xa60] sm:$0xff]
  %v459 = vld [vmem:[%s1 + $0xa68] sm:$0xff]
  %v460 = vld [vmem:[%s1 + $0xa70] sm:$0xff]
  %v461 = vld [vmem:[%s1 + $0xa78] sm:$0xff]
  %v462 = vld [vmem:[%s1 + $0xa80] sm:$0xff]
  %v463 = vld [vmem:[%s1 + $0xa88] sm:$0xff]
  %v464 = vld [vmem:[%s1 + $0xa90] sm:$0xff]
  %v465 = vld [vmem:[%s1 + $0xa98] sm:$0xff]
  %v466 = vld [vmem:[%s1 + $0xaa0] sm:$0xff]
  %v467 = vld [vmem:[%s1 + $0xaa8] sm:$0xff]
  %v468 = vld [vmem:[%s1 + $0xab0] sm:$0xff]
  %v469 = vld [vmem:[%s1 + $0xab8] sm:$0xff]
  %v470 = vld [vmem:[%s1 + $0xac0] sm:$0xff]
  %v471 = vld [vmem:[%s1 + $0xac8] sm:$0xff]
  %v472 = vld [vmem:[%s1 + $0xad0] sm:$0xff]
  %v473 = vld [vmem:[%s1 + $0xad8] sm:$0xff]
  %v474 = vld [vmem:[%s1 + $0xae0] sm:$0xff]
  %v475 = vld [vmem:[%s1 + $0xae8] sm:$0xff]
  %v476 = vld [vmem:[%s1 + $0xaf0] sm:$0xff]
  %v477 = vld [vmem:[%s1 + $0xaf8] sm:$0xff]
  %v478 = vld [vmem:[%s1 + $0xb00] sm:$0xff]
  %v479 = vld [vmem:[%s1 + $0xb08] sm:$0xff]
  %v480 = vld [vmem:[%s1 + $0xb10] sm:$0xff]
  %v481 = vld [vmem:[%s1 + $0xb18] sm:$0xff]
  %v482 = vld [vmem:[%s1 + $0xb20] sm:$0xff]
  %v483 = vld [vmem:[%s1 + $0xb28] sm:$0xff]
  %v484 = vld [vmem:[%s1 + $0xb30] sm:$0xff]
  %v485 = vld [vmem:[%s1 + $0xb38] sm:$0xff]
  %v486 = vld [vmem:[%s1 + $0xb40] sm:$0xff]
  %v487 = vld [vmem:[%s1 + $0xb48] sm:$0xff]
  %v488 = vld [vmem:[%s1 + $0xb50] sm:$0xff]
  %v489 = vld [vmem:[%s1 + $0xb58] sm:$0xff]
  %v490 = vld [vmem:[%s1 + $0xb60] sm:$0xff]
  %v491 = vld [vmem:[%s1 + $0xb68] sm:$0xff]
  %v492 = vld [vmem:[%s1 + $0xb70] sm:$0xff]
  %v493 = vld [vmem:[%s1 + $0xb78] sm:$0xff]
  %v494 = vld [vmem:[%s1 + $0xb80] sm:$0xff]
  %v495 = vld [vmem:[%s1 + $0xb88] sm:$0xff]
  %v496 = vld [vmem:[%s1 + $0xb90] sm:$0xff]
  %v497 = vld [vmem:[%s1 + $0xb98] sm:$0xff]
  %v498 = vld [vmem:[%s1 + $0xba0] sm:$0xff]
  %v499 = vld [vmem:[%s1 + $0xba8] sm:$0xff]
  %v500 = vld [vmem:[%s1 + $0xbb0] sm:$0xff]
  %v501 = vld [vmem:[%s1 + $0xbb8] sm:$0xff]
  %v502 = vld [vmem:[%s1 + $0xbc0] sm:$0xff]
  %v503 = vld [vmem:[%s1 + $0xbc8] sm:$0xff]
  %v504 = vld [vmem:[%s1 + $0xbd0] sm:$0xff]
  %v505 = vld [vmem:[%s1 + $0xbd8] sm:$0xff]
  %v506 = vld [vmem:[%s1 + $0xbe0] sm:$0xff]
  %v507 = vld [vmem:[%s1 + $0xbe8] sm:$0xff]
  %v508 = vld [vmem:[%s1 + $0xbf0] sm:$0xff]
  %v509 = vld [vmem:[%s1 + $0xbf8] sm:$0xff]
  %v510 = vld [vmem:[%s1 + $0xc00] sm:$0xff]
  %v511 = vld [vmem:[%s1 + $0xc08] sm:$0xff]
  %v512 = vld [vmem:[%s1 + $0xc10] sm:$0xff]
  %v513 = vld [vmem:[%s1 + $0xc18] sm:$0xff]
  %v514 = vld [vmem:[%s1 + $0xc20] sm:$0xff]
  %v515 = vld [vmem:[%s1 + $0xc28] sm:$0xff]
  %v516 = vld [vmem:[%s1 + $0xc30] sm:$0xff]
  %v517 = vld [vmem:[%s1 + $0xc38] sm:$0xff]
  %v518 = vld [vmem:[%s1 + $0xc40] sm:$0xff]
  %v519 = vld [vmem:[%s1 + $0xc48] sm:$0xff]
  %v520 = vld [vmem:[%s1 + $0xc50] sm:$0xff]
  %v521 = vld [vmem:[%s1 + $0xc58] sm:$0xff]
  %v522 = vld [vmem:[%s1 + $0xc60] sm:$0xff]
  %v523 = vld [vmem:[%s1 + $0xc68] sm:$0xff]
  %v524 = vld [vmem:[%s1 + $0xc70] sm:$0xff]
  %v525 = vld [vmem:[%s1 + $0xc78] sm:$0xff]
  %v526 = vld [vmem:[%s1 + $0xc80] sm:$0xff]
  %v527 = vld [vmem:[%s1 + $0xc88] sm:$0xff]
  %v528 = vld [vmem:[%s1 + $0xc90] sm:$0xff]
  %v529 = vld [vmem:[%s1 + $0xc98] sm:$0xff]
  %v530 = vld [vmem:[%s1 + $0xca0] sm:$0xff]
  %v531 = vld [vmem:[%s1 + $0xca8] sm:$0xff]
  %v532 = vld [vmem:[%s1 + $0xcb0] sm:$0xff]
  %v533 = vld [vmem:[%s1 + $0xcb8] sm:$0xff]
  %v534 = vld [vmem:[%s1 + $0xcc0] sm:$0xff]
  %v535 = vld [vmem:[%s1 + $0xcc8] sm:$0xff]
  %v536 = vld [vmem:[%s1 + $0xcd0] sm:$0xff]
  %v537 = vld [vmem:[%s1 + $0xcd8] sm:$0xff]
  %v538 = vld [vmem:[%s1 + $0xce0] sm:$0xff]
  %v539 = vld [vmem:[%s1 + $0xce8] sm:$0xff]
  %v540 = vld [vmem:[%s1 + $0xcf0] sm:$0xff]
  %v541 = vld [vmem:[%s1 + $0xcf8] sm:$0xff]
  %v542 = vld [vmem:[%s1 + $0xd00] sm:$0xff]
  %v543 = vld [vmem:[%s1 + $0xd08] sm:$0xff]
  %v544 = vld [vmem:[%s1 + $0xd10] sm:$0xff]
  %v545 = vld [vmem:[%s1 + $0xd18] sm:$0xff]
  %v546 = vld [vmem:[%s1 + $0xd20] sm:$0xff]
  %v547 = vld [vmem:[%s1 + $0xd28] sm:$0xff]
  %v548 = vld [vmem:[%s1 + $0xd30] sm:$0xff]
  %v549 = vld [vmem:[%s1 + $0xd38] sm:$0xff]
  %v550 = vld [vmem:[%s1 + $0xd40] sm:$0xff]
  %v551 = vld [vmem:[%s1 + $0xd48] sm:$0xff]
  %v552 = vld [vmem:[%s1 + $0xd50] sm:$0xff]
  %v553 = vld [vmem:[%s1 + $0xd58] sm:$0xff]
  %v554 = vld [vmem:[%s1 + $0xd60] sm:$0xff]
  %v555 = vld [vmem:[%s1 + $0xd68] sm:$0xff]
  %v556 = vld [vmem:[%s1 + $0xd70] sm:$0xff]
  %v557 = vld [vmem:[%s1 + $0xd78] sm:$0xff]
  %v558 = vld [vmem:[%s1 + $0xd80] sm:$0xff]
  %v559 = vld [vmem:[%s1 + $0xd88] sm:$0xff]
  %v560 = vld [vmem:[%s1 + $0xd90] sm:$0xff]
  %v561 = vld [vmem:[%s1 + $0xd98] sm:$0xff]
  %v562 = vld [vmem:[%s1 + $0xda0] sm:$0xff]
  %v563 = vld [vmem:[%s1 + $0xda8] sm:$0xff]
  %v564 = vld [vmem:[%s1 + $0xdb0] sm:$0xff]
  %v565 = vld [vmem:[%s1 + $0xdb8] sm:$0xff]
  %v566 = vld [vmem:[%s1 + $0xdc0] sm:$0xff]
  %v567 = vld [vmem:[%s1 + $0xdc8] sm:$0xff]
  %v568 = vld [vmem:[%s1 + $0xdd0] sm:$0xff]
  %v569 = vld [vmem:[%s1 + $0xdd8] sm:$0xff]
  %v570 = vld [vmem:[%s1 + $0xde0] sm:$0xff]
  %v571 = vld [vmem:[%s1 + $0xde8] sm:$0xff]
  %v572 = vld [vmem:[%s1 + $0xdf0] sm:$0xff]
  %v573 = vld [vmem:[%s1 + $0xdf8] sm:$0xff]
  %v574 = vld [vmem:[%s1 + $0xe00] sm:$0xff]
  %v575 = vld [vmem:[%s1 + $0xe08] sm:$0xff]
  %v576 = vld [vmem:[%s1 + $0xe10] sm:$0xff]
  %v577 = vld [vmem:[%s1 + $0xe18] sm:$0xff]
  %v578 = vld [vmem:[%s1 + $0xe20] sm:$0xff]
  %v579 = vld [vmem:[%s1 + $0xe28] sm:$0xff]
  %v580 = vld [vmem:[%s1 + $0xe30] sm:$0xff]
  %v581 = vld [vmem:[%s1 + $0xe38] sm:$0xff]
  %v582 = vld [vmem:[%s1 + $0xe40] sm:$0xff]
  %v583 = vld [vmem:[%s1 + $0xe48] sm:$0xff]
  %v584 = vld [vmem:[%s1 + $0xe50] sm:$0xff]
  %v585 = vld [vmem:[%s1 + $0xe58] sm:$0xff]
  %v586 = vld [vmem:[%s1 + $0xe60] sm:$0xff]
  %v587 = vld [vmem:[%s1 + $0xe68] sm:$0xff]
  %v588 = vld [vmem:[%s1 + $0xe70] sm:$0xff]
  %v589 = vld [vmem:[%s1 + $0xe78] sm:$0xff]
  %v590 = vld [vmem:[%s1 + $0xe80] sm:$0xff]
  %v591 = vld [vmem:[%s1 + $0xe88] sm:$0xff]
  %v592 = vld [vmem:[%s1 + $0xe90] sm:$0xff]
  %v593 = vld [vmem:[%s1 + $0xe98] sm:$0xff]
  %v594 = vld [vmem:[%s1 + $0xea0] sm:$0xff]
  %v595 = vld [vmem:[%s1 + $0xea8] sm:$0xff]
  %v596 = vld [vmem:[%s1 + $0xeb0] sm:$0xff]
  %v597 = vld [vmem:[%s1 + $0xeb8] sm:$0xff]
  %v598 = vld [vmem:[%s1 + $0xec0] sm:$0xff]
  %v599 = vld [vmem:[%s1 + $0xec8] sm:$0xff]
  %v600 = vld [vmem:[%s1 + $0xed0] sm:$0xff]
  %v601 = vld [vmem:[%s1 + $0xed8] sm:$0xff]
  %v602 = vld [vmem:[%s1 + $0xee0] sm:$0xff]
  %v603 = vld [vmem:[%s1 + $0xee8] sm:$0xff]
  %v604 = vld [vmem:[%s1 + $0xef0] sm:$0xff]
  %v605 = vld [vmem:[%s1 + $0xef8] sm:$0xff]
  %v606 = vld [vmem:[%s1 + $0xf00] sm:$0xff]
  %v607 = vld [vmem:[%s1 + $0xf08] sm:$0xff]
  %v608 = vld [vmem:[%s1 + $0xf10] sm:$0xff]
  %v609 = vld [vmem:[%s1 + $0xf18] sm:$0xff]
  %v610 = vld [vmem:[%s1 + $0xf20] sm:$0xff]
  %v611 = vld [vmem:[%s1 + $0xf28] sm:$0xff]
  %v612 = vld [vmem:[%s1 + $0xf30] sm:$0xff]
  %v613 = vld [vmem:[%s1 + $0xf38] sm:$0xff]
  %v614 = vld [vmem:[%s1 + $0xf40] sm:$0xff]
  %v615 = vld [vmem:[%s1 + $0xf48] sm:$0xff]
  %v616 = vld [vmem:[%s1 + $0xf50] sm:$0xff]
  %v617 = vld [vmem:[%s1 + $0xf58] sm:$0xff]
  %v618 = vld [vmem:[%s1 + $0xf60] sm:$0xff]
  %v619 = vld [vmem:[%s1 + $0xf68] sm:$0xff]
  %v620 = vld [vmem:[%s1 + $0xf70] sm:$0xff]
  %v621 = vld [vmem:[%s1 + $0xf78] sm:$0xff]
  %v622 = vld [vmem:[%s1 + $0xf80] sm:$0xff]
  %v623 = vld [vmem:[%s1 + $0xf88] sm:$0xff]
  %v624 = vld [vmem:[%s1 + $0xf90] sm:$0xff]
  %v625 = vld [vmem:[%s1 + $0xf98] sm:$0xff]
  %v626 = vld [vmem:[%s1 + $0xfa0] sm:$0xff]
  %v627 = vld [vmem:[%s1 + $0xfa8] sm:$0xff]
  %v628 = vld [vmem:[%s1 + $0xfb0] sm:$0xff]
  %v629 = vld [vmem:[%s1 + $0xfb8] sm:$0xff]
  %v630 = vld [vmem:[%s1 + $0xfc0] sm:$0xff]
  %v631 = vld [vmem:[%s1 + $0xfc8] sm:$0xff]
  %v632 = vld [vmem:[%s1 + $0xfd0] sm:$0xff]
  %v633 = vld [vmem:[%s1 + $0xfd8] sm:$0xff]
  %v634 = vld [vmem:[%s1 + $0xfe0] sm:$0xff]
  %v635 = vld [vmem:[%s1 + $0xfe8] sm:$0xff]
  %v636 = vld [vmem:[%s1 + $0xff0] sm:$0xff]
  %v637 = vld [vmem:[%s1 + $0xff8] sm:$0xff]
  %v638 = vld [vmem:[%s1 + $0x1000] sm:$0xff]
  %v639 = vld [vmem:[%s1 + $0x1008] sm:$0xff]
  %v640 = vld [vmem:[%s1 + $0x1010] sm:$0xff]
  %v641 = vld [vmem:[%s1 + $0x1018] sm:$0xff]
  %v642 = vld [vmem:[%s1 + $0x1020] sm:$0xff]
  %v643 = vld [vmem:[%s1 + $0x1028] sm:$0xff]
  %v644 = vld [vmem:[%s1 + $0x1030] sm:$0xff]
  %v645 = vld [vmem:[%s1 + $0x1038] sm:$0xff]
  %v646 = vld [vmem:[%s1 + $0x1040] sm:$0xff]
  %v647 = vld [vmem:[%s1 + $0x1048] sm:$0xff]
  %v648 = vld [vmem:[%s1 + $0x1050] sm:$0xff]
  %v649 = vld [vmem:[%s1 + $0x1058] sm:$0xff]
  %v650 = vld [vmem:[%s1 + $0x1060] sm:$0xff]
  %v651 = vld [vmem:[%s1 + $0x1068] sm:$0xff]
  %v652 = vld [vmem:[%s1 + $0x1070] sm:$0xff]
  %v653 = vld [vmem:[%s1 + $0x1078] sm:$0xff]
  %v654 = vld [vmem:[%s1 + $0x1080] sm:$0xff]
  %v655 = vld [vmem:[%s1 + $0x1088] sm:$0xff]
  %v656 = vld [vmem:[%s1 + $0x1090] sm:$0xff]
  %v657 = vld [vmem:[%s1 + $0x1098] sm:$0xff]
  %v658 = vld [vmem:[%s1 + $0x10a0] sm:$0xff]
  %v659 = vld [vmem:[%s1 + $0x10a8] sm:$0xff]
  %v660 = vld [vmem:[%s1 + $0x10b0] sm:$0xff]
  %v661 = vld [vmem:[%s1 + $0x10b8] sm:$0xff]
  %v662 = vld [vmem:[%s1 + $0x10c0] sm:$0xff]
  %v663 = vld [vmem:[%s1 + $0x10c8] sm:$0xff]
  %v664 = vld [vmem:[%s1 + $0x10d0] sm:$0xff]
  %v665 = vld [vmem:[%s1 + $0x10d8] sm:$0xff]
  %v666 = vld [vmem:[%s1 + $0x10e0] sm:$0xff]
  %v667 = vld [vmem:[%s1 + $0x10e8] sm:$0xff]
  %v668 = vld [vmem:[%s1 + $0x10f0] sm:$0xff]
  %v669 = vld [vmem:[%s1 + $0x10f8] sm:$0xff]
  %v670 = vld [vmem:[%s1 + $0x1100] sm:$0xff]
  %v671 = vld [vmem:[%s1 + $0x1108] sm:$0xff]
  %v672 = vld [vmem:[%s1 + $0x1110] sm:$0xff]
  %v673 = vld [vmem:[%s1 + $0x1118] sm:$0xff]
  %v674 = vld [vmem:[%s1 + $0x1120] sm:$0xff]
  %v675 = vld [vmem:[%s1 + $0x1128] sm:$0xff]
  %v676 = vld [vmem:[%s1 + $0x1130] sm:$0xff]
  %v677 = vld [vmem:[%s1 + $0x1138] sm:$0xff]
  %v678 = vld [vmem:[%s1 + $0x1140] sm:$0xff]
  %v679 = vld [vmem:[%s1 + $0x1148] sm:$0xff]
  %v680 = vld [vmem:[%s1 + $0x1150] sm:$0xff]
  %v681 = vld [vmem:[%s1 + $0x1158] sm:$0xff]
  %v682 = vld [vmem:[%s1 + $0x1160] sm:$0xff]
  %v683 = vld [vmem:[%s1 + $0x1168] sm:$0xff]
  %v684 = vld [vmem:[%s1 + $0x1170] sm:$0xff]
  %v685 = vld [vmem:[%s1 + $0x1178] sm:$0xff]
  %v686 = vld [vmem:[%s1 + $0x1180] sm:$0xff]
  %v687 = vld [vmem:[%s1 + $0x1188] sm:$0xff]
  %v688 = vld [vmem:[%s1 + $0x1190] sm:$0xff]
  %v689 = vld [vmem:[%s1 + $0x1198] sm:$0xff]
  %v690 = vld [vmem:[%s1 + $0x11a0] sm:$0xff]
  %v691 = vld [vmem:[%s1 + $0x11a8] sm:$0xff]
  %v692 = vld [vmem:[%s1 + $0x11b0] sm:$0xff]
  %v693 = vld [vmem:[%s1 + $0x11b8] sm:$0xff]
  %v694 = vld [vmem:[%s1 + $0x11c0] sm:$0xff]
  %v695 = vld [vmem:[%s1 + $0x11c8] sm:$0xff]
  %v696 = vld [vmem:[%s1 + $0x11d0] sm:$0xff]
  %v697 = vld [vmem:[%s1 + $0x11d8] sm:$0xff]
  %v698 = vld [vmem:[%s1 + $0x11e0] sm:$0xff]
  %v699 = vld [vmem:[%s1 + $0x11e8] sm:$0xff]
  %v700 = vld [vmem:[%s1 + $0x11f0] sm:$0xff]
  %v701 = vld [vmem:[%s1 + $0x11f8] sm:$0xff]
  %v702 = vld [vmem:[%s1 + $0x1200] sm:$0xff]
  %v703 = vld [vmem:[%s1 + $0x1208] sm:$0xff]
  %v704 = vld [vmem:[%s1 + $0x1210] sm:$0xff]
  %v705 = vld [vmem:[%s1 + $0x1218] sm:$0xff]
  %v706 = vld [vmem:[%s1 + $0x1220] sm:$0xff]
  %v707 = vld [vmem:[%s1 + $0x1228] sm:$0xff]
  %v708 = vld [vmem:[%s1 + $0x1230] sm:$0xff]
  %v709 = vld [vmem:[%s1 + $0x1238] sm:$0xff]
  %v710 = vld [vmem:[%s1 + $0x1240] sm:$0xff]
  %v711 = vld [vmem:[%s1 + $0x1248] sm:$0xff]
  %v712 = vld [vmem:[%s1 + $0x1250] sm:$0xff]
  %v713 = vld [vmem:[%s1 + $0x1258] sm:$0xff]
  %v714 = vld [vmem:[%s1 + $0x1260] sm:$0xff]
  %v715 = vld [vmem:[%s1 + $0x1268] sm:$0xff]
  %v716 = vld [vmem:[%s1 + $0x1270] sm:$0xff]
  %v717 = vld [vmem:[%s1 + $0x1278] sm:$0xff]
  %v718 = vld [vmem:[%s1 + $0x1280] sm:$0xff]
  %v719 = vld [vmem:[%s1 + $0x1288] sm:$0xff]
  %v720 = vld [vmem:[%s1 + $0x1290] sm:$0xff]
  %v721 = vld [vmem:[%s1 + $0x1298] sm:$0xff]
  %v722 = vld [vmem:[%s1 + $0x12a0] sm:$0xff]
  %v723 = vld [vmem:[%s1 + $0x12a8] sm:$0xff]
  %v724 = vld [vmem:[%s1 + $0x12b0] sm:$0xff]
  %v725 = vld [vmem:[%s1 + $0x12b8] sm:$0xff]
  %v726 = vld [vmem:[%s1 + $0x12c0] sm:$0xff]
  %v727 = vld [vmem:[%s1 + $0x12c8] sm:$0xff]
  %v728 = vld [vmem:[%s1 + $0x12d0] sm:$0xff]
  %v729 = vld [vmem:[%s1 + $0x12d8] sm:$0xff]
  %v730 = vld [vmem:[%s1 + $0x12e0] sm:$0xff]
  %v731 = vld [vmem:[%s1 + $0x12e8] sm:$0xff]
  %v732 = vld [vmem:[%s1 + $0x12f0] sm:$0xff]
  %v733 = vld [vmem:[%s1 + $0x12f8] sm:$0xff]
  %v734 = vld [vmem:[%s1 + $0x1300] sm:$0xff]
  %v735 = vld [vmem:[%s1 + $0x1308] sm:$0xff]
  %v736 = vld [vmem:[%s1 + $0x1310] sm:$0xff]
  %v737 = vld [vmem:[%s1 + $0x1318] sm:$0xff]
  %v738 = vld [vmem:[%s1 + $0x1320] sm:$0xff]
  %v739 = vld [vmem:[%s1 + $0x1328] sm:$0xff]
  %v740 = vld [vmem:[%s1 + $0x1330] sm:$0xff]
  %v741 = vld [vmem:[%s1 + $0x1338] sm:$0xff]
  %v742 = vld [vmem:[%s1 + $0x1340] sm:$0xff]
  %v743 = vld [vmem:[%s1 + $0x1348] sm:$0xff]
  %v744 = vld [vmem:[%s1 + $0x1350] sm:$0xff]
  %v745 = vld [vmem:[%s1 + $0x1358] sm:$0xff]
  %v746 = vld [vmem:[%s1 + $0x1360] sm:$0xff]
  %v747 = vld [vmem:[%s1 + $0x1368] sm:$0xff]
  %v748 = vld [vmem:[%s1 + $0x1370] sm:$0xff]
  %v749 = vld [vmem:[%s1 + $0x1378] sm:$0xff]
  %v750 = vld [vmem:[%s1 + $0x1380] sm:$0xff]
  %v751 = vld [vmem:[%s1 + $0x1388] sm:$0xff]
  %v752 = vld [vmem:[%s1 + $0x1390] sm:$0xff]
  %v753 = vld [vmem:[%s1 + $0x1398] sm:$0xff]
  %v754 = vld [vmem:[%s1 + $0x13a0] sm:$0xff]
  %v755 = vld [vmem:[%s1 + $0x13a8] sm:$0xff]
  %v756 = vld [vmem:[%s1 + $0x13b0] sm:$0xff]
  %v757 = vld [vmem:[%s1 + $0x13b8] sm:$0xff]
  %v758 = vld [vmem:[%s1 + $0x13c0] sm:$0xff]
  %v759 = vld [vmem:[%s1 + $0x13c8] sm:$0xff]
  %v760 = vld [vmem:[%s1 + $0x13d0] sm:$0xff]
  %v761 = vld [vmem:[%s1 + $0x13d8] sm:$0xff]
  %v762 = vld [vmem:[%s1 + $0x13e0] sm:$0xff]
  %v763 = vld [vmem:[%s1 + $0x13e8] sm:$0xff]
  %v764 = vld [vmem:[%s1 + $0x13f0] sm:$0xff]
  %v765 = vld [vmem:[%s1 + $0x13f8] sm:$0xff]
  %v766 = vld [vmem:[%s1 + $0x1400] sm:$0xff]
  %v767 = vld [vmem:[%s1 + $0x1408] sm:$0xff]
  %v768 = vld [vmem:[%s1 + $0x1410] sm:$0xff]
  %v769 = vld [vmem:[%s1 + $0x1418] sm:$0xff]
  %v770 = vld [vmem:[%s1 + $0x1420] sm:$0xff]
  %v771 = vld [vmem:[%s1 + $0x1428] sm:$0xff]
  %v772 = vld [vmem:[%s1 + $0x1430] sm:$0xff]
  %v773 = vld [vmem:[%s1 + $0x1438] sm:$0xff]
  %v774 = vld [vmem:[%s1 + $0x1440] sm:$0xff]
  %v775 = vld [vmem:[%s1 + $0x1448] sm:$0xff]
  %v776 = vld [vmem:[%s1 + $0x1450] sm:$0xff]
  %v777 = vld [vmem:[%s1 + $0x1458] sm:$0xff]
  %v778 = vld [vmem:[%s1 + $0x1460] sm:$0xff]
  %v779 = vld [vmem:[%s1 + $0x1468] sm:$0xff]
  %v780 = vld [vmem:[%s1 + $0x1470] sm:$0xff]
  %v781 = vld [vmem:[%s1 + $0x1478] sm:$0xff]
  %v782 = vld [vmem:[%s1 + $0x1480] sm:$0xff]
  %v783 = vld [vmem:[%s1 + $0x1488] sm:$0xff]
  %v784 = vld [vmem:[%s1 + $0x1490] sm:$0xff]
  %v785 = vld [vmem:[%s1 + $0x1498] sm:$0xff]
  %v786 = vld [vmem:[%s1 + $0x14a0] sm:$0xff]
  %v787 = vld [vmem:[%s1 + $0x14a8] sm:$0xff]
  %v788 = vld [vmem:[%s1 + $0x14b0] sm:$0xff]
  %v789 = vld [vmem:[%s1 + $0x14b8] sm:$0xff]
  %v790 = vld [vmem:[%s1 + $0x14c0] sm:$0xff]
  %v791 = vld [vmem:[%s1 + $0x14c8] sm:$0xff]
  %v792 = vld [vmem:[%s1 + $0x14d0] sm:$0xff]
  %v793 = vld [vmem:[%s1 + $0x14d8] sm:$0xff]
  %v794 = vld [vmem:[%s1 + $0x14e0] sm:$0xff]
  %v795 = vld [vmem:[%s1 + $0x14e8] sm:$0xff]
  %v796 = vld [vmem:[%s1 + $0x14f0] sm:$0xff]
  %v797 = vld [vmem:[%s1 + $0x14f8] sm:$0xff]
  %v798 = vld [vmem:[%s1 + $0x1500] sm:$0xff]
  %v799 = vld [vmem:[%s1 + $0x1508] sm:$0xff]
  %v800 = vld [vmem:[%s1 + $0x1510] sm:$0xff]
  %v801 = vld [vmem:[%s1 + $0x1518] sm:$0xff]
  %v802 = vld [vmem:[%s1 + $0x1520] sm:$0xff]
  %v803 = vld [vmem:[%s1 + $0x1528] sm:$0xff]
  %v804 = vld [vmem:[%s1 + $0x1530] sm:$0xff]
  %v805 = vld [vmem:[%s1 + $0x1538] sm:$0xff]
  %v806 = vld [vmem:[%s1 + $0x1540] sm:$0xff]
  %v807 = vld [vmem:[%s1 + $0x1548] sm:$0xff]
  %v808 = vld [vmem:[%s1 + $0x1550] sm:$0xff]
  %v809 = vld [vmem:[%s1 + $0x1558] sm:$0xff]
  %v810 = vld [vmem:[%s1 + $0x1560] sm:$0xff]
  %v811 = vld [vmem:[%s1 + $0x1568] sm:$0xff]
  %v812 = vld [vmem:[%s1 + $0x1570] sm:$0xff]
  %v813 = vld [vmem:[%s1 + $0x1578] sm:$0xff]
  %v814 = vld [vmem:[%s1 + $0x1580] sm:$0xff]
  %v815 = vld [vmem:[%s1 + $0x1588] sm:$0xff]
  %v816 = vld [vmem:[%s1 + $0x1590] sm:$0xff]
  %v817 = vld [vmem:[%s1 + $0x1598] sm:$0xff]
  %v818 = vld [vmem:[%s1 + $0x15a0] sm:$0xff]
  %v819 = vld [vmem:[%s1 + $0x15a8] sm:$0xff]
  %v820 = vld [vmem:[%s1 + $0x15b0] sm:$0xff]
  %v821 = vld [vmem:[%s1 + $0x15b8] sm:$0xff]
  %v822 = vld [vmem:[%s1 + $0x15c0] sm:$0xff]
  %v823 = vld [vmem:[%s1 + $0x15c8] sm:$0xff]
  %v824 = vld [vmem:[%s1 + $0x15d0] sm:$0xff]
  %v825 = vld [vmem:[%s1 + $0x15d8] sm:$0xff]
  %v826 = vld [vmem:[%s1 + $0x15e0] sm:$0xff]
  %v827 = vld [vmem:[%s1 + $0x15e8] sm:$0xff]
  %v828 = vld [vmem:[%s1 + $0x15f0] sm:$0xff]
  %v829 = vld [vmem:[%s1 + $0x15f8] sm:$0xff]
  %v830 = vld [vmem:[%s1 + $0x1600] sm:$0xff]
  %v831 = vld [vmem:[%s1 + $0x1608] sm:$0xff]
  %v832 = vld [vmem:[%s1 + $0x1610] sm:$0xff]
  %v833 = vld [vmem:[%s1 + $0x1618] sm:$0xff]
  %v834 = vld [vmem:[%s1 + $0x1620] sm:$0xff]
  %v835 = vld [vmem:[%s1 + $0x1628] sm:$0xff]
  %v836 = vld [vmem:[%s1 + $0x1630] sm:$0xff]
  %v837 = vld [vmem:[%s1 + $0x1638] sm:$0xff]
  %v838 = vld [vmem:[%s1 + $0x1640] sm:$0xff]
  %v839 = vld [vmem:[%s1 + $0x1648] sm:$0xff]
  %v840 = vld [vmem:[%s1 + $0x1650] sm:$0xff]
  %v841 = vld [vmem:[%s1 + $0x1658] sm:$0xff]
  %v842 = vld [vmem:[%s1 + $0x1660] sm:$0xff]
  %v843 = vld [vmem:[%s1 + $0x1668] sm:$0xff]
  %v844 = vld [vmem:[%s1 + $0x1670] sm:$0xff]
  %v845 = vld [vmem:[%s1 + $0x1678] sm:$0xff]
  %v846 = vld [vmem:[%s1 + $0x1680] sm:$0xff]
  %v847 = vld [vmem:[%s1 + $0x1688] sm:$0xff]
  %v848 = vld [vmem:[%s1 + $0x1690] sm:$0xff]
  %v849 = vld [vmem:[%s1 + $0x1698] sm:$0xff]
  %v850 = vld [vmem:[%s1 + $0x16a0] sm:$0xff]
  %v851 = vld [vmem:[%s1 + $0x16a8] sm:$0xff]
  %v852 = vld [vmem:[%s1 + $0x16b0] sm:$0xff]
  %v853 = vld [vmem:[%s1 + $0x16b8] sm:$0xff]
  %v854 = vld [vmem:[%s1 + $0x16c0] sm:$0xff]
  %v855 = vld [vmem:[%s1 + $0x16c8] sm:$0xff]
  %v856 = vld [vmem:[%s1 + $0x16d0] sm:$0xff]
  %v857 = vld [vmem:[%s1 + $0x16d8] sm:$0xff]
  %v858 = vld [vmem:[%s1 + $0x16e0] sm:$0xff]
  %v859 = vld [vmem:[%s1 + $0x16e8] sm:$0xff]
  %v860 = vld [vmem:[%s1 + $0x16f0] sm:$0xff]
  %v861 = vld [vmem:[%s1 + $0x16f8] sm:$0xff]
  %v862 = vld [vmem:[%s1 + $0x1700] sm:$0xff]
  %v863 = vld [vmem:[%s1 + $0x1708] sm:$0xff]
  %v864 = vld [vmem:[%s1 + $0x1710] sm:$0xff]
  %v865 = vld [vmem:[%s1 + $0x1718] sm:$0xff]
  %v866 = vld [vmem:[%s1 + $0x1720] sm:$0xff]
  %v867 = vld [vmem:[%s1 + $0x1728] sm:$0xff]
  %v868 = vld [vmem:[%s1 + $0x1730] sm:$0xff]
  %v869 = vld [vmem:[%s1 + $0x1738] sm:$0xff]
  %v870 = vld [vmem:[%s1 + $0x1740] sm:$0xff]
  %v871 = vld [vmem:[%s1 + $0x1748] sm:$0xff]
  %v872 = vld [vmem:[%s1 + $0x1750] sm:$0xff]
  %v873 = vld [vmem:[%s1 + $0x1758] sm:$0xff]
  %v874 = vld [vmem:[%s1 + $0x1760] sm:$0xff]
  %v875 = vld [vmem:[%s1 + $0x1768] sm:$0xff]
  %v876 = vld [vmem:[%s1 + $0x1770] sm:$0xff]
  %v877 = vld [vmem:[%s1 + $0x1778] sm:$0xff]
  %v878 = vld [vmem:[%s1 + $0x1780] sm:$0xff]
  %v879 = vld [vmem:[%s1 + $0x1788] sm:$0xff]
  %v880 = vld [vmem:[%s1 + $0x1790] sm:$0xff]
  %v881 = vld [vmem:[%s1 + $0x1798] sm:$0xff]
  %v882 = vld [vmem:[%s1 + $0x17a0] sm:$0xff]
  %v883 = vld [vmem:[%s1 + $0x17a8] sm:$0xff]
  %v884 = vld [vmem:[%s1 + $0x17b0] sm:$0xff]
  %v885 = vld [vmem:[%s1 + $0x17b8] sm:$0xff]
  %v886 = vld [vmem:[%s1 + $0x17c0] sm:$0xff]
  %v887 = vld [vmem:[%s1 + $0x17c8] sm:$0xff]
  %v888 = vld [vmem:[%s1 + $0x17d0] sm:$0xff]
  %v889 = vld [vmem:[%s1 + $0x17d8] sm:$0xff]
  %v890 = vld [vmem:[%s1 + $0x17e0] sm:$0xff]
  %v891 = vld [vmem:[%s1 + $0x17e8] sm:$0xff]
  %v892 = vld [vmem:[%s1 + $0x17f0] sm:$0xff]
  %v893 = vld [vmem:[%s1 + $0x17f8] sm:$0xff]
  %v894 = vld [vmem:[%s1 + $0x1800] sm:$0xff]
  %v895 = vld [vmem:[%s1 + $0x1808] sm:$0xff]
  %v896 = vld [vmem:[%s1 + $0x1810] sm:$0xff]
  %v897 = vld [vmem:[%s1 + $0x1818] sm:$0xff]
  %v898 = vld [vmem:[%s1 + $0x1820] sm:$0xff]
  %v899 = vld [vmem:[%s1 + $0x1828] sm:$0xff]
  %v900 = vld [vmem:[%s1 + $0x1830] sm:$0xff]
  %v901 = vld [vmem:[%s1 + $0x1838] sm:$0xff]
  %v902 = vld [vmem:[%s1 + $0x1840] sm:$0xff]
  %v903 = vld [vmem:[%s1 + $0x1848] sm:$0xff]
  %v904 = vld [vmem:[%s1 + $0x1850] sm:$0xff]
  %v905 = vld [vmem:[%s1 + $0x1858] sm:$0xff]
  %v906 = vld [vmem:[%s1 + $0x1860] sm:$0xff]
  %v907 = vld [vmem:[%s1 + $0x1868] sm:$0xff]
  %v908 = vld [vmem:[%s1 + $0x1870] sm:$0xff]
  %v909 = vld [vmem:[%s1 + $0x1878] sm:$0xff]
  %v910 = vld [vmem:[%s1 + $0x1880] sm:$0xff]
  %v911 = vld [vmem:[%s1 + $0x1888] sm:$0xff]
  %v912 = vld [vmem:[%s1 + $0x1890] sm:$0xff]
  %v913 = vld [vmem:[%s1 + $0x1898] sm:$0xff]
  %v914 = vld [vmem:[%s1 + $0x18a0] sm:$0xff]
  %v915 = vld [vmem:[%s1 + $0x18a8] sm:$0xff]
  %v916 = vld [vmem:[%s1 + $0x18b0] sm:$0xff]
  %v917 = vld [vmem:[%s1 + $0x18b8] sm:$0xff]
  %v918 = vld [vmem:[%s1 + $0x18c0] sm:$0xff]
  %v919 = vld [vmem:[%s1 + $0x18c8] sm:$0xff]
  %v920 = vld [vmem:[%s1 + $0x18d0] sm:$0xff]
  %v921 = vld [vmem:[%s1 + $0x18d8] sm:$0xff]
  %v922 = vld [vmem:[%s1 + $0x18e0] sm:$0xff]
  %v923 = vld [vmem:[%s1 + $0x18e8] sm:$0xff]
  %v924 = vld [vmem:[%s1 + $0x18f0] sm:$0xff]
  %v925 = vld [vmem:[%s1 + $0x18f8] sm:$0xff]
  %v926 = vld [vmem:[%s1 + $0x1900] sm:$0xff]
  %v927 = vld [vmem:[%s1 + $0x1908] sm:$0xff]
  %v928 = vld [vmem:[%s1 + $0x1910] sm:$0xff]
  %v929 = vld [vmem:[%s1 + $0x1918] sm:$0xff]
  %v930 = vld [vmem:[%s1 + $0x1920] sm:$0xff]
  %v931 = vld [vmem:[%s1 + $0x1928] sm:$0xff]
  %v932 = vld [vmem:[%s1 + $0x1930] sm:$0xff]
  %v933 = vld [vmem:[%s1 + $0x1938] sm:$0xff]
  %v934 = vld [vmem:[%s1 + $0x1940] sm:$0xff]
  %v935 = vld [vmem:[%s1 + $0x1948] sm:$0xff]
  %v936 = vld [vmem:[%s1 + $0x1950] sm:$0xff]
  %v937 = vld [vmem:[%s1 + $0x1958] sm:$0xff]
  %v938 = vld [vmem:[%s1 + $0x1960] sm:$0xff]
  %v939 = vld [vmem:[%s1 + $0x1968] sm:$0xff]
  %v940 = vld [vmem:[%s1 + $0x1970] sm:$0xff]
  %v941 = vld [vmem:[%s1 + $0x1978] sm:$0xff]
  %v942 = vld [vmem:[%s1 + $0x1980] sm:$0xff]
  %v943 = vld [vmem:[%s1 + $0x1988] sm:$0xff]
  %v944 = vld [vmem:[%s1 + $0x1990] sm:$0xff]
  %v945 = vld [vmem:[%s1 + $0x1998] sm:$0xff]
  %v946 = vld [vmem:[%s1 + $0x19a0] sm:$0xff]
  %v947 = vld [vmem:[%s1 + $0x19a8] sm:$0xff]
  %v948 = vld [vmem:[%s1 + $0x19b0] sm:$0xff]
  %v949 = vld [vmem:[%s1 + $0x19b8] sm:$0xff]
  %v950 = vld [vmem:[%s1 + $0x19c0] sm:$0xff]
  %v951 = vld [vmem:[%s1 + $0x19c8] sm:$0xff]
  %v952 = vld [vmem:[%s1 + $0x19d0] sm:$0xff]
  %v953 = vld [vmem:[%s1 + $0x19d8] sm:$0xff]
  %v954 = vld [vmem:[%s1 + $0x19e0] sm:$0xff]
  %v955 = vld [vmem:[%s1 + $0x19e8] sm:$0xff]
  %v956 = vld [vmem:[%s1 + $0x19f0] sm:$0xff]
  %v957 = vld [vmem:[%s1 + $0x19f8] sm:$0xff]
  %v958 = vld [vmem:[%s1 + $0x1a00] sm:$0xff]
  %v959 = vld [vmem:[%s1 + $0x1a08] sm:$0xff]
  %v960 = vld [vmem:[%s1 + $0x1a10] sm:$0xff]
  %v961 = vld [vmem:[%s1 + $0x1a18] sm:$0xff]
  %v962 = vld [vmem:[%s1 + $0x1a20] sm:$0xff]
  %v963 = vld [vmem:[%s1 + $0x1a28] sm:$0xff]
  %v964 = vld [vmem:[%s1 + $0x1a30] sm:$0xff]
  %v965 = vld [vmem:[%s1 + $0x1a38] sm:$0xff]
  %v966 = vld [vmem:[%s1 + $0x1a40] sm:$0xff]
  %v967 = vld [vmem:[%s1 + $0x1a48] sm:$0xff]
  %v968 = vld [vmem:[%s1 + $0x1a50] sm:$0xff]
  %v969 = vld [vmem:[%s1 + $0x1a58] sm:$0xff]
  %v970 = vld [vmem:[%s1 + $0x1a60] sm:$0xff]
  %v971 = vld [vmem:[%s1 + $0x1a68] sm:$0xff]
  %v972 = vld [vmem:[%s1 + $0x1a70] sm:$0xff]
  %v973 = vld [vmem:[%s1 + $0x1a78] sm:$0xff]
  %v974 = vld [vmem:[%s1 + $0x1a80] sm:$0xff]
  %v975 = vld [vmem:[%s1 + $0x1a88] sm:$0xff]
  %v976 = vld [vmem:[%s1 + $0x1a90] sm:$0xff]
  %v977 = vld [vmem:[%s1 + $0x1a98] sm:$0xff]
  %v978 = vld [vmem:[%s1 + $0x1aa0] sm:$0xff]
  %v979 = vld [vmem:[%s1 + $0x1aa8] sm:$0xff]
  %v980 = vld [vmem:[%s1 + $0x1ab0] sm:$0xff]
  %v981 = vld [vmem:[%s1 + $0x1ab8] sm:$0xff]
  %v982 = vld [vmem:[%s1 + $0x1ac0] sm:$0xff]
  %v983 = vld [vmem:[%s1 + $0x1ac8] sm:$0xff]
  %v984 = vld [vmem:[%s1 + $0x1ad0] sm:$0xff]
  %v985 = vld [vmem:[%s1 + $0x1ad8] sm:$0xff]
  %v986 = vld [vmem:[%s1 + $0x1ae0] sm:$0xff]
  %v987 = vld [vmem:[%s1 + $0x1ae8] sm:$0xff]
  %v988 = vld [vmem:[%s1 + $0x1af0] sm:$0xff]
  %v989 = vld [vmem:[%s1 + $0x1af8] sm:$0xff]
  %v990 = vld [vmem:[%s1 + $0x1b00] sm:$0xff]
  %v991 = vld [vmem:[%s1 + $0x1b08] sm:$0xff]
  %v992 = vld [vmem:[%s1 + $0x1b10] sm:$0xff]
  %v993 = vld [vmem:[%s1 + $0x1b18] sm:$0xff]
  %v994 = vld [vmem:[%s1 + $0x1b20] sm:$0xff]
  %v995 = vld [vmem:[%s1 + $0x1b28] sm:$0xff]
  %v996 = vld [vmem:[%s1 + $0x1b30] sm:$0xff]
  %v997 = vld [vmem:[%s1 + $0x1b38] sm:$0xff]
  %v998 = vld [vmem:[%s1 + $0x1b40] sm:$0xff]
  %v999 = vld [vmem:[%s1 + $0x1b48] sm:$0xff]
  %v1000 = vld [vmem:[%s1 + $0x1b50] sm:$0xff]
  %v1001 = vld [vmem:[%s1 + $0x1b58] sm:$0xff]
  %v1002 = vld [vmem:[%s1 + $0x1b60] sm:$0xff]
  %v1003 = vld [vmem:[%s1 + $0x1b68] sm:$0xff]
  %v1004 = vld [vmem:[%s1 + $0x1b70] sm:$0xff]
  %v1005 = vld [vmem:[%s1 + $0x1b78] sm:$0xff]
  %v1006 = vld [vmem:[%s1 + $0x1b80] sm:$0xff]
  %v1007 = vld [vmem:[%s1 + $0x1b88] sm:$0xff]
  %v1008 = vld [vmem:[%s1 + $0x1b90] sm:$0xff]
  %v1009 = vld [vmem:[%s1 + $0x1b98] sm:$0xff]
  %v1010 = vld [vmem:[%s1 + $0x1ba0] sm:$0xff]
  %v1011 = vld [vmem:[%s1 + $0x1ba8] sm:$0xff]
  %v1012 = vld [vmem:[%s1 + $0x1bb0] sm:$0xff]
  %v1013 = vld [vmem:[%s1 + $0x1bb8] sm:$0xff]
  %v1014 = vld [vmem:[%s1 + $0x1bc0] sm:$0xff]
  %v1015 = vld [vmem:[%s1 + $0x1bc8] sm:$0xff]
  %v1016 = vld [vmem:[%s1 + $0x1bd0] sm:$0xff]
  %v1017 = vld [vmem:[%s1 + $0x1bd8] sm:$0xff]
  %v1018 = vld [vmem:[%s1 + $0x1be0] sm:$0xff]
  %v1019 = vld [vmem:[%s1 + $0x1be8] sm:$0xff]
  %v1020 = vld [vmem:[%s1 + $0x1bf0] sm:$0xff]
  %v1021 = vld [vmem:[%s1 + $0x1bf8] sm:$0xff]
  %v1022 = vld [vmem:[%s1 + $0x1c00] sm:$0xff]
  %v1023 = vld [vmem:[%s1 + $0x1c08] sm:$0xff]
  %v1024 = vld [vmem:[%s1 + $0x1c10] sm:$0xff]
  %v1025 = vld [vmem:[%s1 + $0x1c18] sm:$0xff]
  %v1026 = vld [vmem:[%s1 + $0x1c20] sm:$0xff]
  %v1027 = vld [vmem:[%s1 + $0x1c28] sm:$0xff]
  %v1028 = vld [vmem:[%s1 + $0x1c30] sm:$0xff]
  %v1029 = vld [vmem:[%s1 + $0x1c38] sm:$0xff]
  %v1030 = vld [vmem:[%s1 + $0x1c40] sm:$0xff]
  %v1031 = vld [vmem:[%s1 + $0x1c48] sm:$0xff]
  %v1032 = vld [vmem:[%s1 + $0x1c50] sm:$0xff]
  %v1033 = vld [vmem:[%s1 + $0x1c58] sm:$0xff]
  %v1034 = vld [vmem:[%s1 + $0x1c60] sm:$0xff]
  %v1035 = vld [vmem:[%s1 + $0x1c68] sm:$0xff]
  %v1036 = vld [vmem:[%s1 + $0x1c70] sm:$0xff]
  %v1037 = vld [vmem:[%s1 + $0x1c78] sm:$0xff]
  %v1038 = vld [vmem:[%s1 + $0x1c80] sm:$0xff]
  %v1039 = vld [vmem:[%s1 + $0x1c88] sm:$0xff]
  %v1040 = vld [vmem:[%s1 + $0x1c90] sm:$0xff]
  %v1041 = vld [vmem:[%s1 + $0x1c98] sm:$0xff]
  %v1042 = vld [vmem:[%s1 + $0x1ca0] sm:$0xff]
  %v1043 = vld [vmem:[%s1 + $0x1ca8] sm:$0xff]
  %v1044 = vld [vmem:[%s1 + $0x1cb0] sm:$0xff]
  %v1045 = vld [vmem:[%s1 + $0x1cb8] sm:$0xff]
  %v1046 = vld [vmem:[%s1 + $0x1cc0] sm:$0xff]
  %v1047 = vld [vmem:[%s1 + $0x1cc8] sm:$0xff]
  %v1048 = vld [vmem:[%s1 + $0x1cd0] sm:$0xff]
  %v1049 = vld [vmem:[%s1 + $0x1cd8] sm:$0xff]
  %v1050 = vld [vmem:[%s1 + $0x1ce0] sm:$0xff]
  %v1051 = vld [vmem:[%s1 + $0x1ce8] sm:$0xff]
  %v1052 = vld [vmem:[%s1 + $0x1cf0] sm:$0xff]
  %v1053 = vld [vmem:[%s1 + $0x1cf8] sm:$0xff]
  %v1054 = vld [vmem:[%s1 + $0x1d00] sm:$0xff]
  %v1055 = vld [vmem:[%s1 + $0x1d08] sm:$0xff]
  %v1056 = vld [vmem:[%s1 + $0x1d10] sm:$0xff]
  %v1057 = vld [vmem:[%s1 + $0x1d18] sm:$0xff]
  %v1058 = vld [vmem:[%s1 + $0x1d20] sm:$0xff]
  %v1059 = vld [vmem:[%s1 + $0x1d28] sm:$0xff]
  %v1060 = vld [vmem:[%s1 + $0x1d30] sm:$0xff]
  %v1061 = vld [vmem:[%s1 + $0x1d38] sm:$0xff]
  %v1062 = vld [vmem:[%s1 + $0x1d40] sm:$0xff]
  %v1063 = vld [vmem:[%s1 + $0x1d48] sm:$0xff]
  %v1064 = vld [vmem:[%s1 + $0x1d50] sm:$0xff]
  %v1065 = vld [vmem:[%s1 + $0x1d58] sm:$0xff]
  %v1066 = vld [vmem:[%s1 + $0x1d60] sm:$0xff]
  %v1067 = vld [vmem:[%s1 + $0x1d68] sm:$0xff]
  %v1068 = vld [vmem:[%s1 + $0x1d70] sm:$0xff]
  %v1069 = vld [vmem:[%s1 + $0x1d78] sm:$0xff]
  %v1070 = vld [vmem:[%s1 + $0x1d80] sm:$0xff]
  %v1071 = vld [vmem:[%s1 + $0x1d88] sm:$0xff]
  %v1072 = vld [vmem:[%s1 + $0x1d90] sm:$0xff]
  %v1073 = vld [vmem:[%s1 + $0x1d98] sm:$0xff]
  %v1074 = vld [vmem:[%s1 + $0x1da0] sm:$0xff]
  %v1075 = vld [vmem:[%s1 + $0x1da8] sm:$0xff]
  %v1076 = vld [vmem:[%s1 + $0x1db0] sm:$0xff]
  %v1077 = vld [vmem:[%s1 + $0x1db8] sm:$0xff]
  %v1078 = vld [vmem:[%s1 + $0x1dc0] sm:$0xff]
  %v1079 = vld [vmem:[%s1 + $0x1dc8] sm:$0xff]
  %v1080 = vld [vmem:[%s1 + $0x1dd0] sm:$0xff]
  %v1081 = vld [vmem:[%s1 + $0x1dd8] sm:$0xff]
  %v1082 = vld [vmem:[%s1 + $0x1de0] sm:$0xff]
  %v1083 = vld [vmem:[%s1 + $0x1de8] sm:$0xff]
  %v1084 = vld [vmem:[%s1 + $0x1df0] sm:$0xff]
  %v1085 = vld [vmem:[%s1 + $0x1df8] sm:$0xff]
  %v1086 = vld [vmem:[%s1 + $0x1e00] sm:$0xff]
  %v1087 = vld [vmem:[%s1 + $0x1e08] sm:$0xff]
  %v1088 = vld [vmem:[%s1 + $0x1e10] sm:$0xff]
  %v1089 = vld [vmem:[%s1 + $0x1e18] sm:$0xff]
  %v1090 = vld [vmem:[%s1 + $0x1e20] sm:$0xff]
  %v1091 = vld [vmem:[%s1 + $0x1e28] sm:$0xff]
  %v1092 = vld [vmem:[%s1 + $0x1e30] sm:$0xff]
  %v1093 = vld [vmem:[%s1 + $0x1e38] sm:$0xff]
  %v1094 = vld [vmem:[%s1 + $0x1e40] sm:$0xff]
  %v1095 = vld [vmem:[%s1 + $0x1e48] sm:$0xff]
  %v1096 = vld [vmem:[%s1 + $0x1e50] sm:$0xff]
  %v1097 = vld [vmem:[%s1 + $0x1e58] sm:$0xff]
  %v1098 = vld [vmem:[%s1 + $0x1e60] sm:$0xff]
  %v1099 = vld [vmem:[%s1 + $0x1e68] sm:$0xff]
  %v1100 = vld [vmem:[%s1 + $0x1e70] sm:$0xff]
  %v1101 = vld [vmem:[%s1 + $0x1e78] sm:$0xff]
  %v1102 = vld [vmem:[%s1 + $0x1e80] sm:$0xff]
  %v1103 = vld [vmem:[%s1 + $0x1e88] sm:$0xff]
  %v1104 = vld [vmem:[%s1 + $0x1e90] sm:$0xff]
  %v1105 = vld [vmem:[%s1 + $0x1e98] sm:$0xff]
  %v1106 = vld [vmem:[%s1 + $0x1ea0] sm:$0xff]
  %v1107 = vld [vmem:[%s1 + $0x1ea8] sm:$0xff]
  %v1108 = vld [vmem:[%s1 + $0x1eb0] sm:$0xff]
  %v1109 = vld [vmem:[%s1 + $0x1eb8] sm:$0xff]
  %v1110 = vld [vmem:[%s1 + $0x1ec0] sm:$0xff]
  %v1111 = vld [vmem:[%s1 + $0x1ec8] sm:$0xff]
  %v1112 = vld [vmem:[%s1 + $0x1ed0] sm:$0xff]
  %v1113 = vld [vmem:[%s1 + $0x1ed8] sm:$0xff]
  %v1114 = vld [vmem:[%s1 + $0x1ee0] sm:$0xff]
  %v1115 = vld [vmem:[%s1 + $0x1ee8] sm:$0xff]
  %v1116 = vld [vmem:[%s1 + $0x1ef0] sm:$0xff]
  %v1117 = vld [vmem:[%s1 + $0x1ef8] sm:$0xff]
  %v1118 = vld [vmem:[%s1 + $0x1f00] sm:$0xff]
  %v1119 = vld [vmem:[%s1 + $0x1f08] sm:$0xff]
  %v1120 = vld [vmem:[%s1 + $0x1f10] sm:$0xff]
  %v1121 = vld [vmem:[%s1 + $0x1f18] sm:$0xff]
  %v1122 = vld [vmem:[%s1 + $0x1f20] sm:$0xff]
  %v1123 = vld [vmem:[%s1 + $0x1f28] sm:$0xff]
  %v1124 = vld [vmem:[%s1 + $0x1f30] sm:$0xff]
  %v1125 = vld [vmem:[%s1 + $0x1f38] sm:$0xff]
  %v1126 = vld [vmem:[%s1 + $0x1f40] sm:$0xff]
  %v1127 = vld [vmem:[%s1 + $0x1f48] sm:$0xff]
  %v1128 = vld [vmem:[%s1 + $0x1f50] sm:$0xff]
  %v1129 = vld [vmem:[%s1 + $0x1f58] sm:$0xff]
  %v1130 = vld [vmem:[%s1 + $0x1f60] sm:$0xff]
  %v1131 = vld [vmem:[%s1 + $0x1f68] sm:$0xff]
  %v1132 = vld [vmem:[%s1 + $0x1f70] sm:$0xff]
  %v1133 = vld [vmem:[%s1 + $0x1f78] sm:$0xff]
  %v1134 = vld [vmem:[%s1 + $0x1f80] sm:$0xff]
  %v1135 = vld [vmem:[%s1 + $0x1f88] sm:$0xff]
  %v1136 = vld [vmem:[%s1 + $0x1f90] sm:$0xff]
  %v1137 = vld [vmem:[%s1 + $0x1f98] sm:$0xff]
  %v1138 = vld [vmem:[%s1 + $0x1fa0] sm:$0xff]
  %v1139 = vld [vmem:[%s1 + $0x1fa8] sm:$0xff]
  %v1140 = vld [vmem:[%s1 + $0x1fb0] sm:$0xff]
  %v1141 = vld [vmem:[%s1 + $0x1fb8] sm:$0xff]
  %v1142 = vld [vmem:[%s1 + $0x1fc0] sm:$0xff]
  %v1143 = vld [vmem:[%s1 + $0x1fc8] sm:$0xff]
  %v1144 = vld [vmem:[%s1 + $0x1fd0] sm:$0xff]
  %v1145 = vld [vmem:[%s1 + $0x1fd8] sm:$0xff]
  %v1146 = vld [vmem:[%s1 + $0x1fe0] sm:$0xff]
  %v1147 = vld [vmem:[%s1 + $0x1fe8] sm:$0xff]
  %v1148 = vld [vmem:[%s1 + $0x1ff0] sm:$0xff]
  %v1149 = vld [vmem:[%s1 + $0x1ff8] sm:$0xff]
  %v1150 = vld [vmem:[%s1 + $0x2000] sm:$0xff]
  %v1151 = vld [vmem:[%s1 + $0x2008] sm:$0xff]
  %v1152 = vld [vmem:[%s1 + $0x2010] sm:$0xff]
  %v1153 = vld [vmem:[%s1 + $0x2018] sm:$0xff]
  %v1154 = vld [vmem:[%s1 + $0x2020] sm:$0xff]
  %v1155 = vld [vmem:[%s1 + $0x2028] sm:$0xff]
  %v1156 = vld [vmem:[%s1 + $0x2030] sm:$0xff]
  %v1157 = vld [vmem:[%s1 + $0x2038] sm:$0xff]
  %v1158 = vld [vmem:[%s1 + $0x2040] sm:$0xff]
  %v1159 = vld [vmem:[%s1 + $0x2048] sm:$0xff]
  %v1160 = vld [vmem:[%s1 + $0x2050] sm:$0xff]
  %v1161 = vld [vmem:[%s1 + $0x2058] sm:$0xff]
  %v1162 = vld [vmem:[%s1 + $0x2060] sm:$0xff]
  %v1163 = vld [vmem:[%s1 + $0x2068] sm:$0xff]
  %v1164 = vld [vmem:[%s1 + $0x2070] sm:$0xff]
  %v1165 = vld [vmem:[%s1 + $0x2078] sm:$0xff]
  %v1166 = vld [vmem:[%s1 + $0x2080] sm:$0xff]
  %v1167 = vld [vmem:[%s1 + $0x2088] sm:$0xff]
  %v1168 = vld [vmem:[%s1 + $0x2090] sm:$0xff]
  %v1169 = vld [vmem:[%s1 + $0x2098] sm:$0xff]
  %v1170 = vld [vmem:[%s1 + $0x20a0] sm:$0xff]
  %v1171 = vld [vmem:[%s1 + $0x20a8] sm:$0xff]
  %v1172 = vld [vmem:[%s1 + $0x20b0] sm:$0xff]
  %v1173 = vld [vmem:[%s1 + $0x20b8] sm:$0xff]
  %v1174 = vld [vmem:[%s1 + $0x20c0] sm:$0xff]
  %v1175 = vld [vmem:[%s1 + $0x20c8] sm:$0xff]
  %v1176 = vld [vmem:[%s1 + $0x20d0] sm:$0xff]
  %v1177 = vld [vmem:[%s1 + $0x20d8] sm:$0xff]
  %v1178 = vld [vmem:[%s1 + $0x20e0] sm:$0xff]
  %v1179 = vld [vmem:[%s1 + $0x20e8] sm:$0xff]
  %v1180 = vld [vmem:[%s1 + $0x20f0] sm:$0xff]
  %v1181 = vld [vmem:[%s1 + $0x20f8] sm:$0xff]
  %v1182 = vld [vmem:[%s1 + $0x2100] sm:$0xff]
  %v1183 = vld [vmem:[%s1 + $0x2108] sm:$0xff]
  %v1184 = vld [vmem:[%s1 + $0x2110] sm:$0xff]
  %v1185 = vld [vmem:[%s1 + $0x2118] sm:$0xff]
  %v1186 = vld [vmem:[%s1 + $0x2120] sm:$0xff]
  %v1187 = vld [vmem:[%s1 + $0x2128] sm:$0xff]
  %v1188 = vld [vmem:[%s1 + $0x2130] sm:$0xff]
  %v1189 = vld [vmem:[%s1 + $0x2138] sm:$0xff]
  %v1190 = vld [vmem:[%s1 + $0x2140] sm:$0xff]
  %v1191 = vld [vmem:[%s1 + $0x2148] sm:$0xff]
  %v1192 = vld [vmem:[%s1 + $0x2150] sm:$0xff]
  %v1193 = vld [vmem:[%s1 + $0x2158] sm:$0xff]
  %v1194 = vld [vmem:[%s1 + $0x2160] sm:$0xff]
  %v1195 = vld [vmem:[%s1 + $0x2168] sm:$0xff]
  %v1196 = vld [vmem:[%s1 + $0x2170] sm:$0xff]
  %v1197 = vld [vmem:[%s1 + $0x2178] sm:$0xff]
  %v1198 = vld [vmem:[%s1 + $0x2180] sm:$0xff]
  %v1199 = vld [vmem:[%s1 + $0x2188] sm:$0xff]
  %v1200 = vld [vmem:[%s1 + $0x2190] sm:$0xff]
  %v1201 = vld [vmem:[%s1 + $0x2198] sm:$0xff]
  %v1202 = vld [vmem:[%s1 + $0x21a0] sm:$0xff]
  %v1203 = vld [vmem:[%s1 + $0x21a8] sm:$0xff]
  %v1204 = vld [vmem:[%s1 + $0x21b0] sm:$0xff]
  %v1205 = vld [vmem:[%s1 + $0x21b8] sm:$0xff]
  %v1206 = vld [vmem:[%s1 + $0x21c0] sm:$0xff]
  %v1207 = vld [vmem:[%s1 + $0x21c8] sm:$0xff]
  %v1208 = vld [vmem:[%s1 + $0x21d0] sm:$0xff]
  %v1209 = vld [vmem:[%s1 + $0x21d8] sm:$0xff]
  %v1210 = vld [vmem:[%s1 + $0x21e0] sm:$0xff]
  %v1211 = vld [vmem:[%s1 + $0x21e8] sm:$0xff]
  %v1212 = vld [vmem:[%s1 + $0x21f0] sm:$0xff]
  %v1213 = vld [vmem:[%s1 + $0x21f8] sm:$0xff]
  %v1214 = vld [vmem:[%s1 + $0x2200] sm:$0xff]
  %v1215 = vld [vmem:[%s1 + $0x2208] sm:$0xff]
  %v1216 = vld [vmem:[%s1 + $0x2210] sm:$0xff]
  %v1217 = vld [vmem:[%s1 + $0x2218] sm:$0xff]
  %v1218 = vld [vmem:[%s1 + $0x2220] sm:$0xff]
  %v1219 = vld [vmem:[%s1 + $0x2228] sm:$0xff]
  %v1220 = vld [vmem:[%s1 + $0x2230] sm:$0xff]
  %v1221 = vld [vmem:[%s1 + $0x2238] sm:$0xff]
  %v1222 = vld [vmem:[%s1 + $0x2240] sm:$0xff]
  %v1223 = vld [vmem:[%s1 + $0x2248] sm:$0xff]
  %v1224 = vld [vmem:[%s1 + $0x2250] sm:$0xff]
  %v1225 = vld [vmem:[%s1 + $0x2258] sm:$0xff]
  %v1226 = vld [vmem:[%s1 + $0x2260] sm:$0xff]
  %v1227 = vld [vmem:[%s1 + $0x2268] sm:$0xff]
  %v1228 = vld [vmem:[%s1 + $0x2270] sm:$0xff]
  %v1229 = vld [vmem:[%s1 + $0x2278] sm:$0xff]
  %v1230 = vld [vmem:[%s1 + $0x2280] sm:$0xff]
  %v1231 = vld [vmem:[%s1 + $0x2288] sm:$0xff]
  %v1232 = vld [vmem:[%s1 + $0x2290] sm:$0xff]
  %v1233 = vld [vmem:[%s1 + $0x2298] sm:$0xff]
  %v1234 = vld [vmem:[%s1 + $0x22a0] sm:$0xff]
  %v1235 = vld [vmem:[%s1 + $0x22a8] sm:$0xff]
  %v1236 = vld [vmem:[%s1 + $0x22b0] sm:$0xff]
  %v1237 = vld [vmem:[%s1 + $0x22b8] sm:$0xff]
  %v1238 = vld [vmem:[%s1 + $0x22c0] sm:$0xff]
  %v1239 = vld [vmem:[%s1 + $0x22c8] sm:$0xff]
  %v1240 = vld [vmem:[%s1 + $0x22d0] sm:$0xff]
  %v1241 = vld [vmem:[%s1 + $0x22d8] sm:$0xff]
  %v1242 = vld [vmem:[%s1 + $0x22e0] sm:$0xff]
  %v1243 = vld [vmem:[%s1 + $0x22e8] sm:$0xff]
  %v1244 = vld [vmem:[%s1 + $0x22f0] sm:$0xff]
  %v1245 = vld [vmem:[%s1 + $0x22f8] sm:$0xff]
  %v1246 = vld [vmem:[%s1 + $0x2300] sm:$0xff]
  %v1247 = vld [vmem:[%s1 + $0x2308] sm:$0xff]
  %v1248 = vld [vmem:[%s1 + $0x2310] sm:$0xff]
  %v1249 = vld [vmem:[%s1 + $0x2318] sm:$0xff]
  %v1250 = vld [vmem:[%s1 + $0x2320] sm:$0xff]
  %v1251 = vld [vmem:[%s1 + $0x2328] sm:$0xff]
  %v1252 = vld [vmem:[%s1 + $0x2330] sm:$0xff]
  %v1253 = vld [vmem:[%s1 + $0x2338] sm:$0xff]
  %v1254 = vld [vmem:[%s1 + $0x2340] sm:$0xff]
  %v1255 = vld [vmem:[%s1 + $0x2348] sm:$0xff]
  %v1256 = vld [vmem:[%s1 + $0x2350] sm:$0xff]
  %v1257 = vld [vmem:[%s1 + $0x2358] sm:$0xff]
  %v1258 = vld [vmem:[%s1 + $0x2360] sm:$0xff]
  %v1259 = vld [vmem:[%s1 + $0x2368] sm:$0xff]
  %v1260 = vld [vmem:[%s1 + $0x2370] sm:$0xff]
  %v1261 = vld [vmem:[%s1 + $0x2378] sm:$0xff]
  %v1262 = vld [vmem:[%s1 + $0x2380] sm:$0xff]
  %v1263 = vld [vmem:[%s1 + $0x2388] sm:$0xff]
  %v1264 = vld [vmem:[%s1 + $0x2390] sm:$0xff]
  %v1265 = vld [vmem:[%s1 + $0x2398] sm:$0xff]
  %v1266 = vld [vmem:[%s1 + $0x23a0] sm:$0xff]
  %v1267 = vld [vmem:[%s1 + $0x23a8] sm:$0xff]
  %v1268 = vld [vmem:[%s1 + $0x23b0] sm:$0xff]
  %v1269 = vld [vmem:[%s1 + $0x23b8] sm:$0xff]
  %v1270 = vld [vmem:[%s1 + $0x23c0] sm:$0xff]
  %v1271 = vld [vmem:[%s1 + $0x23c8] sm:$0xff]
  %v1272 = vld [vmem:[%s1 + $0x23d0] sm:$0xff]
  %v1273 = vld [vmem:[%s1 + $0x23d8] sm:$0xff]
  %v1274 = vld [vmem:[%s1 + $0x23e0] sm:$0xff]
  %v1275 = vld [vmem:[%s1 + $0x23e8] sm:$0xff]
  %v1276 = vld [vmem:[%s1 + $0x23f0] sm:$0xff]
  %v1277 = vld [vmem:[%s1 + $0x23f8] sm:$0xff]
  %v1278 = vld [vmem:[%s1 + $0x2400] sm:$0xff]
  %v1279 = vld [vmem:[%s1 + $0x2408] sm:$0xff]
  %v1280 = vld [vmem:[%s1 + $0x2410] sm:$0xff]
  %v1281 = vld [vmem:[%s1 + $0x2418] sm:$0xff]
  %v1282 = vld [vmem:[%s1 + $0x2420] sm:$0xff]
  %v1283 = vld [vmem:[%s1 + $0x2428] sm:$0xff]
  %v1284 = vld [vmem:[%s1 + $0x2430] sm:$0xff]
  %v1285 = vld [vmem:[%s1 + $0x2438] sm:$0xff]
  %v1286 = vld [vmem:[%s1 + $0x2440] sm:$0xff]
  %v1287 = vld [vmem:[%s1 + $0x2448] sm:$0xff]
  %v1288 = vld [vmem:[%s1 + $0x2450] sm:$0xff]
  %v1289 = vld [vmem:[%s1 + $0x2458] sm:$0xff]
  %v1290 = vld [vmem:[%s1 + $0x2460] sm:$0xff]
  %v1291 = vld [vmem:[%s1 + $0x2468] sm:$0xff]
  %v1292 = vld [vmem:[%s1 + $0x2470] sm:$0xff]
  %v1293 = vld [vmem:[%s1 + $0x2478] sm:$0xff]
  %v1294 = vld [vmem:[%s1 + $0x2480] sm:$0xff]
  %v1295 = vld [vmem:[%s1 + $0x2488] sm:$0xff]
  %v1296 = vld [vmem:[%s1 + $0x2490] sm:$0xff]
  %v1297 = vld [vmem:[%s1 + $0x2498] sm:$0xff]
  %v1298 = vld [vmem:[%s1 + $0x24a0] sm:$0xff]
  %v1299 = vld [vmem:[%s1 + $0x24a8] sm:$0xff]
  %v1300 = vld [vmem:[%s1 + $0x24b0] sm:$0xff]
  %v1301 = vld [vmem:[%s1 + $0x24b8] sm:$0xff]
  %v1302 = vld [vmem:[%s1 + $0x24c0] sm:$0xff]
  %v1303 = vld [vmem:[%s1 + $0x24c8] sm:$0xff]
  %v1304 = vld [vmem:[%s1 + $0x24d0] sm:$0xff]
  %v1305 = vld [vmem:[%s1 + $0x24d8] sm:$0xff]
  %v1306 = vld [vmem:[%s1 + $0x24e0] sm:$0xff]
  %v1307 = vld [vmem:[%s1 + $0x24e8] sm:$0xff]
  %v1308 = vld [vmem:[%s1 + $0x24f0] sm:$0xff]
  %v1309 = vld [vmem:[%s1 + $0x24f8] sm:$0xff]
  %v1310 = vld [vmem:[%s1 + $0x2500] sm:$0xff]
  %v1311 = vld [vmem:[%s1 + $0x2508] sm:$0xff]
  %v1312 = vld [vmem:[%s1 + $0x2510] sm:$0xff]
  %v1313 = vld [vmem:[%s1 + $0x2518] sm:$0xff]
  %v1314 = vld [vmem:[%s1 + $0x2520] sm:$0xff]
  %v1315 = vld [vmem:[%s1 + $0x2528] sm:$0xff]
  %v1316 = vld [vmem:[%s1 + $0x2530] sm:$0xff]
  %v1317 = vld [vmem:[%s1 + $0x2538] sm:$0xff]
  %v1318 = vld [vmem:[%s1 + $0x2540] sm:$0xff]
  %v1319 = vld [vmem:[%s1 + $0x2548] sm:$0xff]
  %v1320 = vld [vmem:[%s1 + $0x2550] sm:$0xff]
  %v1321 = vld [vmem:[%s1 + $0x2558] sm:$0xff]
  %v1322 = vld [vmem:[%s1 + $0x2560] sm:$0xff]
  %v1323 = vld [vmem:[%s1 + $0x2568] sm:$0xff]
  %v1324 = vld [vmem:[%s1 + $0x2570] sm:$0xff]
  %v1325 = vld [vmem:[%s1 + $0x2578] sm:$0xff]
  %v1326 = vld [vmem:[%s1 + $0x2580] sm:$0xff]
  %v1327 = vld [vmem:[%s1 + $0x2588] sm:$0xff]
  %v1328 = vld [vmem:[%s1 + $0x2590] sm:$0xff]
  %v1329 = vld [vmem:[%s1 + $0x2598] sm:$0xff]
  %v1330 = vld [vmem:[%s1 + $0x25a0] sm:$0xff]
  %v1331 = vld [vmem:[%s1 + $0x25a8] sm:$0xff]
  %v1332 = vld [vmem:[%s1 + $0x25b0] sm:$0xff]
  %v1333 = vld [vmem:[%s1 + $0x25b8] sm:$0xff]
  %v1334 = vld [vmem:[%s1 + $0x25c0] sm:$0xff]
  %v1335 = vld [vmem:[%s1 + $0x25c8] sm:$0xff]
  %v1336 = vld [vmem:[%s1 + $0x25d0] sm:$0xff]
  %v1337 = vld [vmem:[%s1 + $0x25d8] sm:$0xff]
  %v1338 = vld [vmem:[%s1 + $0x25e0] sm:$0xff]
  %v1339 = vld [vmem:[%s1 + $0x25e8] sm:$0xff]
  %v1340 = vld [vmem:[%s1 + $0x25f0] sm:$0xff]
  %v1341 = vld [vmem:[%s1 + $0x25f8] sm:$0xff]
  %v1342 = vld [vmem:[%s1 + $0x2600] sm:$0xff]
  %v1343 = vld [vmem:[%s1 + $0x2608] sm:$0xff]
  %v1344 = vld [vmem:[%s1 + $0x2610] sm:$0xff]
  %v1345 = vld [vmem:[%s1 + $0x2618] sm:$0xff]
  %v1346 = vld [vmem:[%s1 + $0x2620] sm:$0xff]
  %v1347 = vld [vmem:[%s1 + $0x2628] sm:$0xff]
  %v1348 = vld [vmem:[%s1 + $0x2630] sm:$0xff]
  %v1349 = vld [vmem:[%s1 + $0x2638] sm:$0xff]
  %v1350 = vld [vmem:[%s1 + $0x2640] sm:$0xff]
  %v1351 = vld [vmem:[%s1 + $0x2648] sm:$0xff]
  %v1352 = vld [vmem:[%s1 + $0x2650] sm:$0xff]
  %v1353 = vld [vmem:[%s1 + $0x2658] sm:$0xff]
  %v1354 = vld [vmem:[%s1 + $0x2660] sm:$0xff]
  %v1355 = vld [vmem:[%s1 + $0x2668] sm:$0xff]
  %v1356 = vld [vmem:[%s1 + $0x2670] sm:$0xff]
  %v1357 = vld [vmem:[%s1 + $0x2678] sm:$0xff]
  %v1358 = vld [vmem:[%s1 + $0x2680] sm:$0xff]
  %v1359 = vld [vmem:[%s1 + $0x2688] sm:$0xff]
  %v1360 = vld [vmem:[%s1 + $0x2690] sm:$0xff]
  %v1361 = vld [vmem:[%s1 + $0x2698] sm:$0xff]
  %v1362 = vld [vmem:[%s1 + $0x26a0] sm:$0xff]
  %v1363 = vld [vmem:[%s1 + $0x26a8] sm:$0xff]
  %v1364 = vld [vmem:[%s1 + $0x26b0] sm:$0xff]
  %v1365 = vld [vmem:[%s1 + $0x26b8] sm:$0xff]
  %v1366 = vld [vmem:[%s1 + $0x26c0] sm:$0xff]
  %v1367 = vld [vmem:[%s1 + $0x26c8] sm:$0xff]
  %v1368 = vld [vmem:[%s1 + $0x26d0] sm:$0xff]
  %v1369 = vld [vmem:[%s1 + $0x26d8] sm:$0xff]
  %v1370 = vld [vmem:[%s1 + $0x26e0] sm:$0xff]
  %v1371 = vld [vmem:[%s1 + $0x26e8] sm:$0xff]
  %v1372 = vld [vmem:[%s1 + $0x26f0] sm:$0xff]
  %v1373 = vld [vmem:[%s1 + $0x26f8] sm:$0xff]
  %v1374 = vld [vmem:[%s1 + $0x2700] sm:$0xff]
  %v1375 = vld [vmem:[%s1 + $0x2708] sm:$0xff]
  %v1376 = vld [vmem:[%s1 + $0x2710] sm:$0xff]
  %v1377 = vld [vmem:[%s1 + $0x2718] sm:$0xff]
  %v1378 = vld [vmem:[%s1 + $0x2720] sm:$0xff]
  %v1379 = vld [vmem:[%s1 + $0x2728] sm:$0xff]
  %v1380 = vld [vmem:[%s1 + $0x2730] sm:$0xff]
  %v1381 = vld [vmem:[%s1 + $0x2738] sm:$0xff]
  %v1382 = vld [vmem:[%s1 + $0x2740] sm:$0xff]
  %v1383 = vld [vmem:[%s1 + $0x2748] sm:$0xff]
  %v1384 = vld [vmem:[%s1 + $0x2750] sm:$0xff]
  %v1385 = vld [vmem:[%s1 + $0x2758] sm:$0xff]
  %v1386 = vld [vmem:[%s1 + $0x2760] sm:$0xff]
  %v1387 = vld [vmem:[%s1 + $0x2768] sm:$0xff]
  %v1388 = vld [vmem:[%s1 + $0x2770] sm:$0xff]
  %v1389 = vld [vmem:[%s1 + $0x2778] sm:$0xff]
  %v1390 = vld [vmem:[%s1 + $0x2780] sm:$0xff]
  %v1391 = vld [vmem:[%s1 + $0x2788] sm:$0xff]
  %v1392 = vld [vmem:[%s1 + $0x2790] sm:$0xff]
  %v1393 = vld [vmem:[%s1 + $0x2798] sm:$0xff]
  %v1394 = vld [vmem:[%s1 + $0x27a0] sm:$0xff]
  %v1395 = vld [vmem:[%s1 + $0x27a8] sm:$0xff]
  %v1396 = vld [vmem:[%s1 + $0x27b0] sm:$0xff]
  %v1397 = vld [vmem:[%s1 + $0x27b8] sm:$0xff]
  %v1398 = vld [vmem:[%s1 + $0x27c0] sm:$0xff]
  %v1399 = vld [vmem:[%s1 + $0x27c8] sm:$0xff]
  %v1400 = vld [vmem:[%s1 + $0x27d0] sm:$0xff]
  %v1401 = vld [vmem:[%s1 + $0x27d8] sm:$0xff]
  %v1402 = vld [vmem:[%s1 + $0x27e0] sm:$0xff]
  %v1403 = vld [vmem:[%s1 + $0x27e8] sm:$0xff]
  %v1404 = vld [vmem:[%s1 + $0x27f0] sm:$0xff]
  %v1405 = vld [vmem:[%s1 + $0x27f8] sm:$0xff]
  %v1406 = vld [vmem:[%s1 + $0x2800] sm:$0xff]
  %v1407 = vld [vmem:[%s1 + $0x2808] sm:$0xff]
  %v1408 = vld [vmem:[%s1 + $0x2810] sm:$0xff]
  %v1409 = vld [vmem:[%s1 + $0x2818] sm:$0xff]
  %v1410 = vld [vmem:[%s1 + $0x2820] sm:$0xff]
  %v1411 = vld [vmem:[%s1 + $0x2828] sm:$0xff]
  %v1412 = vld [vmem:[%s1 + $0x2830] sm:$0xff]
  %v1413 = vld [vmem:[%s1 + $0x2838] sm:$0xff]
  %v1414 = vld [vmem:[%s1 + $0x2840] sm:$0xff]
  %v1415 = vld [vmem:[%s1 + $0x2848] sm:$0xff]
  %v1416 = vld [vmem:[%s1 + $0x2850] sm:$0xff]
  %v1417 = vld [vmem:[%s1 + $0x2858] sm:$0xff]
  %v1418 = vld [vmem:[%s1 + $0x2860] sm:$0xff]
  %v1419 = vld [vmem:[%s1 + $0x2868] sm:$0xff]
  %v1420 = vld [vmem:[%s1 + $0x2870] sm:$0xff]
  %v1421 = vld [vmem:[%s1 + $0x2878] sm:$0xff]
  %v1422 = vld [vmem:[%s1 + $0x2880] sm:$0xff]
  %v1423 = vld [vmem:[%s1 + $0x2888] sm:$0xff]
  %v1424 = vld [vmem:[%s1 + $0x2890] sm:$0xff]
  %v1425 = vld [vmem:[%s1 + $0x2898] sm:$0xff]
  %v1426 = vld [vmem:[%s1 + $0x28a0] sm:$0xff]
  %v1427 = vld [vmem:[%s1 + $0x28a8] sm:$0xff]
  %v1428 = vld [vmem:[%s1 + $0x28b0] sm:$0xff]
  %v1429 = vld [vmem:[%s1 + $0x28b8] sm:$0xff]
  %v1430 = vld [vmem:[%s1 + $0x28c0] sm:$0xff]
  %v1431 = vld [vmem:[%s1 + $0x28c8] sm:$0xff]
  %v1432 = vld [vmem:[%s1 + $0x28d0] sm:$0xff]
  %v1433 = vld [vmem:[%s1 + $0x28d8] sm:$0xff]
  %v1434 = vld [vmem:[%s1 + $0x28e0] sm:$0xff]
  %v1435 = vld [vmem:[%s1 + $0x28e8] sm:$0xff]
  %v1436 = vld [vmem:[%s1 + $0x28f0] sm:$0xff]
  %v1437 = vld [vmem:[%s1 + $0x28f8] sm:$0xff]
  %v1438 = vld [vmem:[%s1 + $0x2900] sm:$0xff]
  %v1439 = vld [vmem:[%s1 + $0x2908] sm:$0xff]
  %v1440 = vld [vmem:[%s1 + $0x2910] sm:$0xff]
  %v1441 = vld [vmem:[%s1 + $0x2918] sm:$0xff]
  %v1442 = vld [vmem:[%s1 + $0x2920] sm:$0xff]
  %v1443 = vld [vmem:[%s1 + $0x2928] sm:$0xff]
  %v1444 = vld [vmem:[%s1 + $0x2930] sm:$0xff]
  %v1445 = vld [vmem:[%s1 + $0x2938] sm:$0xff]
  %v1446 = vld [vmem:[%s1 + $0x2940] sm:$0xff]
  %v1447 = vld [vmem:[%s1 + $0x2948] sm:$0xff]
  %v1448 = vld [vmem:[%s1 + $0x2950] sm:$0xff]
  %v1449 = vld [vmem:[%s1 + $0x2958] sm:$0xff]
  %v1450 = vld [vmem:[%s1 + $0x2960] sm:$0xff]
  %v1451 = vld [vmem:[%s1 + $0x2968] sm:$0xff]
  %v1452 = vld [vmem:[%s1 + $0x2970] sm:$0xff]
  %v1453 = vld [vmem:[%s1 + $0x2978] sm:$0xff]
  %v1454 = vld [vmem:[%s1 + $0x2980] sm:$0xff]
  %v1455 = vld [vmem:[%s1 + $0x2988] sm:$0xff]
  %v1456 = vld [vmem:[%s1 + $0x2990] sm:$0xff]
  %v1457 = vld [vmem:[%s1 + $0x2998] sm:$0xff]
  %v1458 = vld [vmem:[%s1 + $0x29a0] sm:$0xff]
  %v1459 = vld [vmem:[%s1 + $0x29a8] sm:$0xff]
  %v1460 = vld [vmem:[%s1 + $0x29b0] sm:$0xff]
  %v1461 = vld [vmem:[%s1 + $0x29b8] sm:$0xff]
  %v1462 = vld [vmem:[%s1 + $0x29c0] sm:$0xff]
  %v1463 = vld [vmem:[%s1 + $0x29c8] sm:$0xff]
  %v1464 = vld [vmem:[%s1 + $0x29d0] sm:$0xff]
  %v1465 = vld [vmem:[%s1 + $0x29d8] sm:$0xff]
  %v1466 = vld [vmem:[%s1 + $0x29e0] sm:$0xff]
  %v1467 = vld [vmem:[%s1 + $0x29e8] sm:$0xff]
  %v1468 = vld [vmem:[%s1 + $0x29f0] sm:$0xff]
  %v1469 = vld [vmem:[%s1 + $0x29f8] sm:$0xff]
  %v1470 = vld [vmem:[%s1 + $0x2a00] sm:$0xff]
  %v1471 = vld [vmem:[%s1 + $0x2a08] sm:$0xff]
  %v1472 = vld [vmem:[%s1 + $0x2a10] sm:$0xff]
  %v1473 = vld [vmem:[%s1 + $0x2a18] sm:$0xff]
  %v1474 = vld [vmem:[%s1 + $0x2a20] sm:$0xff]
  %v1475 = vld [vmem:[%s1 + $0x2a28] sm:$0xff]
  %v1476 = vld [vmem:[%s1 + $0x2a30] sm:$0xff]
  %v1477 = vld [vmem:[%s1 + $0x2a38] sm:$0xff]
  %v1478 = vld [vmem:[%s1 + $0x2a40] sm:$0xff]
  %v1479 = vld [vmem:[%s1 + $0x2a48] sm:$0xff]
  %v1480 = vld [vmem:[%s1 + $0x2a50] sm:$0xff]
  %v1481 = vld [vmem:[%s1 + $0x2a58] sm:$0xff]
  %v1482 = vld [vmem:[%s1 + $0x2a60] sm:$0xff]
  %v1483 = vld [vmem:[%s1 + $0x2a68] sm:$0xff]
  %v1484 = vld [vmem:[%s1 + $0x2a70] sm:$0xff]
  %v1485 = vld [vmem:[%s1 + $0x2a78] sm:$0xff]
  %v1486 = vld [vmem:[%s1 + $0x2a80] sm:$0xff]
  %v1487 = vld [vmem:[%s1 + $0x2a88] sm:$0xff]
  %v1488 = vld [vmem:[%s1 + $0x2a90] sm:$0xff]
  %v1489 = vld [vmem:[%s1 + $0x2a98] sm:$0xff]
  %v1490 = vld [vmem:[%s1 + $0x2aa0] sm:$0xff]
  %v1491 = vld [vmem:[%s1 + $0x2aa8] sm:$0xff]
  %v1492 = vld [vmem:[%s1 + $0x2ab0] sm:$0xff]
  %v1493 = vld [vmem:[%s1 + $0x2ab8] sm:$0xff]
  %v1494 = vld [vmem:[%s1 + $0x2ac0] sm:$0xff]
  %v1495 = vld [vmem:[%s1 + $0x2ac8] sm:$0xff]
  %v1496 = vld [vmem:[%s1 + $0x2ad0] sm:$0xff]
  %v1497 = vld [vmem:[%s1 + $0x2ad8] sm:$0xff]
  %v1498 = vld [vmem:[%s1 + $0x2ae0] sm:$0xff]
  %v1499 = vld [vmem:[%s1 + $0x2ae8] sm:$0xff]
  %v1500 = vld [vmem:[%s1 + $0x2af0] sm:$0xff]
  %v1501 = vld [vmem:[%s1 + $0x2af8] sm:$0xff]
  %v1502 = vld [vmem:[%s1 + $0x2b00] sm:$0xff]
  %v1503 = vld [vmem:[%s1 + $0x2b08] sm:$0xff]
  %v1504 = vld [vmem:[%s1 + $0x2b10] sm:$0xff]
  %v1505 = vld [vmem:[%s1 + $0x2b18] sm:$0xff]
  %v1506 = vld [vmem:[%s1 + $0x2b20] sm:$0xff]
  %v1507 = vld [vmem:[%s1 + $0x2b28] sm:$0xff]
  %v1508 = vld [vmem:[%s1 + $0x2b30] sm:$0xff]
  %v1509 = vld [vmem:[%s1 + $0x2b38] sm:$0xff]
  %v1510 = vld [vmem:[%s1 + $0x2b40] sm:$0xff]
  %v1511 = vld [vmem:[%s1 + $0x2b48] sm:$0xff]
  %v1512 = vld [vmem:[%s1 + $0x2b50] sm:$0xff]
  %v1513 = vld [vmem:[%s1 + $0x2b58] sm:$0xff]
  %v1514 = vld [vmem:[%s1 + $0x2b60] sm:$0xff]
  %v1515 = vld [vmem:[%s1 + $0x2b68] sm:$0xff]
  %v1516 = vld [vmem:[%s1 + $0x2b70] sm:$0xff]
  %v1517 = vld [vmem:[%s1 + $0x2b78] sm:$0xff]
  %v1518 = vld [vmem:[%s1 + $0x2b80] sm:$0xff]
  %v1519 = vld [vmem:[%s1 + $0x2b88] sm:$0xff]
  %v1520 = vld [vmem:[%s1 + $0x2b90] sm:$0xff]
  %v1521 = vld [vmem:[%s1 + $0x2b98] sm:$0xff]
  %v1522 = vld [vmem:[%s1 + $0x2ba0] sm:$0xff]
  %v1523 = vld [vmem:[%s1 + $0x2ba8] sm:$0xff]
  %v1524 = vld [vmem:[%s1 + $0x2bb0] sm:$0xff]
  %v1525 = vld [vmem:[%s1 + $0x2bb8] sm:$0xff]
  %v1526 = vld [vmem:[%s1 + $0x2bc0] sm:$0xff]
  %v1527 = vld [vmem:[%s1 + $0x2bc8] sm:$0xff]
  %v1528 = vld [vmem:[%s1 + $0x2bd0] sm:$0xff]
  %v1529 = vld [vmem:[%s1 + $0x2bd8] sm:$0xff]
  %v1530 = vld [vmem:[%s1 + $0x2be0] sm:$0xff]
  %v1531 = vld [vmem:[%s1 + $0x2be8] sm:$0xff]
  %v1532 = vld [vmem:[%s1 + $0x2bf0] sm:$0xff]
  %v1533 = vld [vmem:[%s1 + $0x2bf8] sm:$0xff]
  %v1534 = vld [vmem:[%s1 + $0x2c00] sm:$0xff]
  %v1535 = vld [vmem:[%s1 + $0x2c08] sm:$0xff]
  %v1536 = vld [vmem:[%s1 + $0x2c10] sm:$0xff]
  %v1537 = vld [vmem:[%s1 + $0x2c18] sm:$0xff]
  %v1538 = vld [vmem:[%s1 + $0x2c20] sm:$0xff]
  %v1539 = vld [vmem:[%s1 + $0x2c28] sm:$0xff]
  %v1540 = vld [vmem:[%s1 + $0x2c30] sm:$0xff]
  %v1541 = vld [vmem:[%s1 + $0x2c38] sm:$0xff]
  %v1542 = vld [vmem:[%s1 + $0x2c40] sm:$0xff]
  %v1543 = vld [vmem:[%s1 + $0x2c48] sm:$0xff]
  %v1544 = vld [vmem:[%s1 + $0x2c50] sm:$0xff]
  %v1545 = vld [vmem:[%s1 + $0x2c58] sm:$0xff]
  %v1546 = vld [vmem:[%s1 + $0x2c60] sm:$0xff]
  %v1547 = vld [vmem:[%s1 + $0x2c68] sm:$0xff]
  %v1548 = vld [vmem:[%s1 + $0x2c70] sm:$0xff]
  %v1549 = vld [vmem:[%s1 + $0x2c78] sm:$0xff]
  %v1550 = vld [vmem:[%s1 + $0x2c80] sm:$0xff]
  %v1551 = vld [vmem:[%s1 + $0x2c88] sm:$0xff]
  %v1552 = vld [vmem:[%s1 + $0x2c90] sm:$0xff]
  %v1553 = vld [vmem:[%s1 + $0x2c98] sm:$0xff]
  %v1554 = vld [vmem:[%s1 + $0x2ca0] sm:$0xff]
  %v1555 = vld [vmem:[%s1 + $0x2ca8] sm:$0xff]
  %v1556 = vld [vmem:[%s1 + $0x2cb0] sm:$0xff]
  %v1557 = vld [vmem:[%s1 + $0x2cb8] sm:$0xff]
  %v1558 = vld [vmem:[%s1 + $0x2cc0] sm:$0xff]
  %v1559 = vld [vmem:[%s1 + $0x2cc8] sm:$0xff]
  %v1560 = vld [vmem:[%s1 + $0x2cd0] sm:$0xff]
  %v1561 = vld [vmem:[%s1 + $0x2cd8] sm:$0xff]
  %v1562 = vld [vmem:[%s1 + $0x2ce0] sm:$0xff]
  %v1563 = vld [vmem:[%s1 + $0x2ce8] sm:$0xff]
  %v1564 = vld [vmem:[%s1 + $0x2cf0] sm:$0xff]
  %v1565 = vld [vmem:[%s1 + $0x2cf8] sm:$0xff]
  %v1566 = vld [vmem:[%s1 + $0x2d00] sm:$0xff]
  %v1567 = vld [vmem:[%s1 + $0x2d08] sm:$0xff]
  %v1568 = vld [vmem:[%s1 + $0x2d10] sm:$0xff]
  %v1569 = vld [vmem:[%s1 + $0x2d18] sm:$0xff]
  %v1570 = vld [vmem:[%s1 + $0x2d20] sm:$0xff]
  %v1571 = vld [vmem:[%s1 + $0x2d28] sm:$0xff]
  %v1572 = vld [vmem:[%s1 + $0x2d30] sm:$0xff]
  %v1573 = vld [vmem:[%s1 + $0x2d38] sm:$0xff]
  %v1574 = vld [vmem:[%s1 + $0x2d40] sm:$0xff]
  %v1575 = vld [vmem:[%s1 + $0x2d48] sm:$0xff]
  %v1576 = vld [vmem:[%s1 + $0x2d50] sm:$0xff]
  %v1577 = vld [vmem:[%s1 + $0x2d58] sm:$0xff]
  %v1578 = vld [vmem:[%s1 + $0x2d60] sm:$0xff]
  %v1579 = vld [vmem:[%s1 + $0x2d68] sm:$0xff]
  %v1580 = vld [vmem:[%s1 + $0x2d70] sm:$0xff]
  %v1581 = vld [vmem:[%s1 + $0x2d78] sm:$0xff]
  %v1582 = vld [vmem:[%s1 + $0x2d80] sm:$0xff]
  %v1583 = vld [vmem:[%s1 + $0x2d88] sm:$0xff]
  %v1584 = vld [vmem:[%s1 + $0x2d90] sm:$0xff]
  %v1585 = vld [vmem:[%s1 + $0x2d98] sm:$0xff]
  %v1586 = vld [vmem:[%s1 + $0x2da0] sm:$0xff]
  %v1587 = vld [vmem:[%s1 + $0x2da8] sm:$0xff]
  %v1588 = vld [vmem:[%s1 + $0x2db0] sm:$0xff]
  %v1589 = vld [vmem:[%s1 + $0x2db8] sm:$0xff]
  %v1590 = vld [vmem:[%s1 + $0x2dc0] sm:$0xff]
  %v1591 = vld [vmem:[%s1 + $0x2dc8] sm:$0xff]
  %v1592 = vld [vmem:[%s1 + $0x2dd0] sm:$0xff]
  %v1593 = vld [vmem:[%s1 + $0x2dd8] sm:$0xff]
  %v1594 = vld [vmem:[%s1 + $0x2de0] sm:$0xff]
  %v1595 = vld [vmem:[%s1 + $0x2de8] sm:$0xff]
  %v1596 = vld [vmem:[%s1 + $0x2df0] sm:$0xff]
  %v1597 = vld [vmem:[%s1 + $0x2df8] sm:$0xff]
  %v1598 = vld [vmem:[%s1 + $0x2e00] sm:$0xff]
  %v1599 = vld [vmem:[%s1 + $0x2e08] sm:$0xff]
  %v1600 = vld [vmem:[%s1 + $0x2e10] sm:$0xff]
  %v1601 = vld [vmem:[%s1 + $0x2e18] sm:$0xff]
  %v1602 = vld [vmem:[%s1 + $0x2e20] sm:$0xff]
  %v1603 = vld [vmem:[%s1 + $0x2e28] sm:$0xff]
  %v1604 = vld [vmem:[%s1 + $0x2e30] sm:$0xff]
  %v1605 = vld [vmem:[%s1 + $0x2e38] sm:$0xff]
  %v1606 = vld [vmem:[%s1 + $0x2e40] sm:$0xff]
  %v1607 = vld [vmem:[%s1 + $0x2e48] sm:$0xff]
  %v1608 = vld [vmem:[%s1 + $0x2e50] sm:$0xff]
  %v1609 = vld [vmem:[%s1 + $0x2e58] sm:$0xff]
  %v1610 = vld [vmem:[%s1 + $0x2e60] sm:$0xff]
  %v1611 = vld [vmem:[%s1 + $0x2e68] sm:$0xff]
  %v1612 = vld [vmem:[%s1 + $0x2e70] sm:$0xff]
  %v1613 = vld [vmem:[%s1 + $0x2e78] sm:$0xff]
  %v1614 = vld [vmem:[%s1 + $0x2e80] sm:$0xff]
  %v1615 = vld [vmem:[%s1 + $0x2e88] sm:$0xff]
  %v1616 = vld [vmem:[%s1 + $0x2e90] sm:$0xff]
  %v1617 = vld [vmem:[%s1 + $0x2e98] sm:$0xff]
  %v1618 = vld [vmem:[%s1 + $0x2ea0] sm:$0xff]
  %v1619 = vld [vmem:[%s1 + $0x2ea8] sm:$0xff]
  %v1620 = vld [vmem:[%s1 + $0x2eb0] sm:$0xff]
  %v1621 = vld [vmem:[%s1 + $0x2eb8] sm:$0xff]
  %v1622 = vld [vmem:[%s1 + $0x2ec0] sm:$0xff]
  %v1623 = vld [vmem:[%s1 + $0x2ec8] sm:$0xff]
  %v1624 = vld [vmem:[%s1 + $0x2ed0] sm:$0xff]
  %v1625 = vld [vmem:[%s1 + $0x2ed8] sm:$0xff]
  %v1626 = vld [vmem:[%s1 + $0x2ee0] sm:$0xff]
  %v1627 = vld [vmem:[%s1 + $0x2ee8] sm:$0xff]
  %v1628 = vld [vmem:[%s1 + $0x2ef0] sm:$0xff]
  %v1629 = vld [vmem:[%s1 + $0x2ef8] sm:$0xff]
  %v1630 = vld [vmem:[%s1 + $0x2f00] sm:$0xff]
  %v1631 = vld [vmem:[%s1 + $0x2f08] sm:$0xff]
  %v1632 = vld [vmem:[%s1 + $0x2f10] sm:$0xff]
  %v1633 = vld [vmem:[%s1 + $0x2f18] sm:$0xff]
  %v1634 = vld [vmem:[%s1 + $0x2f20] sm:$0xff]
  %v1635 = vld [vmem:[%s1 + $0x2f28] sm:$0xff]
  %v1636 = vld [vmem:[%s1 + $0x2f30] sm:$0xff]
  %v1637 = vld [vmem:[%s1 + $0x2f38] sm:$0xff]
  %v1638 = vld [vmem:[%s1 + $0x2f40] sm:$0xff]
  %v1639 = vld [vmem:[%s1 + $0x2f48] sm:$0xff]
  %v1640 = vld [vmem:[%s1 + $0x2f50] sm:$0xff]
  %v1641 = vld [vmem:[%s1 + $0x2f58] sm:$0xff]
  %v1642 = vld [vmem:[%s1 + $0x2f60] sm:$0xff]
  %v1643 = vld [vmem:[%s1 + $0x2f68] sm:$0xff]
  %v1644 = vld [vmem:[%s1 + $0x2f70] sm:$0xff]
  %v1645 = vld [vmem:[%s1 + $0x2f78] sm:$0xff]
  %v1646 = vld [vmem:[%s1 + $0x2f80] sm:$0xff]
  %v1647 = vld [vmem:[%s1 + $0x2f88] sm:$0xff]
  %v1648 = vld [vmem:[%s1 + $0x2f90] sm:$0xff]
  %v1649 = vld [vmem:[%s1 + $0x2f98] sm:$0xff]
  %v1650 = vld [vmem:[%s1 + $0x2fa0] sm:$0xff]
  %v1651 = vld [vmem:[%s1 + $0x2fa8] sm:$0xff]
  %v1652 = vld [vmem:[%s1 + $0x2fb0] sm:$0xff]
  %v1653 = vld [vmem:[%s1 + $0x2fb8] sm:$0xff]
  %v1654 = vld [vmem:[%s1 + $0x2fc0] sm:$0xff]
  %v1655 = vld [vmem:[%s1 + $0x2fc8] sm:$0xff]
  %v1656 = vld [vmem:[%s1 + $0x2fd0] sm:$0xff]
  %v1657 = vld [vmem:[%s1 + $0x2fd8] sm:$0xff]
  %v1658 = vld [vmem:[%s1 + $0x2fe0] sm:$0xff]
  %v1659 = vld [vmem:[%s1 + $0x2fe8] sm:$0xff]
  %v1660 = vld [vmem:[%s1 + $0x2ff0] sm:$0xff]
  %v1661 = vld [vmem:[%s1 + $0x2ff8] sm:$0xff]
  %v1662 = vld [vmem:[%s1 + $0x3000] sm:$0xff]
  %v1663 = vld [vmem:[%s1 + $0x3008] sm:$0xff]
  %v1664 = vld [vmem:[%s1 + $0x3010] sm:$0xff]
  %v1665 = vld [vmem:[%s1 + $0x3018] sm:$0xff]
  %v1666 = vld [vmem:[%s1 + $0x3020] sm:$0xff]
  %v1667 = vld [vmem:[%s1 + $0x3028] sm:$0xff]
  %v1668 = vld [vmem:[%s1 + $0x3030] sm:$0xff]
  %v1669 = vld [vmem:[%s1 + $0x3038] sm:$0xff]
  %v1670 = vld [vmem:[%s1 + $0x3040] sm:$0xff]
  %v1671 = vld [vmem:[%s1 + $0x3048] sm:$0xff]
  %v1672 = vld [vmem:[%s1 + $0x3050] sm:$0xff]
  %v1673 = vld [vmem:[%s1 + $0x3058] sm:$0xff]
  %v1674 = vld [vmem:[%s1 + $0x3060] sm:$0xff]
  %v1675 = vld [vmem:[%s1 + $0x3068] sm:$0xff]
  %v1676 = vld [vmem:[%s1 + $0x3070] sm:$0xff]
  %v1677 = vld [vmem:[%s1 + $0x3078] sm:$0xff]
  %v1678 = vld [vmem:[%s1 + $0x3080] sm:$0xff]
  %v1679 = vld [vmem:[%s1 + $0x3088] sm:$0xff]
  %v1680 = vld [vmem:[%s1 + $0x3090] sm:$0xff]
  %v1681 = vld [vmem:[%s1 + $0x3098] sm:$0xff]
  %v1682 = vld [vmem:[%s1 + $0x30a0] sm:$0xff]
  %v1683 = vld [vmem:[%s1 + $0x30a8] sm:$0xff]
  %v1684 = vld [vmem:[%s1 + $0x30b0] sm:$0xff]
  %v1685 = vld [vmem:[%s1 + $0x30b8] sm:$0xff]
  %v1686 = vld [vmem:[%s1 + $0x30c0] sm:$0xff]
  %v1687 = vld [vmem:[%s1 + $0x30c8] sm:$0xff]
  %v1688 = vld [vmem:[%s1 + $0x30d0] sm:$0xff]
  %v1689 = vld [vmem:[%s1 + $0x30d8] sm:$0xff]
  %v1690 = vld [vmem:[%s1 + $0x30e0] sm:$0xff]
  %v1691 = vld [vmem:[%s1 + $0x30e8] sm:$0xff]
  %v1692 = vld [vmem:[%s1 + $0x30f0] sm:$0xff]
  %v1693 = vld [vmem:[%s1 + $0x30f8] sm:$0xff]
  %v1694 = vld [vmem:[%s2] sm:$0x1]
  %v1696 = vperm.slane %v1694, 0
  %1698 = vmatpush.msra.mxu0 %v141
  %1699 = vmatpush.msra.mxu0 %v140
  %1700 = vmatpush.msra.mxu0 %v139
  %1701 = vmatpush.msra.mxu0 %v138
  %1702 = vmatpush.msra.mxu0 %v137
  %1703 = vmatpush.msra.mxu0 %v136
  %1704 = vmatpush.msra.mxu0 %v135
  %1705 = vmatpush.msra.mxu0 %v134
  %1706 = vmatpush.msra.mxu0 %v133
  %1707 = vmatpush.msra.mxu0 %v132
  %1708 = vmatpush.msra.mxu0 %v131
  %1709 = vmatpush.msra.mxu0 %v130
  %1710 = vmatpush.msra.mxu0 %v129
  %1711 = vmatpush.msra.mxu0 %v128
  %1712 = vmatpush.msra.mxu0 %v127
  %1713 = vmatpush.msra.mxu0 %v126
  %1714 = vmatmul.f32.gmra.mxu0 %v28
  %v1715 = vpop.f32.mrf.mxu0
  %v1716 = vadd.f32 %v1696, %v1715
  %1717 = vdwg.mxu0
  %1718 = vmatpush.msra.mxu0 %v157
  %1719 = vmatpush.msra.mxu0 %v156
  %1720 = vmatpush.msra.mxu0 %v155
  %1721 = vmatpush.msra.mxu0 %v154
  %1722 = vmatpush.msra.mxu0 %v153
  %1723 = vmatpush.msra.mxu0 %v152
  %1724 = vmatpush.msra.mxu0 %v151
  %1725 = vmatpush.msra.mxu0 %v150
  %1726 = vmatpush.msra.mxu0 %v149
  %1727 = vmatpush.msra.mxu0 %v148
  %1728 = vmatpush.msra.mxu0 %v147
  %1729 = vmatpush.msra.mxu0 %v146
  %1730 = vmatpush.msra.mxu0 %v145
  %1731 = vmatpush.msra.mxu0 %v144
  %1732 = vmatpush.msra.mxu0 %v143
  %1733 = vmatpush.msra.mxu0 %v142
  %1734 = vmatmul.f32.gmra.mxu0 %v29
  %v1735 = vpop.f32.mrf.mxu0
  %v1736 = vadd.f32 %v1716, %v1735
  %1737 = vdwg.mxu0
  %1738 = vmatpush.msra.mxu0 %v173
  %1739 = vmatpush.msra.mxu0 %v172
  %1740 = vmatpush.msra.mxu0 %v171
  %1741 = vmatpush.msra.mxu0 %v170
  %1742 = vmatpush.msra.mxu0 %v169
  %1743 = vmatpush.msra.mxu0 %v168
  %1744 = vmatpush.msra.mxu0 %v167
  %1745 = vmatpush.msra.mxu0 %v166
  %1746 = vmatpush.msra.mxu0 %v165
  %1747 = vmatpush.msra.mxu0 %v164
  %1748 = vmatpush.msra.mxu0 %v163
  %1749 = vmatpush.msra.mxu0 %v162
  %1750 = vmatpush.msra.mxu0 %v161
  %1751 = vmatpush.msra.mxu0 %v160
  %1752 = vmatpush.msra.mxu0 %v159
  %1753 = vmatpush.msra.mxu0 %v158
  %1754 = vmatmul.f32.gmra.mxu0 %v30
  %v1755 = vpop.f32.mrf.mxu0
  %v1756 = vadd.f32 %v1736, %v1755
  %1757 = vdwg.mxu0
  %1758 = vmatpush.msra.mxu0 %v189
  %1759 = vmatpush.msra.mxu0 %v188
  %1760 = vmatpush.msra.mxu0 %v187
  %1761 = vmatpush.msra.mxu0 %v186
  %1762 = vmatpush.msra.mxu0 %v185
  %1763 = vmatpush.msra.mxu0 %v184
  %1764 = vmatpush.msra.mxu0 %v183
  %1765 = vmatpush.msra.mxu0 %v182
  %1766 = vmatpush.msra.mxu0 %v181
  %1767 = vmatpush.msra.mxu0 %v180
  %1768 = vmatpush.msra.mxu0 %v179
  %1769 = vmatpush.msra.mxu0 %v178
  %1770 = vmatpush.msra.mxu0 %v177
  %1771 = vmatpush.msra.mxu0 %v176
  %1772 = vmatpush.msra.mxu0 %v175
  %1773 = vmatpush.msra.mxu0 %v174
  %1774 = vmatmul.f32.gmra.mxu0 %v31
  %v1775 = vpop.f32.mrf.mxu0
  %v1776 = vadd.f32 %v1756, %v1775
  %1777 = vdwg.mxu0
  %1778 = vmatpush.msra.mxu0 %v205
  %1779 = vmatpush.msra.mxu0 %v204
  %1780 = vmatpush.msra.mxu0 %v203
  %1781 = vmatpush.msra.mxu0 %v202
  %1782 = vmatpush.msra.mxu0 %v201
  %1783 = vmatpush.msra.mxu0 %v200
  %1784 = vmatpush.msra.mxu0 %v199
  %1785 = vmatpush.msra.mxu0 %v198
  %1786 = vmatpush.msra.mxu0 %v197
  %1787 = vmatpush.msra.mxu0 %v196
  %1788 = vmatpush.msra.mxu0 %v195
  %1789 = vmatpush.msra.mxu0 %v194
  %1790 = vmatpush.msra.mxu0 %v193
  %1791 = vmatpush.msra.mxu0 %v192
  %1792 = vmatpush.msra.mxu0 %v191
  %1793 = vmatpush.msra.mxu0 %v190
  %1794 = vmatmul.f32.gmra.mxu0 %v32
  %v1795 = vpop.f32.mrf.mxu0
  %v1796 = vadd.f32 %v1776, %v1795
  %1797 = vdwg.mxu0
  %1798 = vmatpush.msra.mxu0 %v221
  %1799 = vmatpush.msra.mxu0 %v220
  %1800 = vmatpush.msra.mxu0 %v219
  %1801 = vmatpush.msra.mxu0 %v218
  %1802 = vmatpush.msra.mxu0 %v217
  %1803 = vmatpush.msra.mxu0 %v216
  %1804 = vmatpush.msra.mxu0 %v215
  %1805 = vmatpush.msra.mxu0 %v214
  %1806 = vmatpush.msra.mxu0 %v213
  %1807 = vmatpush.msra.mxu0 %v212
  %1808 = vmatpush.msra.mxu0 %v211
  %1809 = vmatpush.msra.mxu0 %v210
  %1810 = vmatpush.msra.mxu0 %v209
  %1811 = vmatpush.msra.mxu0 %v208
  %1812 = vmatpush.msra.mxu0 %v207
  %1813 = vmatpush.msra.mxu0 %v206
  %1814 = vmatmul.f32.gmra.mxu0 %v33
  %v1815 = vpop.f32.mrf.mxu0
  %v1816 = vadd.f32 %v1796, %v1815
  %1817 = vdwg.mxu0
  %1818 = vmatpush.msra.mxu0 %v237
  %1819 = vmatpush.msra.mxu0 %v236
  %1820 = vmatpush.msra.mxu0 %v235
  %1821 = vmatpush.msra.mxu0 %v234
  %1822 = vmatpush.msra.mxu0 %v233
  %1823 = vmatpush.msra.mxu0 %v232
  %1824 = vmatpush.msra.mxu0 %v231
  %1825 = vmatpush.msra.mxu0 %v230
  %1826 = vmatpush.msra.mxu0 %v229
  %1827 = vmatpush.msra.mxu0 %v228
  %1828 = vmatpush.msra.mxu0 %v227
  %1829 = vmatpush.msra.mxu0 %v226
  %1830 = vmatpush.msra.mxu0 %v225
  %1831 = vmatpush.msra.mxu0 %v224
  %1832 = vmatpush.msra.mxu0 %v223
  %1833 = vmatpush.msra.mxu0 %v222
  %1834 = vmatmul.f32.gmra.mxu0 %v34
  %v1835 = vpop.f32.mrf.mxu0
  %v1836 = vadd.f32 %v1816, %v1835
  %1837 = vdwg.mxu0
  %1838 = vmatpush.msra.mxu0 %v253
  %1839 = vmatpush.msra.mxu0 %v252
  %1840 = vmatpush.msra.mxu0 %v251
  %1841 = vmatpush.msra.mxu0 %v250
  %1842 = vmatpush.msra.mxu0 %v249
  %1843 = vmatpush.msra.mxu0 %v248
  %1844 = vmatpush.msra.mxu0 %v247
  %1845 = vmatpush.msra.mxu0 %v246
  %1846 = vmatpush.msra.mxu0 %v245
  %1847 = vmatpush.msra.mxu0 %v244
  %1848 = vmatpush.msra.mxu0 %v243
  %1849 = vmatpush.msra.mxu0 %v242
  %1850 = vmatpush.msra.mxu0 %v241
  %1851 = vmatpush.msra.mxu0 %v240
  %1852 = vmatpush.msra.mxu0 %v239
  %1853 = vmatpush.msra.mxu0 %v238
  %1854 = vmatmul.f32.gmra.mxu0 %v35
  %v1855 = vpop.f32.mrf.mxu0
  %v1856 = vadd.f32 %v1836, %v1855
  %1857 = vdwg.mxu0
  %1858 = vmatpush.msra.mxu0 %v269
  %1859 = vmatpush.msra.mxu0 %v268
  %1860 = vmatpush.msra.mxu0 %v267
  %1861 = vmatpush.msra.mxu0 %v266
  %1862 = vmatpush.msra.mxu0 %v265
  %1863 = vmatpush.msra.mxu0 %v264
  %1864 = vmatpush.msra.mxu0 %v263
  %1865 = vmatpush.msra.mxu0 %v262
  %1866 = vmatpush.msra.mxu0 %v261
  %1867 = vmatpush.msra.mxu0 %v260
  %1868 = vmatpush.msra.mxu0 %v259
  %1869 = vmatpush.msra.mxu0 %v258
  %1870 = vmatpush.msra.mxu0 %v257
  %1871 = vmatpush.msra.mxu0 %v256
  %1872 = vmatpush.msra.mxu0 %v255
  %1873 = vmatpush.msra.mxu0 %v254
  %1874 = vmatmul.f32.gmra.mxu0 %v36
  %v1875 = vpop.f32.mrf.mxu0
  %v1876 = vadd.f32 %v1856, %v1875
  %1877 = vdwg.mxu0
  %1878 = vmatpush.msra.mxu0 %v285
  %1879 = vmatpush.msra.mxu0 %v284
  %1880 = vmatpush.msra.mxu0 %v283
  %1881 = vmatpush.msra.mxu0 %v282
  %1882 = vmatpush.msra.mxu0 %v281
  %1883 = vmatpush.msra.mxu0 %v280
  %1884 = vmatpush.msra.mxu0 %v279
  %1885 = vmatpush.msra.mxu0 %v278
  %1886 = vmatpush.msra.mxu0 %v277
  %1887 = vmatpush.msra.mxu0 %v276
  %1888 = vmatpush.msra.mxu0 %v275
  %1889 = vmatpush.msra.mxu0 %v274
  %1890 = vmatpush.msra.mxu0 %v273
  %1891 = vmatpush.msra.mxu0 %v272
  %1892 = vmatpush.msra.mxu0 %v271
  %1893 = vmatpush.msra.mxu0 %v270
  %1894 = vmatmul.f32.gmra.mxu0 %v37
  %v1895 = vpop.f32.mrf.mxu0
  %v1896 = vadd.f32 %v1876, %v1895
  %1897 = vdwg.mxu0
  %1898 = vmatpush.msra.mxu0 %v301
  %1899 = vmatpush.msra.mxu0 %v300
  %1900 = vmatpush.msra.mxu0 %v299
  %1901 = vmatpush.msra.mxu0 %v298
  %1902 = vmatpush.msra.mxu0 %v297
  %1903 = vmatpush.msra.mxu0 %v296
  %1904 = vmatpush.msra.mxu0 %v295
  %1905 = vmatpush.msra.mxu0 %v294
  %1906 = vmatpush.msra.mxu0 %v293
  %1907 = vmatpush.msra.mxu0 %v292
  %1908 = vmatpush.msra.mxu0 %v291
  %1909 = vmatpush.msra.mxu0 %v290
  %1910 = vmatpush.msra.mxu0 %v289
  %1911 = vmatpush.msra.mxu0 %v288
  %1912 = vmatpush.msra.mxu0 %v287
  %1913 = vmatpush.msra.mxu0 %v286
  %1914 = vmatmul.f32.gmra.mxu0 %v38
  %v1915 = vpop.f32.mrf.mxu0
  %v1916 = vadd.f32 %v1896, %v1915
  %1917 = vdwg.mxu0
  %1918 = vmatpush.msra.mxu0 %v317
  %1919 = vmatpush.msra.mxu0 %v316
  %1920 = vmatpush.msra.mxu0 %v315
  %1921 = vmatpush.msra.mxu0 %v314
  %1922 = vmatpush.msra.mxu0 %v313
  %1923 = vmatpush.msra.mxu0 %v312
  %1924 = vmatpush.msra.mxu0 %v311
  %1925 = vmatpush.msra.mxu0 %v310
  %1926 = vmatpush.msra.mxu0 %v309
  %1927 = vmatpush.msra.mxu0 %v308
  %1928 = vmatpush.msra.mxu0 %v307
  %1929 = vmatpush.msra.mxu0 %v306
  %1930 = vmatpush.msra.mxu0 %v305
  %1931 = vmatpush.msra.mxu0 %v304
  %1932 = vmatpush.msra.mxu0 %v303
  %1933 = vmatpush.msra.mxu0 %v302
  %1934 = vmatmul.f32.gmra.mxu0 %v39
  %v1935 = vpop.f32.mrf.mxu0
  %v1936 = vadd.f32 %v1916, %v1935
  %1937 = vdwg.mxu0
  %1938 = vmatpush.msra.mxu0 %v333
  %1939 = vmatpush.msra.mxu0 %v332
  %1940 = vmatpush.msra.mxu0 %v331
  %1941 = vmatpush.msra.mxu0 %v330
  %1942 = vmatpush.msra.mxu0 %v329
  %1943 = vmatpush.msra.mxu0 %v328
  %1944 = vmatpush.msra.mxu0 %v327
  %1945 = vmatpush.msra.mxu0 %v326
  %1946 = vmatpush.msra.mxu0 %v325
  %1947 = vmatpush.msra.mxu0 %v324
  %1948 = vmatpush.msra.mxu0 %v323
  %1949 = vmatpush.msra.mxu0 %v322
  %1950 = vmatpush.msra.mxu0 %v321
  %1951 = vmatpush.msra.mxu0 %v320
  %1952 = vmatpush.msra.mxu0 %v319
  %1953 = vmatpush.msra.mxu0 %v318
  %1954 = vmatmul.f32.gmra.mxu0 %v40
  %v1955 = vpop.f32.mrf.mxu0
  %v1956 = vadd.f32 %v1936, %v1955
  %1957 = vdwg.mxu0
  %1958 = vmatpush.msra.mxu0 %v349
  %1959 = vmatpush.msra.mxu0 %v348
  %1960 = vmatpush.msra.mxu0 %v347
  %1961 = vmatpush.msra.mxu0 %v346
  %1962 = vmatpush.msra.mxu0 %v345
  %1963 = vmatpush.msra.mxu0 %v344
  %1964 = vmatpush.msra.mxu0 %v343
  %1965 = vmatpush.msra.mxu0 %v342
  %1966 = vmatpush.msra.mxu0 %v341
  %1967 = vmatpush.msra.mxu0 %v340
  %1968 = vmatpush.msra.mxu0 %v339
  %1969 = vmatpush.msra.mxu0 %v338
  %1970 = vmatpush.msra.mxu0 %v337
  %1971 = vmatpush.msra.mxu0 %v336
  %1972 = vmatpush.msra.mxu0 %v335
  %1973 = vmatpush.msra.mxu0 %v334
  %1974 = vmatmul.f32.gmra.mxu0 %v41
  %v1975 = vpop.f32.mrf.mxu0
  %v1976 = vadd.f32 %v1956, %v1975
  %1977 = vdwg.mxu0
  %1978 = vmatpush.msra.mxu0 %v365
  %1979 = vmatpush.msra.mxu0 %v364
  %1980 = vmatpush.msra.mxu0 %v363
  %1981 = vmatpush.msra.mxu0 %v362
  %1982 = vmatpush.msra.mxu0 %v361
  %1983 = vmatpush.msra.mxu0 %v360
  %1984 = vmatpush.msra.mxu0 %v359
  %1985 = vmatpush.msra.mxu0 %v358
  %1986 = vmatpush.msra.mxu0 %v357
  %1987 = vmatpush.msra.mxu0 %v356
  %1988 = vmatpush.msra.mxu0 %v355
  %1989 = vmatpush.msra.mxu0 %v354
  %1990 = vmatpush.msra.mxu0 %v353
  %1991 = vmatpush.msra.mxu0 %v352
  %1992 = vmatpush.msra.mxu0 %v351
  %1993 = vmatpush.msra.mxu0 %v350
  %1994 = vmatmul.f32.gmra.mxu0 %v42
  %v1995 = vpop.f32.mrf.mxu0
  %v1996 = vadd.f32 %v1976, %v1995
  %1997 = vdwg.mxu0
  %1998 = vmatpush.msra.mxu0 %v381
  %1999 = vmatpush.msra.mxu0 %v380
  %2000 = vmatpush.msra.mxu0 %v379
  %2001 = vmatpush.msra.mxu0 %v378
  %2002 = vmatpush.msra.mxu0 %v377
  %2003 = vmatpush.msra.mxu0 %v376
  %2004 = vmatpush.msra.mxu0 %v375
  %2005 = vmatpush.msra.mxu0 %v374
  %2006 = vmatpush.msra.mxu0 %v373
  %2007 = vmatpush.msra.mxu0 %v372
  %2008 = vmatpush.msra.mxu0 %v371
  %2009 = vmatpush.msra.mxu0 %v370
  %2010 = vmatpush.msra.mxu0 %v369
  %2011 = vmatpush.msra.mxu0 %v368
  %2012 = vmatpush.msra.mxu0 %v367
  %2013 = vmatpush.msra.mxu0 %v366
  %2014 = vmatmul.f32.gmra.mxu0 %v43
  %v2015 = vpop.f32.mrf.mxu0
  %v2016 = vadd.f32 %v1996, %v2015
  %2017 = vdwg.mxu0
  %2018 = vmatpush.msra.mxu0 %v397
  %2019 = vmatpush.msra.mxu0 %v396
  %2020 = vmatpush.msra.mxu0 %v395
  %2021 = vmatpush.msra.mxu0 %v394
  %2022 = vmatpush.msra.mxu0 %v393
  %2023 = vmatpush.msra.mxu0 %v392
  %2024 = vmatpush.msra.mxu0 %v391
  %2025 = vmatpush.msra.mxu0 %v390
  %2026 = vmatpush.msra.mxu0 %v389
  %2027 = vmatpush.msra.mxu0 %v388
  %2028 = vmatpush.msra.mxu0 %v387
  %2029 = vmatpush.msra.mxu0 %v386
  %2030 = vmatpush.msra.mxu0 %v385
  %2031 = vmatpush.msra.mxu0 %v384
  %2032 = vmatpush.msra.mxu0 %v383
  %2033 = vmatpush.msra.mxu0 %v382
  %2034 = vmatmul.f32.gmra.mxu0 %v44
  %v2035 = vpop.f32.mrf.mxu0
  %v2036 = vadd.f32 %v2016, %v2035
  %2037 = vdwg.mxu0
  %2038 = vmatpush.msra.mxu0 %v413
  %2039 = vmatpush.msra.mxu0 %v412
  %2040 = vmatpush.msra.mxu0 %v411
  %2041 = vmatpush.msra.mxu0 %v410
  %2042 = vmatpush.msra.mxu0 %v409
  %2043 = vmatpush.msra.mxu0 %v408
  %2044 = vmatpush.msra.mxu0 %v407
  %2045 = vmatpush.msra.mxu0 %v406
  %2046 = vmatpush.msra.mxu0 %v405
  %2047 = vmatpush.msra.mxu0 %v404
  %2048 = vmatpush.msra.mxu0 %v403
  %2049 = vmatpush.msra.mxu0 %v402
  %2050 = vmatpush.msra.mxu0 %v401
  %2051 = vmatpush.msra.mxu0 %v400
  %2052 = vmatpush.msra.mxu0 %v399
  %2053 = vmatpush.msra.mxu0 %v398
  %2054 = vmatmul.f32.gmra.mxu0 %v45
  %v2055 = vpop.f32.mrf.mxu0
  %v2056 = vadd.f32 %v2036, %v2055
  %2057 = vdwg.mxu0
  %2058 = vmatpush.msra.mxu0 %v429
  %2059 = vmatpush.msra.mxu0 %v428
  %2060 = vmatpush.msra.mxu0 %v427
  %2061 = vmatpush.msra.mxu0 %v426
  %2062 = vmatpush.msra.mxu0 %v425
  %2063 = vmatpush.msra.mxu0 %v424
  %2064 = vmatpush.msra.mxu0 %v423
  %2065 = vmatpush.msra.mxu0 %v422
  %2066 = vmatpush.msra.mxu0 %v421
  %2067 = vmatpush.msra.mxu0 %v420
  %2068 = vmatpush.msra.mxu0 %v419
  %2069 = vmatpush.msra.mxu0 %v418
  %2070 = vmatpush.msra.mxu0 %v417
  %2071 = vmatpush.msra.mxu0 %v416
  %2072 = vmatpush.msra.mxu0 %v415
  %2073 = vmatpush.msra.mxu0 %v414
  %2074 = vmatmul.f32.gmra.mxu0 %v46
  %v2075 = vpop.f32.mrf.mxu0
  %v2076 = vadd.f32 %v2056, %v2075
  %2077 = vdwg.mxu0
  %2078 = vmatpush.msra.mxu0 %v445
  %2079 = vmatpush.msra.mxu0 %v444
  %2080 = vmatpush.msra.mxu0 %v443
  %2081 = vmatpush.msra.mxu0 %v442
  %2082 = vmatpush.msra.mxu0 %v441
  %2083 = vmatpush.msra.mxu0 %v440
  %2084 = vmatpush.msra.mxu0 %v439
  %2085 = vmatpush.msra.mxu0 %v438
  %2086 = vmatpush.msra.mxu0 %v437
  %2087 = vmatpush.msra.mxu0 %v436
  %2088 = vmatpush.msra.mxu0 %v435
  %2089 = vmatpush.msra.mxu0 %v434
  %2090 = vmatpush.msra.mxu0 %v433
  %2091 = vmatpush.msra.mxu0 %v432
  %2092 = vmatpush.msra.mxu0 %v431
  %2093 = vmatpush.msra.mxu0 %v430
  %2094 = vmatmul.f32.gmra.mxu0 %v47
  %v2095 = vpop.f32.mrf.mxu0
  %v2096 = vadd.f32 %v2076, %v2095
  %2097 = vdwg.mxu0
  %2098 = vmatpush.msra.mxu0 %v461
  %2099 = vmatpush.msra.mxu0 %v460
  %2100 = vmatpush.msra.mxu0 %v459
  %2101 = vmatpush.msra.mxu0 %v458
  %2102 = vmatpush.msra.mxu0 %v457
  %2103 = vmatpush.msra.mxu0 %v456
  %2104 = vmatpush.msra.mxu0 %v455
  %2105 = vmatpush.msra.mxu0 %v454
  %2106 = vmatpush.msra.mxu0 %v453
  %2107 = vmatpush.msra.mxu0 %v452
  %2108 = vmatpush.msra.mxu0 %v451
  %2109 = vmatpush.msra.mxu0 %v450
  %2110 = vmatpush.msra.mxu0 %v449
  %2111 = vmatpush.msra.mxu0 %v448
  %2112 = vmatpush.msra.mxu0 %v447
  %2113 = vmatpush.msra.mxu0 %v446
  %2114 = vmatmul.f32.gmra.mxu0 %v48
  %v2115 = vpop.f32.mrf.mxu0
  %v2116 = vadd.f32 %v2096, %v2115
  %2117 = vdwg.mxu0
  %2118 = vmatpush.msra.mxu0 %v477
  %2119 = vmatpush.msra.mxu0 %v476
  %2120 = vmatpush.msra.mxu0 %v475
  %2121 = vmatpush.msra.mxu0 %v474
  %2122 = vmatpush.msra.mxu0 %v473
  %2123 = vmatpush.msra.mxu0 %v472
  %2124 = vmatpush.msra.mxu0 %v471
  %2125 = vmatpush.msra.mxu0 %v470
  %2126 = vmatpush.msra.mxu0 %v469
  %2127 = vmatpush.msra.mxu0 %v468
  %2128 = vmatpush.msra.mxu0 %v467
  %2129 = vmatpush.msra.mxu0 %v466
  %2130 = vmatpush.msra.mxu0 %v465
  %2131 = vmatpush.msra.mxu0 %v464
  %2132 = vmatpush.msra.mxu0 %v463
  %2133 = vmatpush.msra.mxu0 %v462
  %2134 = vmatmul.f32.gmra.mxu0 %v49
  %v2135 = vpop.f32.mrf.mxu0
  %v2136 = vadd.f32 %v2116, %v2135
  %2137 = vdwg.mxu0
  %2138 = vmatpush.msra.mxu0 %v493
  %2139 = vmatpush.msra.mxu0 %v492
  %2140 = vmatpush.msra.mxu0 %v491
  %2141 = vmatpush.msra.mxu0 %v490
  %2142 = vmatpush.msra.mxu0 %v489
  %2143 = vmatpush.msra.mxu0 %v488
  %2144 = vmatpush.msra.mxu0 %v487
  %2145 = vmatpush.msra.mxu0 %v486
  %2146 = vmatpush.msra.mxu0 %v485
  %2147 = vmatpush.msra.mxu0 %v484
  %2148 = vmatpush.msra.mxu0 %v483
  %2149 = vmatpush.msra.mxu0 %v482
  %2150 = vmatpush.msra.mxu0 %v481
  %2151 = vmatpush.msra.mxu0 %v480
  %2152 = vmatpush.msra.mxu0 %v479
  %2153 = vmatpush.msra.mxu0 %v478
  %2154 = vmatmul.f32.gmra.mxu0 %v50
  %v2155 = vpop.f32.mrf.mxu0
  %v2156 = vadd.f32 %v2136, %v2155
  %2157 = vdwg.mxu0
  %2158 = vmatpush.msra.mxu0 %v509
  %2159 = vmatpush.msra.mxu0 %v508
  %2160 = vmatpush.msra.mxu0 %v507
  %2161 = vmatpush.msra.mxu0 %v506
  %2162 = vmatpush.msra.mxu0 %v505
  %2163 = vmatpush.msra.mxu0 %v504
  %2164 = vmatpush.msra.mxu0 %v503
  %2165 = vmatpush.msra.mxu0 %v502
  %2166 = vmatpush.msra.mxu0 %v501
  %2167 = vmatpush.msra.mxu0 %v500
  %2168 = vmatpush.msra.mxu0 %v499
  %2169 = vmatpush.msra.mxu0 %v498
  %2170 = vmatpush.msra.mxu0 %v497
  %2171 = vmatpush.msra.mxu0 %v496
  %2172 = vmatpush.msra.mxu0 %v495
  %2173 = vmatpush.msra.mxu0 %v494
  %2174 = vmatmul.f32.gmra.mxu0 %v51
  %v2175 = vpop.f32.mrf.mxu0
  %v2176 = vadd.f32 %v2156, %v2175
  %2177 = vdwg.mxu0
  %2178 = vmatpush.msra.mxu0 %v525
  %2179 = vmatpush.msra.mxu0 %v524
  %2180 = vmatpush.msra.mxu0 %v523
  %2181 = vmatpush.msra.mxu0 %v522
  %2182 = vmatpush.msra.mxu0 %v521
  %2183 = vmatpush.msra.mxu0 %v520
  %2184 = vmatpush.msra.mxu0 %v519
  %2185 = vmatpush.msra.mxu0 %v518
  %2186 = vmatpush.msra.mxu0 %v517
  %2187 = vmatpush.msra.mxu0 %v516
  %2188 = vmatpush.msra.mxu0 %v515
  %2189 = vmatpush.msra.mxu0 %v514
  %2190 = vmatpush.msra.mxu0 %v513
  %2191 = vmatpush.msra.mxu0 %v512
  %2192 = vmatpush.msra.mxu0 %v511
  %2193 = vmatpush.msra.mxu0 %v510
  %2194 = vmatmul.f32.gmra.mxu0 %v52
  %v2195 = vpop.f32.mrf.mxu0
  %v2196 = vadd.f32 %v2176, %v2195
  %2197 = vdwg.mxu0
  %2198 = vmatpush.msra.mxu0 %v541
  %2199 = vmatpush.msra.mxu0 %v540
  %2200 = vmatpush.msra.mxu0 %v539
  %2201 = vmatpush.msra.mxu0 %v538
  %2202 = vmatpush.msra.mxu0 %v537
  %2203 = vmatpush.msra.mxu0 %v536
  %2204 = vmatpush.msra.mxu0 %v535
  %2205 = vmatpush.msra.mxu0 %v534
  %2206 = vmatpush.msra.mxu0 %v533
  %2207 = vmatpush.msra.mxu0 %v532
  %2208 = vmatpush.msra.mxu0 %v531
  %2209 = vmatpush.msra.mxu0 %v530
  %2210 = vmatpush.msra.mxu0 %v529
  %2211 = vmatpush.msra.mxu0 %v528
  %2212 = vmatpush.msra.mxu0 %v527
  %2213 = vmatpush.msra.mxu0 %v526
  %2214 = vmatmul.f32.gmra.mxu0 %v53
  %v2215 = vpop.f32.mrf.mxu0
  %v2216 = vadd.f32 %v2196, %v2215
  %2217 = vdwg.mxu0
  %2218 = vmatpush.msra.mxu0 %v557
  %2219 = vmatpush.msra.mxu0 %v556
  %2220 = vmatpush.msra.mxu0 %v555
  %2221 = vmatpush.msra.mxu0 %v554
  %2222 = vmatpush.msra.mxu0 %v553
  %2223 = vmatpush.msra.mxu0 %v552
  %2224 = vmatpush.msra.mxu0 %v551
  %2225 = vmatpush.msra.mxu0 %v550
  %2226 = vmatpush.msra.mxu0 %v549
  %2227 = vmatpush.msra.mxu0 %v548
  %2228 = vmatpush.msra.mxu0 %v547
  %2229 = vmatpush.msra.mxu0 %v546
  %2230 = vmatpush.msra.mxu0 %v545
  %2231 = vmatpush.msra.mxu0 %v544
  %2232 = vmatpush.msra.mxu0 %v543
  %2233 = vmatpush.msra.mxu0 %v542
  %2234 = vmatmul.f32.gmra.mxu0 %v54
  %v2235 = vpop.f32.mrf.mxu0
  %v2236 = vadd.f32 %v2216, %v2235
  %2237 = vdwg.mxu0
  %2238 = vmatpush.msra.mxu0 %v573
  %2239 = vmatpush.msra.mxu0 %v572
  %2240 = vmatpush.msra.mxu0 %v571
  %2241 = vmatpush.msra.mxu0 %v570
  %2242 = vmatpush.msra.mxu0 %v569
  %2243 = vmatpush.msra.mxu0 %v568
  %2244 = vmatpush.msra.mxu0 %v567
  %2245 = vmatpush.msra.mxu0 %v566
  %2246 = vmatpush.msra.mxu0 %v565
  %2247 = vmatpush.msra.mxu0 %v564
  %2248 = vmatpush.msra.mxu0 %v563
  %2249 = vmatpush.msra.mxu0 %v562
  %2250 = vmatpush.msra.mxu0 %v561
  %2251 = vmatpush.msra.mxu0 %v560
  %2252 = vmatpush.msra.mxu0 %v559
  %2253 = vmatpush.msra.mxu0 %v558
  %2254 = vmatmul.f32.gmra.mxu0 %v55
  %v2255 = vpop.f32.mrf.mxu0
  %v2256 = vadd.f32 %v2236, %v2255
  %2257 = vdwg.mxu0
  %2258 = vmatpush.msra.mxu0 %v589
  %2259 = vmatpush.msra.mxu0 %v588
  %2260 = vmatpush.msra.mxu0 %v587
  %2261 = vmatpush.msra.mxu0 %v586
  %2262 = vmatpush.msra.mxu0 %v585
  %2263 = vmatpush.msra.mxu0 %v584
  %2264 = vmatpush.msra.mxu0 %v583
  %2265 = vmatpush.msra.mxu0 %v582
  %2266 = vmatpush.msra.mxu0 %v581
  %2267 = vmatpush.msra.mxu0 %v580
  %2268 = vmatpush.msra.mxu0 %v579
  %2269 = vmatpush.msra.mxu0 %v578
  %2270 = vmatpush.msra.mxu0 %v577
  %2271 = vmatpush.msra.mxu0 %v576
  %2272 = vmatpush.msra.mxu0 %v575
  %2273 = vmatpush.msra.mxu0 %v574
  %2274 = vmatmul.f32.gmra.mxu0 %v56
  %v2275 = vpop.f32.mrf.mxu0
  %v2276 = vadd.f32 %v2256, %v2275
  %2277 = vdwg.mxu0
  %2278 = vmatpush.msra.mxu0 %v605
  %2279 = vmatpush.msra.mxu0 %v604
  %2280 = vmatpush.msra.mxu0 %v603
  %2281 = vmatpush.msra.mxu0 %v602
  %2282 = vmatpush.msra.mxu0 %v601
  %2283 = vmatpush.msra.mxu0 %v600
  %2284 = vmatpush.msra.mxu0 %v599
  %2285 = vmatpush.msra.mxu0 %v598
  %2286 = vmatpush.msra.mxu0 %v597
  %2287 = vmatpush.msra.mxu0 %v596
  %2288 = vmatpush.msra.mxu0 %v595
  %2289 = vmatpush.msra.mxu0 %v594
  %2290 = vmatpush.msra.mxu0 %v593
  %2291 = vmatpush.msra.mxu0 %v592
  %2292 = vmatpush.msra.mxu0 %v591
  %2293 = vmatpush.msra.mxu0 %v590
  %2294 = vmatmul.f32.gmra.mxu0 %v57
  %v2295 = vpop.f32.mrf.mxu0
  %v2296 = vadd.f32 %v2276, %v2295
  %2297 = vdwg.mxu0
  %2298 = vmatpush.msra.mxu0 %v621
  %2299 = vmatpush.msra.mxu0 %v620
  %2300 = vmatpush.msra.mxu0 %v619
  %2301 = vmatpush.msra.mxu0 %v618
  %2302 = vmatpush.msra.mxu0 %v617
  %2303 = vmatpush.msra.mxu0 %v616
  %2304 = vmatpush.msra.mxu0 %v615
  %2305 = vmatpush.msra.mxu0 %v614
  %2306 = vmatpush.msra.mxu0 %v613
  %2307 = vmatpush.msra.mxu0 %v612
  %2308 = vmatpush.msra.mxu0 %v611
  %2309 = vmatpush.msra.mxu0 %v610
  %2310 = vmatpush.msra.mxu0 %v609
  %2311 = vmatpush.msra.mxu0 %v608
  %2312 = vmatpush.msra.mxu0 %v607
  %2313 = vmatpush.msra.mxu0 %v606
  %2314 = vmatmul.f32.gmra.mxu0 %v58
  %v2315 = vpop.f32.mrf.mxu0
  %v2316 = vadd.f32 %v2296, %v2315
  %2317 = vdwg.mxu0
  %2318 = vmatpush.msra.mxu0 %v637
  %2319 = vmatpush.msra.mxu0 %v636
  %2320 = vmatpush.msra.mxu0 %v635
  %2321 = vmatpush.msra.mxu0 %v634
  %2322 = vmatpush.msra.mxu0 %v633
  %2323 = vmatpush.msra.mxu0 %v632
  %2324 = vmatpush.msra.mxu0 %v631
  %2325 = vmatpush.msra.mxu0 %v630
  %2326 = vmatpush.msra.mxu0 %v629
  %2327 = vmatpush.msra.mxu0 %v628
  %2328 = vmatpush.msra.mxu0 %v627
  %2329 = vmatpush.msra.mxu0 %v626
  %2330 = vmatpush.msra.mxu0 %v625
  %2331 = vmatpush.msra.mxu0 %v624
  %2332 = vmatpush.msra.mxu0 %v623
  %2333 = vmatpush.msra.mxu0 %v622
  %2334 = vmatmul.f32.gmra.mxu0 %v59
  %v2335 = vpop.f32.mrf.mxu0
  %v2336 = vadd.f32 %v2316, %v2335
  %2337 = vdwg.mxu0
  %2338 = vmatpush.msra.mxu0 %v653
  %2339 = vmatpush.msra.mxu0 %v652
  %2340 = vmatpush.msra.mxu0 %v651
  %2341 = vmatpush.msra.mxu0 %v650
  %2342 = vmatpush.msra.mxu0 %v649
  %2343 = vmatpush.msra.mxu0 %v648
  %2344 = vmatpush.msra.mxu0 %v647
  %2345 = vmatpush.msra.mxu0 %v646
  %2346 = vmatpush.msra.mxu0 %v645
  %2347 = vmatpush.msra.mxu0 %v644
  %2348 = vmatpush.msra.mxu0 %v643
  %2349 = vmatpush.msra.mxu0 %v642
  %2350 = vmatpush.msra.mxu0 %v641
  %2351 = vmatpush.msra.mxu0 %v640
  %2352 = vmatpush.msra.mxu0 %v639
  %2353 = vmatpush.msra.mxu0 %v638
  %2354 = vmatmul.f32.gmra.mxu0 %v60
  %v2355 = vpop.f32.mrf.mxu0
  %v2356 = vadd.f32 %v2336, %v2355
  %2357 = vdwg.mxu0
  %2358 = vmatpush.msra.mxu0 %v669
  %2359 = vmatpush.msra.mxu0 %v668
  %2360 = vmatpush.msra.mxu0 %v667
  %2361 = vmatpush.msra.mxu0 %v666
  %2362 = vmatpush.msra.mxu0 %v665
  %2363 = vmatpush.msra.mxu0 %v664
  %2364 = vmatpush.msra.mxu0 %v663
  %2365 = vmatpush.msra.mxu0 %v662
  %2366 = vmatpush.msra.mxu0 %v661
  %2367 = vmatpush.msra.mxu0 %v660
  %2368 = vmatpush.msra.mxu0 %v659
  %2369 = vmatpush.msra.mxu0 %v658
  %2370 = vmatpush.msra.mxu0 %v657
  %2371 = vmatpush.msra.mxu0 %v656
  %2372 = vmatpush.msra.mxu0 %v655
  %2373 = vmatpush.msra.mxu0 %v654
  %2374 = vmatmul.f32.gmra.mxu0 %v61
  %v2375 = vpop.f32.mrf.mxu0
  %v2376 = vadd.f32 %v2356, %v2375
  %2377 = vdwg.mxu0
  %2378 = vmatpush.msra.mxu0 %v685
  %2379 = vmatpush.msra.mxu0 %v684
  %2380 = vmatpush.msra.mxu0 %v683
  %2381 = vmatpush.msra.mxu0 %v682
  %2382 = vmatpush.msra.mxu0 %v681
  %2383 = vmatpush.msra.mxu0 %v680
  %2384 = vmatpush.msra.mxu0 %v679
  %2385 = vmatpush.msra.mxu0 %v678
  %2386 = vmatpush.msra.mxu0 %v677
  %2387 = vmatpush.msra.mxu0 %v676
  %2388 = vmatpush.msra.mxu0 %v675
  %2389 = vmatpush.msra.mxu0 %v674
  %2390 = vmatpush.msra.mxu0 %v673
  %2391 = vmatpush.msra.mxu0 %v672
  %2392 = vmatpush.msra.mxu0 %v671
  %2393 = vmatpush.msra.mxu0 %v670
  %2394 = vmatmul.f32.gmra.mxu0 %v62
  %v2395 = vpop.f32.mrf.mxu0
  %v2396 = vadd.f32 %v2376, %v2395
  %2397 = vdwg.mxu0
  %2398 = vmatpush.msra.mxu0 %v701
  %2399 = vmatpush.msra.mxu0 %v700
  %2400 = vmatpush.msra.mxu0 %v699
  %2401 = vmatpush.msra.mxu0 %v698
  %2402 = vmatpush.msra.mxu0 %v697
  %2403 = vmatpush.msra.mxu0 %v696
  %2404 = vmatpush.msra.mxu0 %v695
  %2405 = vmatpush.msra.mxu0 %v694
  %2406 = vmatpush.msra.mxu0 %v693
  %2407 = vmatpush.msra.mxu0 %v692
  %2408 = vmatpush.msra.mxu0 %v691
  %2409 = vmatpush.msra.mxu0 %v690
  %2410 = vmatpush.msra.mxu0 %v689
  %2411 = vmatpush.msra.mxu0 %v688
  %2412 = vmatpush.msra.mxu0 %v687
  %2413 = vmatpush.msra.mxu0 %v686
  %2414 = vmatmul.f32.gmra.mxu0 %v63
  %v2415 = vpop.f32.mrf.mxu0
  %v2416 = vadd.f32 %v2396, %v2415
  %2417 = vdwg.mxu0
  %2418 = vmatpush.msra.mxu0 %v717
  %2419 = vmatpush.msra.mxu0 %v716
  %2420 = vmatpush.msra.mxu0 %v715
  %2421 = vmatpush.msra.mxu0 %v714
  %2422 = vmatpush.msra.mxu0 %v713
  %2423 = vmatpush.msra.mxu0 %v712
  %2424 = vmatpush.msra.mxu0 %v711
  %2425 = vmatpush.msra.mxu0 %v710
  %2426 = vmatpush.msra.mxu0 %v709
  %2427 = vmatpush.msra.mxu0 %v708
  %2428 = vmatpush.msra.mxu0 %v707
  %2429 = vmatpush.msra.mxu0 %v706
  %2430 = vmatpush.msra.mxu0 %v705
  %2431 = vmatpush.msra.mxu0 %v704
  %2432 = vmatpush.msra.mxu0 %v703
  %2433 = vmatpush.msra.mxu0 %v702
  %2434 = vmatmul.f32.gmra.mxu0 %v64
  %v2435 = vpop.f32.mrf.mxu0
  %v2436 = vadd.f32 %v2416, %v2435
  %2437 = vdwg.mxu0
  %2438 = vmatpush.msra.mxu0 %v733
  %2439 = vmatpush.msra.mxu0 %v732
  %2440 = vmatpush.msra.mxu0 %v731
  %2441 = vmatpush.msra.mxu0 %v730
  %2442 = vmatpush.msra.mxu0 %v729
  %2443 = vmatpush.msra.mxu0 %v728
  %2444 = vmatpush.msra.mxu0 %v727
  %2445 = vmatpush.msra.mxu0 %v726
  %2446 = vmatpush.msra.mxu0 %v725
  %2447 = vmatpush.msra.mxu0 %v724
  %2448 = vmatpush.msra.mxu0 %v723
  %2449 = vmatpush.msra.mxu0 %v722
  %2450 = vmatpush.msra.mxu0 %v721
  %2451 = vmatpush.msra.mxu0 %v720
  %2452 = vmatpush.msra.mxu0 %v719
  %2453 = vmatpush.msra.mxu0 %v718
  %2454 = vmatmul.f32.gmra.mxu0 %v65
  %v2455 = vpop.f32.mrf.mxu0
  %v2456 = vadd.f32 %v2436, %v2455
  %2457 = vdwg.mxu0
  %2458 = vmatpush.msra.mxu0 %v749
  %2459 = vmatpush.msra.mxu0 %v748
  %2460 = vmatpush.msra.mxu0 %v747
  %2461 = vmatpush.msra.mxu0 %v746
  %2462 = vmatpush.msra.mxu0 %v745
  %2463 = vmatpush.msra.mxu0 %v744
  %2464 = vmatpush.msra.mxu0 %v743
  %2465 = vmatpush.msra.mxu0 %v742
  %2466 = vmatpush.msra.mxu0 %v741
  %2467 = vmatpush.msra.mxu0 %v740
  %2468 = vmatpush.msra.mxu0 %v739
  %2469 = vmatpush.msra.mxu0 %v738
  %2470 = vmatpush.msra.mxu0 %v737
  %2471 = vmatpush.msra.mxu0 %v736
  %2472 = vmatpush.msra.mxu0 %v735
  %2473 = vmatpush.msra.mxu0 %v734
  %2474 = vmatmul.f32.gmra.mxu0 %v66
  %v2475 = vpop.f32.mrf.mxu0
  %v2476 = vadd.f32 %v2456, %v2475
  %2477 = vdwg.mxu0
  %2478 = vmatpush.msra.mxu0 %v765
  %2479 = vmatpush.msra.mxu0 %v764
  %2480 = vmatpush.msra.mxu0 %v763
  %2481 = vmatpush.msra.mxu0 %v762
  %2482 = vmatpush.msra.mxu0 %v761
  %2483 = vmatpush.msra.mxu0 %v760
  %2484 = vmatpush.msra.mxu0 %v759
  %2485 = vmatpush.msra.mxu0 %v758
  %2486 = vmatpush.msra.mxu0 %v757
  %2487 = vmatpush.msra.mxu0 %v756
  %2488 = vmatpush.msra.mxu0 %v755
  %2489 = vmatpush.msra.mxu0 %v754
  %2490 = vmatpush.msra.mxu0 %v753
  %2491 = vmatpush.msra.mxu0 %v752
  %2492 = vmatpush.msra.mxu0 %v751
  %2493 = vmatpush.msra.mxu0 %v750
  %2494 = vmatmul.f32.gmra.mxu0 %v67
  %v2495 = vpop.f32.mrf.mxu0
  %v2496 = vadd.f32 %v2476, %v2495
  %2497 = vdwg.mxu0
  %2498 = vmatpush.msra.mxu0 %v781
  %2499 = vmatpush.msra.mxu0 %v780
  %2500 = vmatpush.msra.mxu0 %v779
  %2501 = vmatpush.msra.mxu0 %v778
  %2502 = vmatpush.msra.mxu0 %v777
  %2503 = vmatpush.msra.mxu0 %v776
  %2504 = vmatpush.msra.mxu0 %v775
  %2505 = vmatpush.msra.mxu0 %v774
  %2506 = vmatpush.msra.mxu0 %v773
  %2507 = vmatpush.msra.mxu0 %v772
  %2508 = vmatpush.msra.mxu0 %v771
  %2509 = vmatpush.msra.mxu0 %v770
  %2510 = vmatpush.msra.mxu0 %v769
  %2511 = vmatpush.msra.mxu0 %v768
  %2512 = vmatpush.msra.mxu0 %v767
  %2513 = vmatpush.msra.mxu0 %v766
  %2514 = vmatmul.f32.gmra.mxu0 %v68
  %v2515 = vpop.f32.mrf.mxu0
  %v2516 = vadd.f32 %v2496, %v2515
  %2517 = vdwg.mxu0
  %2518 = vmatpush.msra.mxu0 %v797
  %2519 = vmatpush.msra.mxu0 %v796
  %2520 = vmatpush.msra.mxu0 %v795
  %2521 = vmatpush.msra.mxu0 %v794
  %2522 = vmatpush.msra.mxu0 %v793
  %2523 = vmatpush.msra.mxu0 %v792
  %2524 = vmatpush.msra.mxu0 %v791
  %2525 = vmatpush.msra.mxu0 %v790
  %2526 = vmatpush.msra.mxu0 %v789
  %2527 = vmatpush.msra.mxu0 %v788
  %2528 = vmatpush.msra.mxu0 %v787
  %2529 = vmatpush.msra.mxu0 %v786
  %2530 = vmatpush.msra.mxu0 %v785
  %2531 = vmatpush.msra.mxu0 %v784
  %2532 = vmatpush.msra.mxu0 %v783
  %2533 = vmatpush.msra.mxu0 %v782
  %2534 = vmatmul.f32.gmra.mxu0 %v69
  %v2535 = vpop.f32.mrf.mxu0
  %v2536 = vadd.f32 %v2516, %v2535
  %2537 = vdwg.mxu0
  %2538 = vmatpush.msra.mxu0 %v813
  %2539 = vmatpush.msra.mxu0 %v812
  %2540 = vmatpush.msra.mxu0 %v811
  %2541 = vmatpush.msra.mxu0 %v810
  %2542 = vmatpush.msra.mxu0 %v809
  %2543 = vmatpush.msra.mxu0 %v808
  %2544 = vmatpush.msra.mxu0 %v807
  %2545 = vmatpush.msra.mxu0 %v806
  %2546 = vmatpush.msra.mxu0 %v805
  %2547 = vmatpush.msra.mxu0 %v804
  %2548 = vmatpush.msra.mxu0 %v803
  %2549 = vmatpush.msra.mxu0 %v802
  %2550 = vmatpush.msra.mxu0 %v801
  %2551 = vmatpush.msra.mxu0 %v800
  %2552 = vmatpush.msra.mxu0 %v799
  %2553 = vmatpush.msra.mxu0 %v798
  %2554 = vmatmul.f32.gmra.mxu0 %v70
  %v2555 = vpop.f32.mrf.mxu0
  %v2556 = vadd.f32 %v2536, %v2555
  %2557 = vdwg.mxu0
  %2558 = vmatpush.msra.mxu0 %v829
  %2559 = vmatpush.msra.mxu0 %v828
  %2560 = vmatpush.msra.mxu0 %v827
  %2561 = vmatpush.msra.mxu0 %v826
  %2562 = vmatpush.msra.mxu0 %v825
  %2563 = vmatpush.msra.mxu0 %v824
  %2564 = vmatpush.msra.mxu0 %v823
  %2565 = vmatpush.msra.mxu0 %v822
  %2566 = vmatpush.msra.mxu0 %v821
  %2567 = vmatpush.msra.mxu0 %v820
  %2568 = vmatpush.msra.mxu0 %v819
  %2569 = vmatpush.msra.mxu0 %v818
  %2570 = vmatpush.msra.mxu0 %v817
  %2571 = vmatpush.msra.mxu0 %v816
  %2572 = vmatpush.msra.mxu0 %v815
  %2573 = vmatpush.msra.mxu0 %v814
  %2574 = vmatmul.f32.gmra.mxu0 %v71
  %v2575 = vpop.f32.mrf.mxu0
  %v2576 = vadd.f32 %v2556, %v2575
  %2577 = vdwg.mxu0
  %2578 = vmatpush.msra.mxu0 %v845
  %2579 = vmatpush.msra.mxu0 %v844
  %2580 = vmatpush.msra.mxu0 %v843
  %2581 = vmatpush.msra.mxu0 %v842
  %2582 = vmatpush.msra.mxu0 %v841
  %2583 = vmatpush.msra.mxu0 %v840
  %2584 = vmatpush.msra.mxu0 %v839
  %2585 = vmatpush.msra.mxu0 %v838
  %2586 = vmatpush.msra.mxu0 %v837
  %2587 = vmatpush.msra.mxu0 %v836
  %2588 = vmatpush.msra.mxu0 %v835
  %2589 = vmatpush.msra.mxu0 %v834
  %2590 = vmatpush.msra.mxu0 %v833
  %2591 = vmatpush.msra.mxu0 %v832
  %2592 = vmatpush.msra.mxu0 %v831
  %2593 = vmatpush.msra.mxu0 %v830
  %2594 = vmatmul.f32.gmra.mxu0 %v72
  %v2595 = vpop.f32.mrf.mxu0
  %v2596 = vadd.f32 %v2576, %v2595
  %2597 = vdwg.mxu0
  %2598 = vmatpush.msra.mxu0 %v861
  %2599 = vmatpush.msra.mxu0 %v860
  %2600 = vmatpush.msra.mxu0 %v859
  %2601 = vmatpush.msra.mxu0 %v858
  %2602 = vmatpush.msra.mxu0 %v857
  %2603 = vmatpush.msra.mxu0 %v856
  %2604 = vmatpush.msra.mxu0 %v855
  %2605 = vmatpush.msra.mxu0 %v854
  %2606 = vmatpush.msra.mxu0 %v853
  %2607 = vmatpush.msra.mxu0 %v852
  %2608 = vmatpush.msra.mxu0 %v851
  %2609 = vmatpush.msra.mxu0 %v850
  %2610 = vmatpush.msra.mxu0 %v849
  %2611 = vmatpush.msra.mxu0 %v848
  %2612 = vmatpush.msra.mxu0 %v847
  %2613 = vmatpush.msra.mxu0 %v846
  %2614 = vmatmul.f32.gmra.mxu0 %v73
  %v2615 = vpop.f32.mrf.mxu0
  %v2616 = vadd.f32 %v2596, %v2615
  %2617 = vdwg.mxu0
  %2618 = vmatpush.msra.mxu0 %v877
  %2619 = vmatpush.msra.mxu0 %v876
  %2620 = vmatpush.msra.mxu0 %v875
  %2621 = vmatpush.msra.mxu0 %v874
  %2622 = vmatpush.msra.mxu0 %v873
  %2623 = vmatpush.msra.mxu0 %v872
  %2624 = vmatpush.msra.mxu0 %v871
  %2625 = vmatpush.msra.mxu0 %v870
  %2626 = vmatpush.msra.mxu0 %v869
  %2627 = vmatpush.msra.mxu0 %v868
  %2628 = vmatpush.msra.mxu0 %v867
  %2629 = vmatpush.msra.mxu0 %v866
  %2630 = vmatpush.msra.mxu0 %v865
  %2631 = vmatpush.msra.mxu0 %v864
  %2632 = vmatpush.msra.mxu0 %v863
  %2633 = vmatpush.msra.mxu0 %v862
  %2634 = vmatmul.f32.gmra.mxu0 %v74
  %v2635 = vpop.f32.mrf.mxu0
  %v2636 = vadd.f32 %v2616, %v2635
  %2637 = vdwg.mxu0
  %2638 = vmatpush.msra.mxu0 %v893
  %2639 = vmatpush.msra.mxu0 %v892
  %2640 = vmatpush.msra.mxu0 %v891
  %2641 = vmatpush.msra.mxu0 %v890
  %2642 = vmatpush.msra.mxu0 %v889
  %2643 = vmatpush.msra.mxu0 %v888
  %2644 = vmatpush.msra.mxu0 %v887
  %2645 = vmatpush.msra.mxu0 %v886
  %2646 = vmatpush.msra.mxu0 %v885
  %2647 = vmatpush.msra.mxu0 %v884
  %2648 = vmatpush.msra.mxu0 %v883
  %2649 = vmatpush.msra.mxu0 %v882
  %2650 = vmatpush.msra.mxu0 %v881
  %2651 = vmatpush.msra.mxu0 %v880
  %2652 = vmatpush.msra.mxu0 %v879
  %2653 = vmatpush.msra.mxu0 %v878
  %2654 = vmatmul.f32.gmra.mxu0 %v75
  %v2655 = vpop.f32.mrf.mxu0
  %v2656 = vadd.f32 %v2636, %v2655
  %2657 = vdwg.mxu0
  %2658 = vmatpush.msra.mxu0 %v909
  %2659 = vmatpush.msra.mxu0 %v908
  %2660 = vmatpush.msra.mxu0 %v907
  %2661 = vmatpush.msra.mxu0 %v906
  %2662 = vmatpush.msra.mxu0 %v905
  %2663 = vmatpush.msra.mxu0 %v904
  %2664 = vmatpush.msra.mxu0 %v903
  %2665 = vmatpush.msra.mxu0 %v902
  %2666 = vmatpush.msra.mxu0 %v901
  %2667 = vmatpush.msra.mxu0 %v900
  %2668 = vmatpush.msra.mxu0 %v899
  %2669 = vmatpush.msra.mxu0 %v898
  %2670 = vmatpush.msra.mxu0 %v897
  %2671 = vmatpush.msra.mxu0 %v896
  %2672 = vmatpush.msra.mxu0 %v895
  %2673 = vmatpush.msra.mxu0 %v894
  %2674 = vmatmul.f32.gmra.mxu0 %v76
  %v2675 = vpop.f32.mrf.mxu0
  %v2676 = vadd.f32 %v2656, %v2675
  %2677 = vdwg.mxu0
  %2678 = vmatpush.msra.mxu0 %v925
  %2679 = vmatpush.msra.mxu0 %v924
  %2680 = vmatpush.msra.mxu0 %v923
  %2681 = vmatpush.msra.mxu0 %v922
  %2682 = vmatpush.msra.mxu0 %v921
  %2683 = vmatpush.msra.mxu0 %v920
  %2684 = vmatpush.msra.mxu0 %v919
  %2685 = vmatpush.msra.mxu0 %v918
  %2686 = vmatpush.msra.mxu0 %v917
  %2687 = vmatpush.msra.mxu0 %v916
  %2688 = vmatpush.msra.mxu0 %v915
  %2689 = vmatpush.msra.mxu0 %v914
  %2690 = vmatpush.msra.mxu0 %v913
  %2691 = vmatpush.msra.mxu0 %v912
  %2692 = vmatpush.msra.mxu0 %v911
  %2693 = vmatpush.msra.mxu0 %v910
  %2694 = vmatmul.f32.gmra.mxu0 %v77
  %v2695 = vpop.f32.mrf.mxu0
  %v2696 = vadd.f32 %v2676, %v2695
  %2697 = vdwg.mxu0
  %2698 = vmatpush.msra.mxu0 %v941
  %2699 = vmatpush.msra.mxu0 %v940
  %2700 = vmatpush.msra.mxu0 %v939
  %2701 = vmatpush.msra.mxu0 %v938
  %2702 = vmatpush.msra.mxu0 %v937
  %2703 = vmatpush.msra.mxu0 %v936
  %2704 = vmatpush.msra.mxu0 %v935
  %2705 = vmatpush.msra.mxu0 %v934
  %2706 = vmatpush.msra.mxu0 %v933
  %2707 = vmatpush.msra.mxu0 %v932
  %2708 = vmatpush.msra.mxu0 %v931
  %2709 = vmatpush.msra.mxu0 %v930
  %2710 = vmatpush.msra.mxu0 %v929
  %2711 = vmatpush.msra.mxu0 %v928
  %2712 = vmatpush.msra.mxu0 %v927
  %2713 = vmatpush.msra.mxu0 %v926
  %2714 = vmatmul.f32.gmra.mxu0 %v78
  %v2715 = vpop.f32.mrf.mxu0
  %v2716 = vadd.f32 %v2696, %v2715
  %2717 = vdwg.mxu0
  %2718 = vmatpush.msra.mxu0 %v957
  %2719 = vmatpush.msra.mxu0 %v956
  %2720 = vmatpush.msra.mxu0 %v955
  %2721 = vmatpush.msra.mxu0 %v954
  %2722 = vmatpush.msra.mxu0 %v953
  %2723 = vmatpush.msra.mxu0 %v952
  %2724 = vmatpush.msra.mxu0 %v951
  %2725 = vmatpush.msra.mxu0 %v950
  %2726 = vmatpush.msra.mxu0 %v949
  %2727 = vmatpush.msra.mxu0 %v948
  %2728 = vmatpush.msra.mxu0 %v947
  %2729 = vmatpush.msra.mxu0 %v946
  %2730 = vmatpush.msra.mxu0 %v945
  %2731 = vmatpush.msra.mxu0 %v944
  %2732 = vmatpush.msra.mxu0 %v943
  %2733 = vmatpush.msra.mxu0 %v942
  %2734 = vmatmul.f32.gmra.mxu0 %v79
  %v2735 = vpop.f32.mrf.mxu0
  %v2736 = vadd.f32 %v2716, %v2735
  %2737 = vdwg.mxu0
  %2738 = vmatpush.msra.mxu0 %v973
  %2739 = vmatpush.msra.mxu0 %v972
  %2740 = vmatpush.msra.mxu0 %v971
  %2741 = vmatpush.msra.mxu0 %v970
  %2742 = vmatpush.msra.mxu0 %v969
  %2743 = vmatpush.msra.mxu0 %v968
  %2744 = vmatpush.msra.mxu0 %v967
  %2745 = vmatpush.msra.mxu0 %v966
  %2746 = vmatpush.msra.mxu0 %v965
  %2747 = vmatpush.msra.mxu0 %v964
  %2748 = vmatpush.msra.mxu0 %v963
  %2749 = vmatpush.msra.mxu0 %v962
  %2750 = vmatpush.msra.mxu0 %v961
  %2751 = vmatpush.msra.mxu0 %v960
  %2752 = vmatpush.msra.mxu0 %v959
  %2753 = vmatpush.msra.mxu0 %v958
  %2754 = vmatmul.f32.gmra.mxu0 %v80
  %v2755 = vpop.f32.mrf.mxu0
  %v2756 = vadd.f32 %v2736, %v2755
  %2757 = vdwg.mxu0
  %2758 = vmatpush.msra.mxu0 %v989
  %2759 = vmatpush.msra.mxu0 %v988
  %2760 = vmatpush.msra.mxu0 %v987
  %2761 = vmatpush.msra.mxu0 %v986
  %2762 = vmatpush.msra.mxu0 %v985
  %2763 = vmatpush.msra.mxu0 %v984
  %2764 = vmatpush.msra.mxu0 %v983
  %2765 = vmatpush.msra.mxu0 %v982
  %2766 = vmatpush.msra.mxu0 %v981
  %2767 = vmatpush.msra.mxu0 %v980
  %2768 = vmatpush.msra.mxu0 %v979
  %2769 = vmatpush.msra.mxu0 %v978
  %2770 = vmatpush.msra.mxu0 %v977
  %2771 = vmatpush.msra.mxu0 %v976
  %2772 = vmatpush.msra.mxu0 %v975
  %2773 = vmatpush.msra.mxu0 %v974
  %2774 = vmatmul.f32.gmra.mxu0 %v81
  %v2775 = vpop.f32.mrf.mxu0
  %v2776 = vadd.f32 %v2756, %v2775
  %2777 = vdwg.mxu0
  %2778 = vmatpush.msra.mxu0 %v1005
  %2779 = vmatpush.msra.mxu0 %v1004
  %2780 = vmatpush.msra.mxu0 %v1003
  %2781 = vmatpush.msra.mxu0 %v1002
  %2782 = vmatpush.msra.mxu0 %v1001
  %2783 = vmatpush.msra.mxu0 %v1000
  %2784 = vmatpush.msra.mxu0 %v999
  %2785 = vmatpush.msra.mxu0 %v998
  %2786 = vmatpush.msra.mxu0 %v997
  %2787 = vmatpush.msra.mxu0 %v996
  %2788 = vmatpush.msra.mxu0 %v995
  %2789 = vmatpush.msra.mxu0 %v994
  %2790 = vmatpush.msra.mxu0 %v993
  %2791 = vmatpush.msra.mxu0 %v992
  %2792 = vmatpush.msra.mxu0 %v991
  %2793 = vmatpush.msra.mxu0 %v990
  %2794 = vmatmul.f32.gmra.mxu0 %v82
  %v2795 = vpop.f32.mrf.mxu0
  %v2796 = vadd.f32 %v2776, %v2795
  %2797 = vdwg.mxu0
  %2798 = vmatpush.msra.mxu0 %v1021
  %2799 = vmatpush.msra.mxu0 %v1020
  %2800 = vmatpush.msra.mxu0 %v1019
  %2801 = vmatpush.msra.mxu0 %v1018
  %2802 = vmatpush.msra.mxu0 %v1017
  %2803 = vmatpush.msra.mxu0 %v1016
  %2804 = vmatpush.msra.mxu0 %v1015
  %2805 = vmatpush.msra.mxu0 %v1014
  %2806 = vmatpush.msra.mxu0 %v1013
  %2807 = vmatpush.msra.mxu0 %v1012
  %2808 = vmatpush.msra.mxu0 %v1011
  %2809 = vmatpush.msra.mxu0 %v1010
  %2810 = vmatpush.msra.mxu0 %v1009
  %2811 = vmatpush.msra.mxu0 %v1008
  %2812 = vmatpush.msra.mxu0 %v1007
  %2813 = vmatpush.msra.mxu0 %v1006
  %2814 = vmatmul.f32.gmra.mxu0 %v83
  %v2815 = vpop.f32.mrf.mxu0
  %v2816 = vadd.f32 %v2796, %v2815
  %2817 = vdwg.mxu0
  %2818 = vmatpush.msra.mxu0 %v1037
  %2819 = vmatpush.msra.mxu0 %v1036
  %2820 = vmatpush.msra.mxu0 %v1035
  %2821 = vmatpush.msra.mxu0 %v1034
  %2822 = vmatpush.msra.mxu0 %v1033
  %2823 = vmatpush.msra.mxu0 %v1032
  %2824 = vmatpush.msra.mxu0 %v1031
  %2825 = vmatpush.msra.mxu0 %v1030
  %2826 = vmatpush.msra.mxu0 %v1029
  %2827 = vmatpush.msra.mxu0 %v1028
  %2828 = vmatpush.msra.mxu0 %v1027
  %2829 = vmatpush.msra.mxu0 %v1026
  %2830 = vmatpush.msra.mxu0 %v1025
  %2831 = vmatpush.msra.mxu0 %v1024
  %2832 = vmatpush.msra.mxu0 %v1023
  %2833 = vmatpush.msra.mxu0 %v1022
  %2834 = vmatmul.f32.gmra.mxu0 %v84
  %v2835 = vpop.f32.mrf.mxu0
  %v2836 = vadd.f32 %v2816, %v2835
  %2837 = vdwg.mxu0
  %2838 = vmatpush.msra.mxu0 %v1053
  %2839 = vmatpush.msra.mxu0 %v1052
  %2840 = vmatpush.msra.mxu0 %v1051
  %2841 = vmatpush.msra.mxu0 %v1050
  %2842 = vmatpush.msra.mxu0 %v1049
  %2843 = vmatpush.msra.mxu0 %v1048
  %2844 = vmatpush.msra.mxu0 %v1047
  %2845 = vmatpush.msra.mxu0 %v1046
  %2846 = vmatpush.msra.mxu0 %v1045
  %2847 = vmatpush.msra.mxu0 %v1044
  %2848 = vmatpush.msra.mxu0 %v1043
  %2849 = vmatpush.msra.mxu0 %v1042
  %2850 = vmatpush.msra.mxu0 %v1041
  %2851 = vmatpush.msra.mxu0 %v1040
  %2852 = vmatpush.msra.mxu0 %v1039
  %2853 = vmatpush.msra.mxu0 %v1038
  %2854 = vmatmul.f32.gmra.mxu0 %v85
  %v2855 = vpop.f32.mrf.mxu0
  %v2856 = vadd.f32 %v2836, %v2855
  %2857 = vdwg.mxu0
  %2858 = vmatpush.msra.mxu0 %v1069
  %2859 = vmatpush.msra.mxu0 %v1068
  %2860 = vmatpush.msra.mxu0 %v1067
  %2861 = vmatpush.msra.mxu0 %v1066
  %2862 = vmatpush.msra.mxu0 %v1065
  %2863 = vmatpush.msra.mxu0 %v1064
  %2864 = vmatpush.msra.mxu0 %v1063
  %2865 = vmatpush.msra.mxu0 %v1062
  %2866 = vmatpush.msra.mxu0 %v1061
  %2867 = vmatpush.msra.mxu0 %v1060
  %2868 = vmatpush.msra.mxu0 %v1059
  %2869 = vmatpush.msra.mxu0 %v1058
  %2870 = vmatpush.msra.mxu0 %v1057
  %2871 = vmatpush.msra.mxu0 %v1056
  %2872 = vmatpush.msra.mxu0 %v1055
  %2873 = vmatpush.msra.mxu0 %v1054
  %2874 = vmatmul.f32.gmra.mxu0 %v86
  %v2875 = vpop.f32.mrf.mxu0
  %v2876 = vadd.f32 %v2856, %v2875
  %2877 = vdwg.mxu0
  %2878 = vmatpush.msra.mxu0 %v1085
  %2879 = vmatpush.msra.mxu0 %v1084
  %2880 = vmatpush.msra.mxu0 %v1083
  %2881 = vmatpush.msra.mxu0 %v1082
  %2882 = vmatpush.msra.mxu0 %v1081
  %2883 = vmatpush.msra.mxu0 %v1080
  %2884 = vmatpush.msra.mxu0 %v1079
  %2885 = vmatpush.msra.mxu0 %v1078
  %2886 = vmatpush.msra.mxu0 %v1077
  %2887 = vmatpush.msra.mxu0 %v1076
  %2888 = vmatpush.msra.mxu0 %v1075
  %2889 = vmatpush.msra.mxu0 %v1074
  %2890 = vmatpush.msra.mxu0 %v1073
  %2891 = vmatpush.msra.mxu0 %v1072
  %2892 = vmatpush.msra.mxu0 %v1071
  %2893 = vmatpush.msra.mxu0 %v1070
  %2894 = vmatmul.f32.gmra.mxu0 %v87
  %v2895 = vpop.f32.mrf.mxu0
  %v2896 = vadd.f32 %v2876, %v2895
  %2897 = vdwg.mxu0
  %2898 = vmatpush.msra.mxu0 %v1101
  %2899 = vmatpush.msra.mxu0 %v1100
  %2900 = vmatpush.msra.mxu0 %v1099
  %2901 = vmatpush.msra.mxu0 %v1098
  %2902 = vmatpush.msra.mxu0 %v1097
  %2903 = vmatpush.msra.mxu0 %v1096
  %2904 = vmatpush.msra.mxu0 %v1095
  %2905 = vmatpush.msra.mxu0 %v1094
  %2906 = vmatpush.msra.mxu0 %v1093
  %2907 = vmatpush.msra.mxu0 %v1092
  %2908 = vmatpush.msra.mxu0 %v1091
  %2909 = vmatpush.msra.mxu0 %v1090
  %2910 = vmatpush.msra.mxu0 %v1089
  %2911 = vmatpush.msra.mxu0 %v1088
  %2912 = vmatpush.msra.mxu0 %v1087
  %2913 = vmatpush.msra.mxu0 %v1086
  %2914 = vmatmul.f32.gmra.mxu0 %v88
  %v2915 = vpop.f32.mrf.mxu0
  %v2916 = vadd.f32 %v2896, %v2915
  %2917 = vdwg.mxu0
  %2918 = vmatpush.msra.mxu0 %v1117
  %2919 = vmatpush.msra.mxu0 %v1116
  %2920 = vmatpush.msra.mxu0 %v1115
  %2921 = vmatpush.msra.mxu0 %v1114
  %2922 = vmatpush.msra.mxu0 %v1113
  %2923 = vmatpush.msra.mxu0 %v1112
  %2924 = vmatpush.msra.mxu0 %v1111
  %2925 = vmatpush.msra.mxu0 %v1110
  %2926 = vmatpush.msra.mxu0 %v1109
  %2927 = vmatpush.msra.mxu0 %v1108
  %2928 = vmatpush.msra.mxu0 %v1107
  %2929 = vmatpush.msra.mxu0 %v1106
  %2930 = vmatpush.msra.mxu0 %v1105
  %2931 = vmatpush.msra.mxu0 %v1104
  %2932 = vmatpush.msra.mxu0 %v1103
  %2933 = vmatpush.msra.mxu0 %v1102
  %2934 = vmatmul.f32.gmra.mxu0 %v89
  %v2935 = vpop.f32.mrf.mxu0
  %v2936 = vadd.f32 %v2916, %v2935
  %2937 = vdwg.mxu0
  %2938 = vmatpush.msra.mxu0 %v1133
  %2939 = vmatpush.msra.mxu0 %v1132
  %2940 = vmatpush.msra.mxu0 %v1131
  %2941 = vmatpush.msra.mxu0 %v1130
  %2942 = vmatpush.msra.mxu0 %v1129
  %2943 = vmatpush.msra.mxu0 %v1128
  %2944 = vmatpush.msra.mxu0 %v1127
  %2945 = vmatpush.msra.mxu0 %v1126
  %2946 = vmatpush.msra.mxu0 %v1125
  %2947 = vmatpush.msra.mxu0 %v1124
  %2948 = vmatpush.msra.mxu0 %v1123
  %2949 = vmatpush.msra.mxu0 %v1122
  %2950 = vmatpush.msra.mxu0 %v1121
  %2951 = vmatpush.msra.mxu0 %v1120
  %2952 = vmatpush.msra.mxu0 %v1119
  %2953 = vmatpush.msra.mxu0 %v1118
  %2954 = vmatmul.f32.gmra.mxu0 %v90
  %v2955 = vpop.f32.mrf.mxu0
  %v2956 = vadd.f32 %v2936, %v2955
  %2957 = vdwg.mxu0
  %2958 = vmatpush.msra.mxu0 %v1149
  %2959 = vmatpush.msra.mxu0 %v1148
  %2960 = vmatpush.msra.mxu0 %v1147
  %2961 = vmatpush.msra.mxu0 %v1146
  %2962 = vmatpush.msra.mxu0 %v1145
  %2963 = vmatpush.msra.mxu0 %v1144
  %2964 = vmatpush.msra.mxu0 %v1143
  %2965 = vmatpush.msra.mxu0 %v1142
  %2966 = vmatpush.msra.mxu0 %v1141
  %2967 = vmatpush.msra.mxu0 %v1140
  %2968 = vmatpush.msra.mxu0 %v1139
  %2969 = vmatpush.msra.mxu0 %v1138
  %2970 = vmatpush.msra.mxu0 %v1137
  %2971 = vmatpush.msra.mxu0 %v1136
  %2972 = vmatpush.msra.mxu0 %v1135
  %2973 = vmatpush.msra.mxu0 %v1134
  %2974 = vmatmul.f32.gmra.mxu0 %v91
  %v2975 = vpop.f32.mrf.mxu0
  %v2976 = vadd.f32 %v2956, %v2975
  %2977 = vdwg.mxu0
  %2978 = vmatpush.msra.mxu0 %v1165
  %2979 = vmatpush.msra.mxu0 %v1164
  %2980 = vmatpush.msra.mxu0 %v1163
  %2981 = vmatpush.msra.mxu0 %v1162
  %2982 = vmatpush.msra.mxu0 %v1161
  %2983 = vmatpush.msra.mxu0 %v1160
  %2984 = vmatpush.msra.mxu0 %v1159
  %2985 = vmatpush.msra.mxu0 %v1158
  %2986 = vmatpush.msra.mxu0 %v1157
  %2987 = vmatpush.msra.mxu0 %v1156
  %2988 = vmatpush.msra.mxu0 %v1155
  %2989 = vmatpush.msra.mxu0 %v1154
  %2990 = vmatpush.msra.mxu0 %v1153
  %2991 = vmatpush.msra.mxu0 %v1152
  %2992 = vmatpush.msra.mxu0 %v1151
  %2993 = vmatpush.msra.mxu0 %v1150
  %2994 = vmatmul.f32.gmra.mxu0 %v92
  %v2995 = vpop.f32.mrf.mxu0
  %v2996 = vadd.f32 %v2976, %v2995
  %2997 = vdwg.mxu0
  %2998 = vmatpush.msra.mxu0 %v1181
  %2999 = vmatpush.msra.mxu0 %v1180
  %3000 = vmatpush.msra.mxu0 %v1179
  %3001 = vmatpush.msra.mxu0 %v1178
  %3002 = vmatpush.msra.mxu0 %v1177
  %3003 = vmatpush.msra.mxu0 %v1176
  %3004 = vmatpush.msra.mxu0 %v1175
  %3005 = vmatpush.msra.mxu0 %v1174
  %3006 = vmatpush.msra.mxu0 %v1173
  %3007 = vmatpush.msra.mxu0 %v1172
  %3008 = vmatpush.msra.mxu0 %v1171
  %3009 = vmatpush.msra.mxu0 %v1170
  %3010 = vmatpush.msra.mxu0 %v1169
  %3011 = vmatpush.msra.mxu0 %v1168
  %3012 = vmatpush.msra.mxu0 %v1167
  %3013 = vmatpush.msra.mxu0 %v1166
  %3014 = vmatmul.f32.gmra.mxu0 %v93
  %v3015 = vpop.f32.mrf.mxu0
  %v3016 = vadd.f32 %v2996, %v3015
  %3017 = vdwg.mxu0
  %3018 = vmatpush.msra.mxu0 %v1197
  %3019 = vmatpush.msra.mxu0 %v1196
  %3020 = vmatpush.msra.mxu0 %v1195
  %3021 = vmatpush.msra.mxu0 %v1194
  %3022 = vmatpush.msra.mxu0 %v1193
  %3023 = vmatpush.msra.mxu0 %v1192
  %3024 = vmatpush.msra.mxu0 %v1191
  %3025 = vmatpush.msra.mxu0 %v1190
  %3026 = vmatpush.msra.mxu0 %v1189
  %3027 = vmatpush.msra.mxu0 %v1188
  %3028 = vmatpush.msra.mxu0 %v1187
  %3029 = vmatpush.msra.mxu0 %v1186
  %3030 = vmatpush.msra.mxu0 %v1185
  %3031 = vmatpush.msra.mxu0 %v1184
  %3032 = vmatpush.msra.mxu0 %v1183
  %3033 = vmatpush.msra.mxu0 %v1182
  %3034 = vmatmul.f32.gmra.mxu0 %v94
  %v3035 = vpop.f32.mrf.mxu0
  %v3036 = vadd.f32 %v3016, %v3035
  %3037 = vdwg.mxu0
  %3038 = vmatpush.msra.mxu0 %v1213
  %3039 = vmatpush.msra.mxu0 %v1212
  %3040 = vmatpush.msra.mxu0 %v1211
  %3041 = vmatpush.msra.mxu0 %v1210
  %3042 = vmatpush.msra.mxu0 %v1209
  %3043 = vmatpush.msra.mxu0 %v1208
  %3044 = vmatpush.msra.mxu0 %v1207
  %3045 = vmatpush.msra.mxu0 %v1206
  %3046 = vmatpush.msra.mxu0 %v1205
  %3047 = vmatpush.msra.mxu0 %v1204
  %3048 = vmatpush.msra.mxu0 %v1203
  %3049 = vmatpush.msra.mxu0 %v1202
  %3050 = vmatpush.msra.mxu0 %v1201
  %3051 = vmatpush.msra.mxu0 %v1200
  %3052 = vmatpush.msra.mxu0 %v1199
  %3053 = vmatpush.msra.mxu0 %v1198
  %3054 = vmatmul.f32.gmra.mxu0 %v95
  %v3055 = vpop.f32.mrf.mxu0
  %v3056 = vadd.f32 %v3036, %v3055
  %3057 = vdwg.mxu0
  %3058 = vmatpush.msra.mxu0 %v1229
  %3059 = vmatpush.msra.mxu0 %v1228
  %3060 = vmatpush.msra.mxu0 %v1227
  %3061 = vmatpush.msra.mxu0 %v1226
  %3062 = vmatpush.msra.mxu0 %v1225
  %3063 = vmatpush.msra.mxu0 %v1224
  %3064 = vmatpush.msra.mxu0 %v1223
  %3065 = vmatpush.msra.mxu0 %v1222
  %3066 = vmatpush.msra.mxu0 %v1221
  %3067 = vmatpush.msra.mxu0 %v1220
  %3068 = vmatpush.msra.mxu0 %v1219
  %3069 = vmatpush.msra.mxu0 %v1218
  %3070 = vmatpush.msra.mxu0 %v1217
  %3071 = vmatpush.msra.mxu0 %v1216
  %3072 = vmatpush.msra.mxu0 %v1215
  %3073 = vmatpush.msra.mxu0 %v1214
  %3074 = vmatmul.f32.gmra.mxu0 %v96
  %v3075 = vpop.f32.mrf.mxu0
  %v3076 = vadd.f32 %v3056, %v3075
  %3077 = vdwg.mxu0
  %3078 = vmatpush.msra.mxu0 %v1245
  %3079 = vmatpush.msra.mxu0 %v1244
  %3080 = vmatpush.msra.mxu0 %v1243
  %3081 = vmatpush.msra.mxu0 %v1242
  %3082 = vmatpush.msra.mxu0 %v1241
  %3083 = vmatpush.msra.mxu0 %v1240
  %3084 = vmatpush.msra.mxu0 %v1239
  %3085 = vmatpush.msra.mxu0 %v1238
  %3086 = vmatpush.msra.mxu0 %v1237
  %3087 = vmatpush.msra.mxu0 %v1236
  %3088 = vmatpush.msra.mxu0 %v1235
  %3089 = vmatpush.msra.mxu0 %v1234
  %3090 = vmatpush.msra.mxu0 %v1233
  %3091 = vmatpush.msra.mxu0 %v1232
  %3092 = vmatpush.msra.mxu0 %v1231
  %3093 = vmatpush.msra.mxu0 %v1230
  %3094 = vmatmul.f32.gmra.mxu0 %v97
  %v3095 = vpop.f32.mrf.mxu0
  %v3096 = vadd.f32 %v3076, %v3095
  %3097 = vdwg.mxu0
  %3098 = vmatpush.msra.mxu0 %v1261
  %3099 = vmatpush.msra.mxu0 %v1260
  %3100 = vmatpush.msra.mxu0 %v1259
  %3101 = vmatpush.msra.mxu0 %v1258
  %3102 = vmatpush.msra.mxu0 %v1257
  %3103 = vmatpush.msra.mxu0 %v1256
  %3104 = vmatpush.msra.mxu0 %v1255
  %3105 = vmatpush.msra.mxu0 %v1254
  %3106 = vmatpush.msra.mxu0 %v1253
  %3107 = vmatpush.msra.mxu0 %v1252
  %3108 = vmatpush.msra.mxu0 %v1251
  %3109 = vmatpush.msra.mxu0 %v1250
  %3110 = vmatpush.msra.mxu0 %v1249
  %3111 = vmatpush.msra.mxu0 %v1248
  %3112 = vmatpush.msra.mxu0 %v1247
  %3113 = vmatpush.msra.mxu0 %v1246
  %3114 = vmatmul.f32.gmra.mxu0 %v98
  %v3115 = vpop.f32.mrf.mxu0
  %v3116 = vadd.f32 %v3096, %v3115
  %3117 = vdwg.mxu0
  %3118 = vmatpush.msra.mxu0 %v1277
  %3119 = vmatpush.msra.mxu0 %v1276
  %3120 = vmatpush.msra.mxu0 %v1275
  %3121 = vmatpush.msra.mxu0 %v1274
  %3122 = vmatpush.msra.mxu0 %v1273
  %3123 = vmatpush.msra.mxu0 %v1272
  %3124 = vmatpush.msra.mxu0 %v1271
  %3125 = vmatpush.msra.mxu0 %v1270
  %3126 = vmatpush.msra.mxu0 %v1269
  %3127 = vmatpush.msra.mxu0 %v1268
  %3128 = vmatpush.msra.mxu0 %v1267
  %3129 = vmatpush.msra.mxu0 %v1266
  %3130 = vmatpush.msra.mxu0 %v1265
  %3131 = vmatpush.msra.mxu0 %v1264
  %3132 = vmatpush.msra.mxu0 %v1263
  %3133 = vmatpush.msra.mxu0 %v1262
  %3134 = vmatmul.f32.gmra.mxu0 %v99
  %v3135 = vpop.f32.mrf.mxu0
  %v3136 = vadd.f32 %v3116, %v3135
  %3137 = vdwg.mxu0
  %3138 = vmatpush.msra.mxu0 %v1293
  %3139 = vmatpush.msra.mxu0 %v1292
  %3140 = vmatpush.msra.mxu0 %v1291
  %3141 = vmatpush.msra.mxu0 %v1290
  %3142 = vmatpush.msra.mxu0 %v1289
  %3143 = vmatpush.msra.mxu0 %v1288
  %3144 = vmatpush.msra.mxu0 %v1287
  %3145 = vmatpush.msra.mxu0 %v1286
  %3146 = vmatpush.msra.mxu0 %v1285
  %3147 = vmatpush.msra.mxu0 %v1284
  %3148 = vmatpush.msra.mxu0 %v1283
  %3149 = vmatpush.msra.mxu0 %v1282
  %3150 = vmatpush.msra.mxu0 %v1281
  %3151 = vmatpush.msra.mxu0 %v1280
  %3152 = vmatpush.msra.mxu0 %v1279
  %3153 = vmatpush.msra.mxu0 %v1278
  %3154 = vmatmul.f32.gmra.mxu0 %v100
  %v3155 = vpop.f32.mrf.mxu0
  %v3156 = vadd.f32 %v3136, %v3155
  %3157 = vdwg.mxu0
  %3158 = vmatpush.msra.mxu0 %v1309
  %3159 = vmatpush.msra.mxu0 %v1308
  %3160 = vmatpush.msra.mxu0 %v1307
  %3161 = vmatpush.msra.mxu0 %v1306
  %3162 = vmatpush.msra.mxu0 %v1305
  %3163 = vmatpush.msra.mxu0 %v1304
  %3164 = vmatpush.msra.mxu0 %v1303
  %3165 = vmatpush.msra.mxu0 %v1302
  %3166 = vmatpush.msra.mxu0 %v1301
  %3167 = vmatpush.msra.mxu0 %v1300
  %3168 = vmatpush.msra.mxu0 %v1299
  %3169 = vmatpush.msra.mxu0 %v1298
  %3170 = vmatpush.msra.mxu0 %v1297
  %3171 = vmatpush.msra.mxu0 %v1296
  %3172 = vmatpush.msra.mxu0 %v1295
  %3173 = vmatpush.msra.mxu0 %v1294
  %3174 = vmatmul.f32.gmra.mxu0 %v101
  %v3175 = vpop.f32.mrf.mxu0
  %v3176 = vadd.f32 %v3156, %v3175
  %3177 = vdwg.mxu0
  %3178 = vmatpush.msra.mxu0 %v1325
  %3179 = vmatpush.msra.mxu0 %v1324
  %3180 = vmatpush.msra.mxu0 %v1323
  %3181 = vmatpush.msra.mxu0 %v1322
  %3182 = vmatpush.msra.mxu0 %v1321
  %3183 = vmatpush.msra.mxu0 %v1320
  %3184 = vmatpush.msra.mxu0 %v1319
  %3185 = vmatpush.msra.mxu0 %v1318
  %3186 = vmatpush.msra.mxu0 %v1317
  %3187 = vmatpush.msra.mxu0 %v1316
  %3188 = vmatpush.msra.mxu0 %v1315
  %3189 = vmatpush.msra.mxu0 %v1314
  %3190 = vmatpush.msra.mxu0 %v1313
  %3191 = vmatpush.msra.mxu0 %v1312
  %3192 = vmatpush.msra.mxu0 %v1311
  %3193 = vmatpush.msra.mxu0 %v1310
  %3194 = vmatmul.f32.gmra.mxu0 %v102
  %v3195 = vpop.f32.mrf.mxu0
  %v3196 = vadd.f32 %v3176, %v3195
  %3197 = vdwg.mxu0
  %3198 = vmatpush.msra.mxu0 %v1341
  %3199 = vmatpush.msra.mxu0 %v1340
  %3200 = vmatpush.msra.mxu0 %v1339
  %3201 = vmatpush.msra.mxu0 %v1338
  %3202 = vmatpush.msra.mxu0 %v1337
  %3203 = vmatpush.msra.mxu0 %v1336
  %3204 = vmatpush.msra.mxu0 %v1335
  %3205 = vmatpush.msra.mxu0 %v1334
  %3206 = vmatpush.msra.mxu0 %v1333
  %3207 = vmatpush.msra.mxu0 %v1332
  %3208 = vmatpush.msra.mxu0 %v1331
  %3209 = vmatpush.msra.mxu0 %v1330
  %3210 = vmatpush.msra.mxu0 %v1329
  %3211 = vmatpush.msra.mxu0 %v1328
  %3212 = vmatpush.msra.mxu0 %v1327
  %3213 = vmatpush.msra.mxu0 %v1326
  %3214 = vmatmul.f32.gmra.mxu0 %v103
  %v3215 = vpop.f32.mrf.mxu0
  %v3216 = vadd.f32 %v3196, %v3215
  %3217 = vdwg.mxu0
  %3218 = vmatpush.msra.mxu0 %v1357
  %3219 = vmatpush.msra.mxu0 %v1356
  %3220 = vmatpush.msra.mxu0 %v1355
  %3221 = vmatpush.msra.mxu0 %v1354
  %3222 = vmatpush.msra.mxu0 %v1353
  %3223 = vmatpush.msra.mxu0 %v1352
  %3224 = vmatpush.msra.mxu0 %v1351
  %3225 = vmatpush.msra.mxu0 %v1350
  %3226 = vmatpush.msra.mxu0 %v1349
  %3227 = vmatpush.msra.mxu0 %v1348
  %3228 = vmatpush.msra.mxu0 %v1347
  %3229 = vmatpush.msra.mxu0 %v1346
  %3230 = vmatpush.msra.mxu0 %v1345
  %3231 = vmatpush.msra.mxu0 %v1344
  %3232 = vmatpush.msra.mxu0 %v1343
  %3233 = vmatpush.msra.mxu0 %v1342
  %3234 = vmatmul.f32.gmra.mxu0 %v104
  %v3235 = vpop.f32.mrf.mxu0
  %v3236 = vadd.f32 %v3216, %v3235
  %3237 = vdwg.mxu0
  %3238 = vmatpush.msra.mxu0 %v1373
  %3239 = vmatpush.msra.mxu0 %v1372
  %3240 = vmatpush.msra.mxu0 %v1371
  %3241 = vmatpush.msra.mxu0 %v1370
  %3242 = vmatpush.msra.mxu0 %v1369
  %3243 = vmatpush.msra.mxu0 %v1368
  %3244 = vmatpush.msra.mxu0 %v1367
  %3245 = vmatpush.msra.mxu0 %v1366
  %3246 = vmatpush.msra.mxu0 %v1365
  %3247 = vmatpush.msra.mxu0 %v1364
  %3248 = vmatpush.msra.mxu0 %v1363
  %3249 = vmatpush.msra.mxu0 %v1362
  %3250 = vmatpush.msra.mxu0 %v1361
  %3251 = vmatpush.msra.mxu0 %v1360
  %3252 = vmatpush.msra.mxu0 %v1359
  %3253 = vmatpush.msra.mxu0 %v1358
  %3254 = vmatmul.f32.gmra.mxu0 %v105
  %v3255 = vpop.f32.mrf.mxu0
  %v3256 = vadd.f32 %v3236, %v3255
  %3257 = vdwg.mxu0
  %3258 = vmatpush.msra.mxu0 %v1389
  %3259 = vmatpush.msra.mxu0 %v1388
  %3260 = vmatpush.msra.mxu0 %v1387
  %3261 = vmatpush.msra.mxu0 %v1386
  %3262 = vmatpush.msra.mxu0 %v1385
  %3263 = vmatpush.msra.mxu0 %v1384
  %3264 = vmatpush.msra.mxu0 %v1383
  %3265 = vmatpush.msra.mxu0 %v1382
  %3266 = vmatpush.msra.mxu0 %v1381
  %3267 = vmatpush.msra.mxu0 %v1380
  %3268 = vmatpush.msra.mxu0 %v1379
  %3269 = vmatpush.msra.mxu0 %v1378
  %3270 = vmatpush.msra.mxu0 %v1377
  %3271 = vmatpush.msra.mxu0 %v1376
  %3272 = vmatpush.msra.mxu0 %v1375
  %3273 = vmatpush.msra.mxu0 %v1374
  %3274 = vmatmul.f32.gmra.mxu0 %v106
  %v3275 = vpop.f32.mrf.mxu0
  %v3276 = vadd.f32 %v3256, %v3275
  %3277 = vdwg.mxu0
  %3278 = vmatpush.msra.mxu0 %v1405
  %3279 = vmatpush.msra.mxu0 %v1404
  %3280 = vmatpush.msra.mxu0 %v1403
  %3281 = vmatpush.msra.mxu0 %v1402
  %3282 = vmatpush.msra.mxu0 %v1401
  %3283 = vmatpush.msra.mxu0 %v1400
  %3284 = vmatpush.msra.mxu0 %v1399
  %3285 = vmatpush.msra.mxu0 %v1398
  %3286 = vmatpush.msra.mxu0 %v1397
  %3287 = vmatpush.msra.mxu0 %v1396
  %3288 = vmatpush.msra.mxu0 %v1395
  %3289 = vmatpush.msra.mxu0 %v1394
  %3290 = vmatpush.msra.mxu0 %v1393
  %3291 = vmatpush.msra.mxu0 %v1392
  %3292 = vmatpush.msra.mxu0 %v1391
  %3293 = vmatpush.msra.mxu0 %v1390
  %3294 = vmatmul.f32.gmra.mxu0 %v107
  %v3295 = vpop.f32.mrf.mxu0
  %v3296 = vadd.f32 %v3276, %v3295
  %3297 = vdwg.mxu0
  %3298 = vmatpush.msra.mxu0 %v1421
  %3299 = vmatpush.msra.mxu0 %v1420
  %3300 = vmatpush.msra.mxu0 %v1419
  %3301 = vmatpush.msra.mxu0 %v1418
  %3302 = vmatpush.msra.mxu0 %v1417
  %3303 = vmatpush.msra.mxu0 %v1416
  %3304 = vmatpush.msra.mxu0 %v1415
  %3305 = vmatpush.msra.mxu0 %v1414
  %3306 = vmatpush.msra.mxu0 %v1413
  %3307 = vmatpush.msra.mxu0 %v1412
  %3308 = vmatpush.msra.mxu0 %v1411
  %3309 = vmatpush.msra.mxu0 %v1410
  %3310 = vmatpush.msra.mxu0 %v1409
  %3311 = vmatpush.msra.mxu0 %v1408
  %3312 = vmatpush.msra.mxu0 %v1407
  %3313 = vmatpush.msra.mxu0 %v1406
  %3314 = vmatmul.f32.gmra.mxu0 %v108
  %v3315 = vpop.f32.mrf.mxu0
  %v3316 = vadd.f32 %v3296, %v3315
  %3317 = vdwg.mxu0
  %3318 = vmatpush.msra.mxu0 %v1437
  %3319 = vmatpush.msra.mxu0 %v1436
  %3320 = vmatpush.msra.mxu0 %v1435
  %3321 = vmatpush.msra.mxu0 %v1434
  %3322 = vmatpush.msra.mxu0 %v1433
  %3323 = vmatpush.msra.mxu0 %v1432
  %3324 = vmatpush.msra.mxu0 %v1431
  %3325 = vmatpush.msra.mxu0 %v1430
  %3326 = vmatpush.msra.mxu0 %v1429
  %3327 = vmatpush.msra.mxu0 %v1428
  %3328 = vmatpush.msra.mxu0 %v1427
  %3329 = vmatpush.msra.mxu0 %v1426
  %3330 = vmatpush.msra.mxu0 %v1425
  %3331 = vmatpush.msra.mxu0 %v1424
  %3332 = vmatpush.msra.mxu0 %v1423
  %3333 = vmatpush.msra.mxu0 %v1422
  %3334 = vmatmul.f32.gmra.mxu0 %v109
  %v3335 = vpop.f32.mrf.mxu0
  %v3336 = vadd.f32 %v3316, %v3335
  %3337 = vdwg.mxu0
  %3338 = vmatpush.msra.mxu0 %v1453
  %3339 = vmatpush.msra.mxu0 %v1452
  %3340 = vmatpush.msra.mxu0 %v1451
  %3341 = vmatpush.msra.mxu0 %v1450
  %3342 = vmatpush.msra.mxu0 %v1449
  %3343 = vmatpush.msra.mxu0 %v1448
  %3344 = vmatpush.msra.mxu0 %v1447
  %3345 = vmatpush.msra.mxu0 %v1446
  %3346 = vmatpush.msra.mxu0 %v1445
  %3347 = vmatpush.msra.mxu0 %v1444
  %3348 = vmatpush.msra.mxu0 %v1443
  %3349 = vmatpush.msra.mxu0 %v1442
  %3350 = vmatpush.msra.mxu0 %v1441
  %3351 = vmatpush.msra.mxu0 %v1440
  %3352 = vmatpush.msra.mxu0 %v1439
  %3353 = vmatpush.msra.mxu0 %v1438
  %3354 = vmatmul.f32.gmra.mxu0 %v110
  %v3355 = vpop.f32.mrf.mxu0
  %v3356 = vadd.f32 %v3336, %v3355
  %3357 = vdwg.mxu0
  %3358 = vmatpush.msra.mxu0 %v1469
  %3359 = vmatpush.msra.mxu0 %v1468
  %3360 = vmatpush.msra.mxu0 %v1467
  %3361 = vmatpush.msra.mxu0 %v1466
  %3362 = vmatpush.msra.mxu0 %v1465
  %3363 = vmatpush.msra.mxu0 %v1464
  %3364 = vmatpush.msra.mxu0 %v1463
  %3365 = vmatpush.msra.mxu0 %v1462
  %3366 = vmatpush.msra.mxu0 %v1461
  %3367 = vmatpush.msra.mxu0 %v1460
  %3368 = vmatpush.msra.mxu0 %v1459
  %3369 = vmatpush.msra.mxu0 %v1458
  %3370 = vmatpush.msra.mxu0 %v1457
  %3371 = vmatpush.msra.mxu0 %v1456
  %3372 = vmatpush.msra.mxu0 %v1455
  %3373 = vmatpush.msra.mxu0 %v1454
  %3374 = vmatmul.f32.gmra.mxu0 %v111
  %v3375 = vpop.f32.mrf.mxu0
  %v3376 = vadd.f32 %v3356, %v3375
  %3377 = vdwg.mxu0
  %3378 = vmatpush.msra.mxu0 %v1485
  %3379 = vmatpush.msra.mxu0 %v1484
  %3380 = vmatpush.msra.mxu0 %v1483
  %3381 = vmatpush.msra.mxu0 %v1482
  %3382 = vmatpush.msra.mxu0 %v1481
  %3383 = vmatpush.msra.mxu0 %v1480
  %3384 = vmatpush.msra.mxu0 %v1479
  %3385 = vmatpush.msra.mxu0 %v1478
  %3386 = vmatpush.msra.mxu0 %v1477
  %3387 = vmatpush.msra.mxu0 %v1476
  %3388 = vmatpush.msra.mxu0 %v1475
  %3389 = vmatpush.msra.mxu0 %v1474
  %3390 = vmatpush.msra.mxu0 %v1473
  %3391 = vmatpush.msra.mxu0 %v1472
  %3392 = vmatpush.msra.mxu0 %v1471
  %3393 = vmatpush.msra.mxu0 %v1470
  %3394 = vmatmul.f32.gmra.mxu0 %v112
  %v3395 = vpop.f32.mrf.mxu0
  %v3396 = vadd.f32 %v3376, %v3395
  %3397 = vdwg.mxu0
  %3398 = vmatpush.msra.mxu0 %v1501
  %3399 = vmatpush.msra.mxu0 %v1500
  %3400 = vmatpush.msra.mxu0 %v1499
  %3401 = vmatpush.msra.mxu0 %v1498
  %3402 = vmatpush.msra.mxu0 %v1497
  %3403 = vmatpush.msra.mxu0 %v1496
  %3404 = vmatpush.msra.mxu0 %v1495
  %3405 = vmatpush.msra.mxu0 %v1494
  %3406 = vmatpush.msra.mxu0 %v1493
  %3407 = vmatpush.msra.mxu0 %v1492
  %3408 = vmatpush.msra.mxu0 %v1491
  %3409 = vmatpush.msra.mxu0 %v1490
  %3410 = vmatpush.msra.mxu0 %v1489
  %3411 = vmatpush.msra.mxu0 %v1488
  %3412 = vmatpush.msra.mxu0 %v1487
  %3413 = vmatpush.msra.mxu0 %v1486
  %3414 = vmatmul.f32.gmra.mxu0 %v113
  %v3415 = vpop.f32.mrf.mxu0
  %v3416 = vadd.f32 %v3396, %v3415
  %3417 = vdwg.mxu0
  %3418 = vmatpush.msra.mxu0 %v1517
  %3419 = vmatpush.msra.mxu0 %v1516
  %3420 = vmatpush.msra.mxu0 %v1515
  %3421 = vmatpush.msra.mxu0 %v1514
  %3422 = vmatpush.msra.mxu0 %v1513
  %3423 = vmatpush.msra.mxu0 %v1512
  %3424 = vmatpush.msra.mxu0 %v1511
  %3425 = vmatpush.msra.mxu0 %v1510
  %3426 = vmatpush.msra.mxu0 %v1509
  %3427 = vmatpush.msra.mxu0 %v1508
  %3428 = vmatpush.msra.mxu0 %v1507
  %3429 = vmatpush.msra.mxu0 %v1506
  %3430 = vmatpush.msra.mxu0 %v1505
  %3431 = vmatpush.msra.mxu0 %v1504
  %3432 = vmatpush.msra.mxu0 %v1503
  %3433 = vmatpush.msra.mxu0 %v1502
  %3434 = vmatmul.f32.gmra.mxu0 %v114
  %v3435 = vpop.f32.mrf.mxu0
  %v3436 = vadd.f32 %v3416, %v3435
  %3437 = vdwg.mxu0
  %3438 = vmatpush.msra.mxu0 %v1533
  %3439 = vmatpush.msra.mxu0 %v1532
  %3440 = vmatpush.msra.mxu0 %v1531
  %3441 = vmatpush.msra.mxu0 %v1530
  %3442 = vmatpush.msra.mxu0 %v1529
  %3443 = vmatpush.msra.mxu0 %v1528
  %3444 = vmatpush.msra.mxu0 %v1527
  %3445 = vmatpush.msra.mxu0 %v1526
  %3446 = vmatpush.msra.mxu0 %v1525
  %3447 = vmatpush.msra.mxu0 %v1524
  %3448 = vmatpush.msra.mxu0 %v1523
  %3449 = vmatpush.msra.mxu0 %v1522
  %3450 = vmatpush.msra.mxu0 %v1521
  %3451 = vmatpush.msra.mxu0 %v1520
  %3452 = vmatpush.msra.mxu0 %v1519
  %3453 = vmatpush.msra.mxu0 %v1518
  %3454 = vmatmul.f32.gmra.mxu0 %v115
  %v3455 = vpop.f32.mrf.mxu0
  %v3456 = vadd.f32 %v3436, %v3455
  %3457 = vdwg.mxu0
  %3458 = vmatpush.msra.mxu0 %v1549
  %3459 = vmatpush.msra.mxu0 %v1548
  %3460 = vmatpush.msra.mxu0 %v1547
  %3461 = vmatpush.msra.mxu0 %v1546
  %3462 = vmatpush.msra.mxu0 %v1545
  %3463 = vmatpush.msra.mxu0 %v1544
  %3464 = vmatpush.msra.mxu0 %v1543
  %3465 = vmatpush.msra.mxu0 %v1542
  %3466 = vmatpush.msra.mxu0 %v1541
  %3467 = vmatpush.msra.mxu0 %v1540
  %3468 = vmatpush.msra.mxu0 %v1539
  %3469 = vmatpush.msra.mxu0 %v1538
  %3470 = vmatpush.msra.mxu0 %v1537
  %3471 = vmatpush.msra.mxu0 %v1536
  %3472 = vmatpush.msra.mxu0 %v1535
  %3473 = vmatpush.msra.mxu0 %v1534
  %3474 = vmatmul.f32.gmra.mxu0 %v116
  %v3475 = vpop.f32.mrf.mxu0
  %v3476 = vadd.f32 %v3456, %v3475
  %3477 = vdwg.mxu0
  %3478 = vmatpush.msra.mxu0 %v1565
  %3479 = vmatpush.msra.mxu0 %v1564
  %3480 = vmatpush.msra.mxu0 %v1563
  %3481 = vmatpush.msra.mxu0 %v1562
  %3482 = vmatpush.msra.mxu0 %v1561
  %3483 = vmatpush.msra.mxu0 %v1560
  %3484 = vmatpush.msra.mxu0 %v1559
  %3485 = vmatpush.msra.mxu0 %v1558
  %3486 = vmatpush.msra.mxu0 %v1557
  %3487 = vmatpush.msra.mxu0 %v1556
  %3488 = vmatpush.msra.mxu0 %v1555
  %3489 = vmatpush.msra.mxu0 %v1554
  %3490 = vmatpush.msra.mxu0 %v1553
  %3491 = vmatpush.msra.mxu0 %v1552
  %3492 = vmatpush.msra.mxu0 %v1551
  %3493 = vmatpush.msra.mxu0 %v1550
  %3494 = vmatmul.f32.gmra.mxu0 %v117
  %v3495 = vpop.f32.mrf.mxu0
  %v3496 = vadd.f32 %v3476, %v3495
  %3497 = vdwg.mxu0
  %3498 = vmatpush.msra.mxu0 %v1581
  %3499 = vmatpush.msra.mxu0 %v1580
  %3500 = vmatpush.msra.mxu0 %v1579
  %3501 = vmatpush.msra.mxu0 %v1578
  %3502 = vmatpush.msra.mxu0 %v1577
  %3503 = vmatpush.msra.mxu0 %v1576
  %3504 = vmatpush.msra.mxu0 %v1575
  %3505 = vmatpush.msra.mxu0 %v1574
  %3506 = vmatpush.msra.mxu0 %v1573
  %3507 = vmatpush.msra.mxu0 %v1572
  %3508 = vmatpush.msra.mxu0 %v1571
  %3509 = vmatpush.msra.mxu0 %v1570
  %3510 = vmatpush.msra.mxu0 %v1569
  %3511 = vmatpush.msra.mxu0 %v1568
  %3512 = vmatpush.msra.mxu0 %v1567
  %3513 = vmatpush.msra.mxu0 %v1566
  %3514 = vmatmul.f32.gmra.mxu0 %v118
  %v3515 = vpop.f32.mrf.mxu0
  %v3516 = vadd.f32 %v3496, %v3515
  %3517 = vdwg.mxu0
  %3518 = vmatpush.msra.mxu0 %v1597
  %3519 = vmatpush.msra.mxu0 %v1596
  %3520 = vmatpush.msra.mxu0 %v1595
  %3521 = vmatpush.msra.mxu0 %v1594
  %3522 = vmatpush.msra.mxu0 %v1593
  %3523 = vmatpush.msra.mxu0 %v1592
  %3524 = vmatpush.msra.mxu0 %v1591
  %3525 = vmatpush.msra.mxu0 %v1590
  %3526 = vmatpush.msra.mxu0 %v1589
  %3527 = vmatpush.msra.mxu0 %v1588
  %3528 = vmatpush.msra.mxu0 %v1587
  %3529 = vmatpush.msra.mxu0 %v1586
  %3530 = vmatpush.msra.mxu0 %v1585
  %3531 = vmatpush.msra.mxu0 %v1584
  %3532 = vmatpush.msra.mxu0 %v1583
  %3533 = vmatpush.msra.mxu0 %v1582
  %3534 = vmatmul.f32.gmra.mxu0 %v119
  %v3535 = vpop.f32.mrf.mxu0
  %v3536 = vadd.f32 %v3516, %v3535
  %3537 = vdwg.mxu0
  %3538 = vmatpush.msra.mxu0 %v1613
  %3539 = vmatpush.msra.mxu0 %v1612
  %3540 = vmatpush.msra.mxu0 %v1611
  %3541 = vmatpush.msra.mxu0 %v1610
  %3542 = vmatpush.msra.mxu0 %v1609
  %3543 = vmatpush.msra.mxu0 %v1608
  %3544 = vmatpush.msra.mxu0 %v1607
  %3545 = vmatpush.msra.mxu0 %v1606
  %3546 = vmatpush.msra.mxu0 %v1605
  %3547 = vmatpush.msra.mxu0 %v1604
  %3548 = vmatpush.msra.mxu0 %v1603
  %3549 = vmatpush.msra.mxu0 %v1602
  %3550 = vmatpush.msra.mxu0 %v1601
  %3551 = vmatpush.msra.mxu0 %v1600
  %3552 = vmatpush.msra.mxu0 %v1599
  %3553 = vmatpush.msra.mxu0 %v1598
  %3554 = vmatmul.f32.gmra.mxu0 %v120
  %v3555 = vpop.f32.mrf.mxu0
  %v3556 = vadd.f32 %v3536, %v3555
  %3557 = vdwg.mxu0
  %3558 = vmatpush.msra.mxu0 %v1629
  %3559 = vmatpush.msra.mxu0 %v1628
  %3560 = vmatpush.msra.mxu0 %v1627
  %3561 = vmatpush.msra.mxu0 %v1626
  %3562 = vmatpush.msra.mxu0 %v1625
  %3563 = vmatpush.msra.mxu0 %v1624
  %3564 = vmatpush.msra.mxu0 %v1623
  %3565 = vmatpush.msra.mxu0 %v1622
  %3566 = vmatpush.msra.mxu0 %v1621
  %3567 = vmatpush.msra.mxu0 %v1620
  %3568 = vmatpush.msra.mxu0 %v1619
  %3569 = vmatpush.msra.mxu0 %v1618
  %3570 = vmatpush.msra.mxu0 %v1617
  %3571 = vmatpush.msra.mxu0 %v1616
  %3572 = vmatpush.msra.mxu0 %v1615
  %3573 = vmatpush.msra.mxu0 %v1614
  %3574 = vmatmul.f32.gmra.mxu0 %v121
  %v3575 = vpop.f32.mrf.mxu0
  %v3576 = vadd.f32 %v3556, %v3575
  %3577 = vdwg.mxu0
  %3578 = vmatpush.msra.mxu0 %v1645
  %3579 = vmatpush.msra.mxu0 %v1644
  %3580 = vmatpush.msra.mxu0 %v1643
  %3581 = vmatpush.msra.mxu0 %v1642
  %3582 = vmatpush.msra.mxu0 %v1641
  %3583 = vmatpush.msra.mxu0 %v1640
  %3584 = vmatpush.msra.mxu0 %v1639
  %3585 = vmatpush.msra.mxu0 %v1638
  %3586 = vmatpush.msra.mxu0 %v1637
  %3587 = vmatpush.msra.mxu0 %v1636
  %3588 = vmatpush.msra.mxu0 %v1635
  %3589 = vmatpush.msra.mxu0 %v1634
  %3590 = vmatpush.msra.mxu0 %v1633
  %3591 = vmatpush.msra.mxu0 %v1632
  %3592 = vmatpush.msra.mxu0 %v1631
  %3593 = vmatpush.msra.mxu0 %v1630
  %3594 = vmatmul.f32.gmra.mxu0 %v122
  %v3595 = vpop.f32.mrf.mxu0
  %v3596 = vadd.f32 %v3576, %v3595
  %3597 = vdwg.mxu0
  %3598 = vmatpush.msra.mxu0 %v1661
  %3599 = vmatpush.msra.mxu0 %v1660
  %3600 = vmatpush.msra.mxu0 %v1659
  %3601 = vmatpush.msra.mxu0 %v1658
  %3602 = vmatpush.msra.mxu0 %v1657
  %3603 = vmatpush.msra.mxu0 %v1656
  %3604 = vmatpush.msra.mxu0 %v1655
  %3605 = vmatpush.msra.mxu0 %v1654
  %3606 = vmatpush.msra.mxu0 %v1653
  %3607 = vmatpush.msra.mxu0 %v1652
  %3608 = vmatpush.msra.mxu0 %v1651
  %3609 = vmatpush.msra.mxu0 %v1650
  %3610 = vmatpush.msra.mxu0 %v1649
  %3611 = vmatpush.msra.mxu0 %v1648
  %3612 = vmatpush.msra.mxu0 %v1647
  %3613 = vmatpush.msra.mxu0 %v1646
  %3614 = vmatmul.f32.gmra.mxu0 %v123
  %v3615 = vpop.f32.mrf.mxu0
  %v3616 = vadd.f32 %v3596, %v3615
  %3617 = vdwg.mxu0
  %3618 = vmatpush.msra.mxu0 %v1677
  %3619 = vmatpush.msra.mxu0 %v1676
  %3620 = vmatpush.msra.mxu0 %v1675
  %3621 = vmatpush.msra.mxu0 %v1674
  %3622 = vmatpush.msra.mxu0 %v1673
  %3623 = vmatpush.msra.mxu0 %v1672
  %3624 = vmatpush.msra.mxu0 %v1671
  %3625 = vmatpush.msra.mxu0 %v1670
  %3626 = vmatpush.msra.mxu0 %v1669
  %3627 = vmatpush.msra.mxu0 %v1668
  %3628 = vmatpush.msra.mxu0 %v1667
  %3629 = vmatpush.msra.mxu0 %v1666
  %3630 = vmatpush.msra.mxu0 %v1665
  %3631 = vmatpush.msra.mxu0 %v1664
  %3632 = vmatpush.msra.mxu0 %v1663
  %3633 = vmatpush.msra.mxu0 %v1662
  %3634 = vmatmul.f32.gmra.mxu0 %v124
  %v3635 = vpop.f32.mrf.mxu0
  %v3636 = vadd.f32 %v3616, %v3635
  %3637 = vdwg.mxu0
  %3638 = vmatpush.msra.mxu0 %v1693
  %3639 = vmatpush.msra.mxu0 %v1692
  %3640 = vmatpush.msra.mxu0 %v1691
  %3641 = vmatpush.msra.mxu0 %v1690
  %3642 = vmatpush.msra.mxu0 %v1689
  %3643 = vmatpush.msra.mxu0 %v1688
  %3644 = vmatpush.msra.mxu0 %v1687
  %3645 = vmatpush.msra.mxu0 %v1686
  %3646 = vmatpush.msra.mxu0 %v1685
  %3647 = vmatpush.msra.mxu0 %v1684
  %3648 = vmatpush.msra.mxu0 %v1683
  %3649 = vmatpush.msra.mxu0 %v1682
  %3650 = vmatpush.msra.mxu0 %v1681
  %3651 = vmatpush.msra.mxu0 %v1680
  %3652 = vmatpush.msra.mxu0 %v1679
  %3653 = vmatpush.msra.mxu0 %v1678
  %3654 = vmatmul.f32.gmra.mxu0 %v125
  %v3655 = vpop.f32.mrf.mxu0
  %v3656 = vadd.f32 %v3636, %v3655
  %3657 = vdwg.mxu0
  %vm3658 = vcmask 244736
  %3659 = vst.msk [vmem:[%s8] sm:$0xff] %vm3658, %v3656
  %v3660 = vld [vmem:[%s3] sm:$0xff]
  %v3661 = vld [vmem:[%s3 + $0x8] sm:$0xff]
  %v3662 = vld [vmem:[%s3 + $0x10] sm:$0xff]
  %v3663 = vld [vmem:[%s3 + $0x18] sm:$0x3f]
  %v3664 = vld [vmem:[%s4] sm:$0x1]
  %v3666 = vperm.slane %v3664, 0
  %v3669 = vsel %vm3658, %v3656, 0
  %vm3671 = vcmask 1045504
  %v3673 = vsel %vm3671, %v3663, 0
  %3675 = vmatpush.msra.mxu0 0.0
  %3676 = vmatpush.msra.mxu0 0.0
  %3677 = vmatpush.msra.mxu0 0.0
  %3678 = vmatpush.msra.mxu0 0.0
  %3679 = vmatpush.msra.mxu0 0.0
  %3680 = vmatpush.msra.mxu0 0.0
  %3681 = vmatpush.msra.mxu0 0.0
  %3682 = vmatpush.msra.mxu0 0.0
  %3683 = vmatpush.msra.mxu0 0.0
  %3684 = vmatpush.msra.mxu0 0.0
  %3685 = vmatpush.msra.mxu0 0.0
  %3686 = vmatpush.msra.mxu0 0.0
  %3687 = vmatpush.msra.mxu0 %v3673
  %3688 = vmatpush.msra.mxu0 %v3662
  %3689 = vmatpush.msra.mxu0 %v3661
  %3690 = vmatpush.msra.mxu0 %v3660
  %3691 = vmatmul.f32.gmra.mxu0 %v3669
  %v3692 = vpop.f32.mrf.mxu0
  %v3693 = vadd.f32 %v3666, %v3692
  %3694 = vdwg.mxu0
  %v3695 = vmax.f32 %v3693, 0.0
  %v3696 = vld [vmem:[%s5] sm:$0xff]
  %v3697 = vld [vmem:[%s5 + $0x8] sm:$0xff]
  %v3698 = vld [vmem:[%s5 + $0x10] sm:$0xff]
  %v3699 = vld [vmem:[%s5 + $0x18] sm:$0xff]
  %v3700 = vld [vmem:[%s5 + $0x20] sm:$0xff]
  %v3701 = vld [vmem:[%s5 + $0x28] sm:$0xff]
  %v3702 = vld [vmem:[%s5 + $0x30] sm:$0xff]
  %v3703 = vld [vmem:[%s5 + $0x38] sm:$0xff]
  %v3704 = vld [vmem:[%s5 + $0x40] sm:$0xff]
  %v3705 = vld [vmem:[%s5 + $0x48] sm:$0xff]
  %v3706 = vld [vmem:[%s5 + $0x50] sm:$0xff]
  %v3707 = vld [vmem:[%s5 + $0x58] sm:$0xff]
  %v3708 = vld [vmem:[%s5 + $0x60] sm:$0xff]
  %v3709 = vld [vmem:[%s5 + $0x68] sm:$0xff]
  %v3710 = vld [vmem:[%s5 + $0x70] sm:$0xff]
  %v3711 = vld [vmem:[%s5 + $0x78] sm:$0xff]
  %v3712 = vld [vmem:[%s6] sm:$0x1]
  %v3714 = vperm.slane %v3712, 0
  %3716 = vmatpush.msra.mxu0 %v3711
  %3717 = vmatpush.msra.mxu0 %v3710
  %3718 = vmatpush.msra.mxu0 %v3709
  %3719 = vmatpush.msra.mxu0 %v3708
  %3720 = vmatpush.msra.mxu0 %v3707
  %3721 = vmatpush.msra.mxu0 %v3706
  %3722 = vmatpush.msra.mxu0 %v3705
  %3723 = vmatpush.msra.mxu0 %v3704
  %3724 = vmatpush.msra.mxu0 %v3703
  %3725 = vmatpush.msra.mxu0 %v3702
  %3726 = vmatpush.msra.mxu0 %v3701
  %3727 = vmatpush.msra.mxu0 %v3700
  %3728 = vmatpush.msra.mxu0 %v3699
  %3729 = vmatpush.msra.mxu0 %v3698
  %3730 = vmatpush.msra.mxu0 %v3697
  %3731 = vmatpush.msra.mxu0 %v3696
  %3732 = vmatmul.f32.gmra.mxu0 %v3695
  %v3733 = vpop.f32.mrf.mxu0
  %v3734 = vadd.f32 %v3714, %v3733
  %3735 = vdwg.mxu0
  %3736 = vst [vmem:[%s7] sm:$0xff] %v3734
  // Predicated region
  $region30: #{_lambda_.3} parent=0 // pred_check
    _
  $region31: #{_lambda_.3} parent=0 // pred_check_branch
    %3738 = sbr.rel (0) target = $region33
  $region32: #{_lambda_.3} parent=0 // pred_region
    _
  $region33: #{_lambda_.3} parent=0 // pred_fallthru
    _
  // Predicated region
  $region34: #{_lambda_.3} parent=0 // pred_check
    _
  $region35: #{_lambda_.3} parent=0 // pred_check_branch
    %3740 = sbr.rel (0) target = $region37
  $region36: #{_lambda_.3} parent=0 // pred_region
    _
  $region37: #{_lambda_.3} parent=0 // pred_fallthru
    _
  // Predicated region
  $region38: #{_lambda_.3} parent=0 // pred_check
    _
  $region39: #{_lambda_.3} parent=0 // pred_check_branch
    %3742 = sbr.rel (0) target = $region41
  $region40: #{_lambda_.3} parent=0 // pred_region
    _
  $region41: #{_lambda_.3} parent=0 // pred_fallthru
    _
  // Predicated region
  $region42: #{_lambda_.3} parent=0 // pred_check
    _
  $region43: #{_lambda_.3} parent=0 // pred_check_branch
    %3744 = sbr.rel (0) target = $region45
  $region44: #{_lambda_.3} parent=0 // pred_region
    _
  $region45: #{_lambda_.3} parent=0 // pred_fallthru
    _

</llo_original>
